<compile_context>
chip_gen: v5e
topology: v5e:2x2
jax: 0.10.0
libtpu: 0.0.40
codegen_flags: <defaults>
</compile_context>

<pallas_src>
import jax
import jax.numpy as jnp
from jax import lax
from jax.experimental import pallas as pl
from jax.experimental.pallas import tpu as pltpu

# Samples per grid tile. Must be a multiple of 8 so the conv1 tile width
# TB*144 (= 1152 for TB=8) is a multiple of 128 lanes.
TB = 8


# ----------------------------------------------------------------------------
# Pallas kernels
# ----------------------------------------------------------------------------
def conv1_pool_relu_kernel(p_ref, w_ref, b_ref, o_ref):
    """conv1 (im2col matmul) -> 2x2 maxpool -> +bias -> relu, lane-dense output.

    p_ref: (4, F, r)  bf16   4 pool phases of transposed im2col patches
    w_ref: (C, F)     bf16   flattened conv weight (cols ordered (ki,kj,ci))
    b_ref: (C, 1)     f32
    o_ref: (C, r)     f32    r = TB*144 (multiple of 128 -> unmasked stores)
    """
    w = w_ref[...]
    z = jnp.dot(w, p_ref[0], preferred_element_type=jnp.float32)
    for a in range(1, 4):
        z = jnp.maximum(z, jnp.dot(w, p_ref[a], preferred_element_type=jnp.float32))
    # per-channel bias commutes with the phase max; relu after pool as in PyTorch
    o_ref[...] = jnp.maximum(z + b_ref[...], 0.0)


def conv2_pool_fc_kernel(p_ref, w2_ref, b2_ref, wfc_ref, bfc_ref, o_ref):
    """Fused conv2 -> 2x2 maxpool -> relu -> fc1 -> relu for one batch tile.

    p_ref  : (4, r2, F2) bf16   r2 = TB*16 rows ordered (pos-major, sample-minor)
    w2_ref : (F2, C2)    bf16
    b2_ref : (1, C2)     f32
    wfc_ref: (16, C2, O) bf16   fc1 weight regrouped per pooled spatial position
    bfc_ref: (1, O)      f32
    o_ref  : (TB, O)     f32
    """
    w2 = w2_ref[...]
    z = jnp.dot(p_ref[0], w2, preferred_element_type=jnp.float32)
    for a in range(1, 4):
        z = jnp.maximum(z, jnp.dot(p_ref[a], w2, preferred_element_type=jnp.float32))
    h2 = jnp.maximum(z + b2_ref[...], 0.0)            # (r2, C2) f32, stays in VMEM/vregs
    h2 = h2.astype(jnp.bfloat16)

    tb = o_ref.shape[0]
    npos = h2.shape[0] // tb                          # 16 pooled spatial positions
    acc = jnp.zeros(o_ref.shape, jnp.float32)
    for pos in range(npos):                           # fc1 = sum of per-position matmuls
        acc = acc + jnp.dot(h2[pos * tb:(pos + 1) * tb, :], wfc_ref[pos],
                            preferred_element_type=jnp.float32)
    o_ref[...] = jnp.maximum(acc + bfc_ref[...], 0.0)


# ----------------------------------------------------------------------------
# pallas_call wrappers (gridded over batch tiles, double-buffered by Pallas)
# ----------------------------------------------------------------------------
def conv1_pool_relu(p1, w1t, b1c, n_pad):
    c1, f1 = w1t.shape                     # (10, 25)
    r_full = n_pad * 144
    r_tile = TB * 144                      # 1152 = 9 * 128
    num_tiles = n_pad // TB
    cost = pl.CostEstimate(
        flops=2 * 4 * r_full * f1 * c1,
        transcendentals=0,
        bytes_accessed=p1.size * 2 + w1t.size * 2 + b1c.size * 4 + r_full * c1 * 4)
    return pl.pallas_call(
        conv1_pool_relu_kernel,
        out_shape=jax.ShapeDtypeStruct((c1, r_full), jnp.float32),
        grid=(num_tiles,),
        in_specs=[
            pl.BlockSpec((4, f1, r_tile), lambda i: (0, 0, i)),
            pl.BlockSpec((c1, f1), lambda i: (0, 0)),
            pl.BlockSpec((c1, 1), lambda i: (0, 0)),
        ],
        out_specs=pl.BlockSpec((c1, r_tile), lambda i: (0, i)),
        compiler_params=pltpu.CompilerParams(dimension_semantics=("parallel",)),
        cost_estimate=cost,
    )(p1, w1t, b1c)


def conv2_pool_fc_relu(p2, w2m, b2r, wfc_r, bfcr, n_pad):
    f2, c2 = w2m.shape                     # (250, 20)
    n_out = wfc_r.shape[-1]                # 50
    r2 = TB * 16                           # 128
    r2_full = n_pad * 16
    num_tiles = n_pad // TB
    cost = pl.CostEstimate(
        flops=2 * 4 * r2_full * f2 * c2 + 2 * n_pad * 16 * c2 * n_out,
        transcendentals=0,
        bytes_accessed=(p2.size * 2 + w2m.size * 2 + wfc_r.size * 2
                        + b2r.size * 4 + bfcr.size * 4 + n_pad * n_out * 4))
    return pl.pallas_call(
        conv2_pool_fc_kernel,
        out_shape=jax.ShapeDtypeStruct((n_pad, n_out), jnp.float32),
        grid=(num_tiles,),
        in_specs=[
            pl.BlockSpec((4, r2, f2), lambda i: (0, i, 0)),
            pl.BlockSpec((f2, c2), lambda i: (0, 0)),
            pl.BlockSpec((1, c2), lambda i: (0, 0)),
            pl.BlockSpec((16, c2, n_out), lambda i: (0, 0, 0)),
            pl.BlockSpec((1, n_out), lambda i: (0, 0)),
        ],
        out_specs=pl.BlockSpec((TB, n_out), lambda i: (i, 0)),
        compiler_params=pltpu.CompilerParams(dimension_semantics=("parallel",)),
        cost_estimate=cost,
    )(p2, w2m, b2r, wfc_r, bfcr)


# ----------------------------------------------------------------------------
# Glue: gather-free im2col organized by 2x2 max-pool phase (static slices only)
# ----------------------------------------------------------------------------
def _pool_phase_patches_nhwc(x, k):
    """x: (N, H, W, C) NHWC -> (4, N, PH, PW, K*K*C); cols ordered (ki, kj, c)."""
    n, h, w, c = x.shape
    oh, ow = h - k + 1, w - k + 1
    slabs = [x[:, ki:ki + oh, kj:kj + ow, :] for ki in range(k) for kj in range(k)]
    full = jnp.stack(slabs, axis=3).reshape(n, oh, ow, k * k * c)
    phases = [full[:, a::2, b::2, :] for a in range(2) for b in range(2)]
    return jnp.stack(phases, axis=0)


# ----------------------------------------------------------------------------
# Full forward pass of NetWithoutLast
# ----------------------------------------------------------------------------
def net_without_last(x, w1, b1, w2, b2, wfc, bfc):
    """x: (N,1,28,28) f32. Params in PyTorch conventions:
    w1 (10,1,5,5), b1 (10,), w2 (20,10,5,5), b2 (20,), wfc (50,320), bfc (50,)."""
    n = x.shape[0]
    n_pad = ((n + TB - 1) // TB) * TB
    num_tiles = n_pad // TB

    # ---- parameter prep (glue): flatten conv weights with (ki,kj,ci) column order
    w1t = jnp.transpose(w1, (0, 2, 3, 1)).reshape(10, 25).astype(jnp.bfloat16)      # (Cout, F)
    w2m = jnp.transpose(w2, (2, 3, 1, 0)).reshape(250, 20).astype(jnp.bfloat16)     # (F, Cout)
    # fc1 weight regrouped to (pos, c, co): consumes our per-sample (pos-major,
    # channel-minor) feature blocks; semantically identical to PyTorch view(-1,320).
    wfc_r = jnp.transpose(wfc.reshape(50, 20, 16), (2, 1, 0)).astype(jnp.bfloat16)  # (16, 20, 50)
    b1c = b1.reshape(10, 1).astype(jnp.float32)
    b2r = b2.reshape(1, 20).astype(jnp.float32)
    bfcr = bfc.reshape(1, 50).astype(jnp.float32)

    # ---- NHWC input, batch padded to a multiple of the tile size
    xh = jnp.transpose(x, (0, 2, 3, 1))
    if n_pad != n:
        xh = jnp.pad(xh, ((0, n_pad - n), (0, 0), (0, 0), (0, 0)))

    # ---- x = relu(max_pool2d(conv1(x), 2))  (Pallas, lane-dense transposed output)
    p1 = _pool_phase_patches_nhwc(xh, 5)                                  # (4, Np, 12, 12, 25)
    p1 = (jnp.transpose(p1, (0, 4, 1, 2, 3))
             .reshape(4, 25, n_pad * 144)
             .astype(jnp.bfloat16))
    h1t = conv1_pool_relu(p1, w1t, b1c, n_pad)                            # (10, Np*144) f32

    # ---- x = relu(max_pool2d(conv2_drop(conv2(x)), 2)); x = relu(fc1(x.view(-1,320)))
    # TODO(synk): Dropout2d treated as identity (eval mode); train-mode per-channel
    #             random dropout is not implemented.
    h1 = jnp.transpose(h1t.reshape(10, n_pad, 12, 12), (1, 2, 3, 0))      # NHWC (Np,12,12,10)
    p2 = _pool_phase_patches_nhwc(h1, 5)                                  # (4, Np, 4, 4, 250)
    p2 = (p2.reshape(4, num_tiles, TB, 16, 250)
            .transpose(0, 1, 3, 2, 4)                                     # rows (pos, n) per tile
            .reshape(4, n_pad * 16, 250)
            .astype(jnp.bfloat16))
    out = conv2_pool_fc_relu(p2, w2m, b2r, wfc_r, bfcr, n_pad)            # (Np, 50)
    return out[:n]


# ----------------------------------------------------------------------------
# Plain-JAX reference (exact PyTorch f32 semantics) for validation
# ----------------------------------------------------------------------------
def reference(x, w1, b1, w2, b2, wfc, bfc):
    dn = ("NCHW", "OIHW", "NCHW")
    y = lax.conv_general_dilated(x, w1, (1, 1), "VALID", dimension_numbers=dn)
    y = y + b1[None, :, None, None]
    y = lax.reduce_window(y, -jnp.inf, lax.max, (1, 1, 2, 2), (1, 1, 2, 2), "VALID")
    y = jnp.maximum(y, 0.0)
    y = lax.conv_general_dilated(y, w2, (1, 1), "VALID", dimension_numbers=dn)
    y = y + b2[None, :, None, None]
    y = lax.reduce_window(y, -jnp.inf, lax.max, (1, 1, 2, 2), (1, 1, 2, 2), "VALID")
    y = jnp.maximum(y, 0.0)
    y = y.reshape(x.shape[0], 320)
    return jnp.maximum(y @ wfc.T + bfc, 0.0)


if __name__ == "__main__":
    key = jax.random.PRNGKey(0)
    kx, k1, k2, k3, k4, k5, k6 = jax.random.split(key, 7)
    N = 12  # non-multiple of TB=8: exercises batch padding and a 2-step grid
    x = jax.random.normal(kx, (N, 1, 28, 28), dtype=jnp.float32)

    # deterministic synthetic parameters (PyTorch shapes: Conv2d(1,10,5),
    # Conv2d(10,20,5), Linear(320,50))
    w1 = 0.1 * jax.random.normal(k1, (10, 1, 5, 5), dtype=jnp.float32)
    b1 = 0.1 * jax.random.normal(k2, (10,), dtype=jnp.float32)
    w2 = 0.1 * jax.random.normal(k3, (20, 10, 5, 5), dtype=jnp.float32)
    b2 = 0.1 * jax.random.normal(k4, (20,), dtype=jnp.float32)
    wfc = 0.1 * jax.random.normal(k5, (50, 320), dtype=jnp.float32)
    bfc = 0.1 * jax.random.normal(k6, (50,), dtype=jnp.float32)

    fwd = jax.jit(net_without_last)
    out = fwd(x, w1, b1, w2, b2, wfc, bfc)
    out = jax.block_until_ready(out)
    assert out.shape == (N, 50) and out.dtype == jnp.float32

    # Loose tolerance: kernel uses bf16 MXU inputs (f32 accumulation) across three
    # chained matmul layers, the reference is pure f32.
    ref = reference(x, w1, b1, w2, b2, wfc, bfc)
    err = float(jnp.max(jnp.abs(out - ref)))
    assert jnp.allclose(out, ref, atol=1e-1, rtol=1e-1), err

    print("KERNEL_OK")
</pallas_src>

<mosaic_0001>
module attributes {stable_mosaic.version = 11 : i64} {
  func.func @conv1_pool_relu_kernel(%arg0: i32, %arg1: memref<4x25x1152xbf16, #tpu.memory_space<vmem>>, %arg2: memref<10x25xbf16, #tpu.memory_space<vmem>>, %arg3: memref<10x1xf32, #tpu.memory_space<vmem>>, %arg4: memref<10x1152xf32, #tpu.memory_space<vmem>>) attributes {dimension_semantics = [#tpu.dimension_semantics<parallel>], iteration_bounds = array<i64: 2>, scalar_prefetch = 0 : i64, scratch_operands = 0 : i64, tpu.core_type = #tpu.core_type<tc>, window_params = [{transform_indices = @transform_0, window_bounds = array<i64: 4, 25, 1152>}, {pipeline_mode = #tpu.pipeline_mode<synchronous>, transform_indices = @transform_1, window_bounds = array<i64: 10, 25>}, {pipeline_mode = #tpu.pipeline_mode<synchronous>, transform_indices = @transform_2, window_bounds = array<i64: 10, 1>}, {transform_indices = @transform_3, window_bounds = array<i64: 10, 1152>}]} {
    %c0 = arith.constant 0 : index
    %c0_0 = arith.constant 0 : index
    %0 = vector.load %arg2[%c0, %c0_0] : memref<10x25xbf16, #tpu.memory_space<vmem>>, vector<10x25xbf16>
    %c0_1 = arith.constant 0 : index
    %c0_2 = arith.constant 0 : index
    %c0_3 = arith.constant 0 : index
    %1 = vector.load %arg1[%c0_1, %c0_2, %c0_3] : memref<4x25x1152xbf16, #tpu.memory_space<vmem>>, vector<1x25x1152xbf16>
    %2 = vector.shape_cast %1 : vector<1x25x1152xbf16> to vector<25x1152xbf16>
    %cst = arith.constant dense<0.000000e+00> : vector<10x1152xf32>
    %3 = tpu.matmul %0, %2, %cst {dimension_numbers = #tpu.dot_dimension_numbers<[1], [0], [0], [1], [0, 0, 1, 1], [], []>} : vector<10x25xbf16>, vector<25x1152xbf16>, vector<10x1152xf32> -> vector<10x1152xf32>
    %c1 = arith.constant 1 : index
    %c0_4 = arith.constant 0 : index
    %c0_5 = arith.constant 0 : index
    %4 = vector.load %arg1[%c1, %c0_4, %c0_5] : memref<4x25x1152xbf16, #tpu.memory_space<vmem>>, vector<1x25x1152xbf16>
    %5 = vector.shape_cast %4 : vector<1x25x1152xbf16> to vector<25x1152xbf16>
    %cst_6 = arith.constant dense<0.000000e+00> : vector<10x1152xf32>
    %6 = tpu.matmul %0, %5, %cst_6 {dimension_numbers = #tpu.dot_dimension_numbers<[1], [0], [0], [1], [0, 0, 1, 1], [], []>} : vector<10x25xbf16>, vector<25x1152xbf16>, vector<10x1152xf32> -> vector<10x1152xf32>
    %7 = arith.maximumf %3, %6 : vector<10x1152xf32>
    %c2 = arith.constant 2 : index
    %c0_7 = arith.constant 0 : index
    %c0_8 = arith.constant 0 : index
    %8 = vector.load %arg1[%c2, %c0_7, %c0_8] : memref<4x25x1152xbf16, #tpu.memory_space<vmem>>, vector<1x25x1152xbf16>
    %9 = vector.shape_cast %8 : vector<1x25x1152xbf16> to vector<25x1152xbf16>
    %cst_9 = arith.constant dense<0.000000e+00> : vector<10x1152xf32>
    %10 = tpu.matmul %0, %9, %cst_9 {dimension_numbers = #tpu.dot_dimension_numbers<[1], [0], [0], [1], [0, 0, 1, 1], [], []>} : vector<10x25xbf16>, vector<25x1152xbf16>, vector<10x1152xf32> -> vector<10x1152xf32>
    %11 = arith.maximumf %7, %10 : vector<10x1152xf32>
    %c3 = arith.constant 3 : index
    %c0_10 = arith.constant 0 : index
    %c0_11 = arith.constant 0 : index
    %12 = vector.load %arg1[%c3, %c0_10, %c0_11] : memref<4x25x1152xbf16, #tpu.memory_space<vmem>>, vector<1x25x1152xbf16>
    %13 = vector.shape_cast %12 : vector<1x25x1152xbf16> to vector<25x1152xbf16>
    %cst_12 = arith.constant dense<0.000000e+00> : vector<10x1152xf32>
    %14 = tpu.matmul %0, %13, %cst_12 {dimension_numbers = #tpu.dot_dimension_numbers<[1], [0], [0], [1], [0, 0, 1, 1], [], []>} : vector<10x25xbf16>, vector<25x1152xbf16>, vector<10x1152xf32> -> vector<10x1152xf32>
    %15 = arith.maximumf %11, %14 : vector<10x1152xf32>
    %c0_13 = arith.constant 0 : index
    %c0_14 = arith.constant 0 : index
    %16 = vector.load %arg3[%c0_13, %c0_14] : memref<10x1xf32, #tpu.memory_space<vmem>>, vector<10x1xf32>
    %17 = vector.broadcast %16 : vector<10x1xf32> to vector<10x1152xf32>
    %18 = arith.addf %15, %17 : vector<10x1152xf32>
    %cst_15 = arith.constant 0.000000e+00 : f32
    %19 = vector.broadcast %cst_15 : f32 to vector<10x1152xf32>
    %20 = arith.maximumf %18, %19 : vector<10x1152xf32>
    %c0_16 = arith.constant 0 : index
    %c0_17 = arith.constant 0 : index
    %21 = vector.load %arg4[%c0_16, %c0_17] : memref<10x1152xf32, #tpu.memory_space<vmem>>, vector<10x1152xf32>
    tpu.vector_store %arg4[%c0_16, %c0_17], %20 {strides = array<i32>} : memref<10x1152xf32, #tpu.memory_space<vmem>>, vector<10x1152xf32>,
    return
  }
  func.func @transform_0(%arg0: i32) -> (i32, i32, i32) {
    %c0_i32 = arith.constant 0 : i32
    %c0_i32_0 = arith.constant 0 : i32
    %c0_i32_1 = arith.constant 0 : i32
    return %c0_i32, %c0_i32_0, %arg0 : i32, i32, i32
  }
  func.func @transform_1(%arg0: i32) -> (i32, i32) {
    %c0_i32 = arith.constant 0 : i32
    %c0_i32_0 = arith.constant 0 : i32
    %c0_i32_1 = arith.constant 0 : i32
    return %c0_i32, %c0_i32_0 : i32, i32
  }
  func.func @transform_2(%arg0: i32) -> (i32, i32) {
    %c0_i32 = arith.constant 0 : i32
    %c0_i32_0 = arith.constant 0 : i32
    %c0_i32_1 = arith.constant 0 : i32
    return %c0_i32, %c0_i32_0 : i32, i32
  }
  func.func @transform_3(%arg0: i32) -> (i32, i32) {
    %c0_i32 = arith.constant 0 : i32
    %c0_i32_0 = arith.constant 0 : i32
    return %c0_i32, %arg0 : i32, i32
  }
}

module attributes {stable_mosaic.version = 11 : i64} {
  func.func @conv2_pool_fc_kernel(%arg0: i32, %arg1: memref<4x128x250xbf16, #tpu.memory_space<vmem>>, %arg2: memref<250x20xbf16, #tpu.memory_space<vmem>>, %arg3: memref<1x20xf32, #tpu.memory_space<vmem>>, %arg4: memref<16x20x50xbf16, #tpu.memory_space<vmem>>, %arg5: memref<1x50xf32, #tpu.memory_space<vmem>>, %arg6: memref<8x50xf32, #tpu.memory_space<vmem>>) attributes {dimension_semantics = [#tpu.dimension_semantics<parallel>], iteration_bounds = array<i64: 2>, scalar_prefetch = 0 : i64, scratch_operands = 0 : i64, tpu.core_type = #tpu.core_type<tc>, window_params = [{transform_indices = @transform_0, window_bounds = array<i64: 4, 128, 250>}, {pipeline_mode = #tpu.pipeline_mode<synchronous>, transform_indices = @transform_1, window_bounds = array<i64: 250, 20>}, {pipeline_mode = #tpu.pipeline_mode<synchronous>, transform_indices = @transform_2, window_bounds = array<i64: 1, 20>}, {pipeline_mode = #tpu.pipeline_mode<synchronous>, transform_indices = @transform_3, window_bounds = array<i64: 16, 20, 50>}, {pipeline_mode = #tpu.pipeline_mode<synchronous>, transform_indices = @transform_4, window_bounds = array<i64: 1, 50>}, {transform_indices = @transform_5, window_bounds = array<i64: 8, 50>}]} {
    %c0 = arith.constant 0 : index
    %c0_0 = arith.constant 0 : index
    %0 = vector.load %arg2[%c0, %c0_0] : memref<250x20xbf16, #tpu.memory_space<vmem>>, vector<250x20xbf16>
    %c0_1 = arith.constant 0 : index
    %c0_2 = arith.constant 0 : index
    %c0_3 = arith.constant 0 : index
    %1 = vector.load %arg1[%c0_1, %c0_2, %c0_3] : memref<4x128x250xbf16, #tpu.memory_space<vmem>>, vector<1x128x250xbf16>
    %2 = vector.shape_cast %1 : vector<1x128x250xbf16> to vector<128x250xbf16>
    %cst = arith.constant dense<0.000000e+00> : vector<128x20xf32>
    %3 = tpu.matmul %2, %0, %cst {dimension_numbers = #tpu.dot_dimension_numbers<[1], [0], [0], [1], [0, 0, 1, 1], [], []>} : vector<128x250xbf16>, vector<250x20xbf16>, vector<128x20xf32> -> vector<128x20xf32>
    %c1 = arith.constant 1 : index
    %c0_4 = arith.constant 0 : index
    %c0_5 = arith.constant 0 : index
    %4 = vector.load %arg1[%c1, %c0_4, %c0_5] : memref<4x128x250xbf16, #tpu.memory_space<vmem>>, vector<1x128x250xbf16>
    %5 = vector.shape_cast %4 : vector<1x128x250xbf16> to vector<128x250xbf16>
    %cst_6 = arith.constant dense<0.000000e+00> : vector<128x20xf32>
    %6 = tpu.matmul %5, %0, %cst_6 {dimension_numbers = #tpu.dot_dimension_numbers<[1], [0], [0], [1], [0, 0, 1, 1], [], []>} : vector<128x250xbf16>, vector<250x20xbf16>, vector<128x20xf32> -> vector<128x20xf32>
    %7 = arith.maximumf %3, %6 : vector<128x20xf32>
    %c2 = arith.constant 2 : index
    %c0_7 = arith.constant 0 : index
    %c0_8 = arith.constant 0 : index
    %8 = vector.load %arg1[%c2, %c0_7, %c0_8] : memref<4x128x250xbf16, #tpu.memory_space<vmem>>, vector<1x128x250xbf16>
    %9 = vector.shape_cast %8 : vector<1x128x250xbf16> to vector<128x250xbf16>
    %cst_9 = arith.constant dense<0.000000e+00> : vector<128x20xf32>
    %10 = tpu.matmul %9, %0, %cst_9 {dimension_numbers = #tpu.dot_dimension_numbers<[1], [0], [0], [1], [0, 0, 1, 1], [], []>} : vector<128x250xbf16>, vector<250x20xbf16>, vector<128x20xf32> -> vector<128x20xf32>
    %11 = arith.maximumf %7, %10 : vector<128x20xf32>
    %c3 = arith.constant 3 : index
    %c0_10 = arith.constant 0 : index
    %c0_11 = arith.constant 0 : index
    %12 = vector.load %arg1[%c3, %c0_10, %c0_11] : memref<4x128x250xbf16, #tpu.memory_space<vmem>>, vector<1x128x250xbf16>
    %13 = vector.shape_cast %12 : vector<1x128x250xbf16> to vector<128x250xbf16>
    %cst_12 = arith.constant dense<0.000000e+00> : vector<128x20xf32>
    %14 = tpu.matmul %13, %0, %cst_12 {dimension_numbers = #tpu.dot_dimension_numbers<[1], [0], [0], [1], [0, 0, 1, 1], [], []>} : vector<128x250xbf16>, vector<250x20xbf16>, vector<128x20xf32> -> vector<128x20xf32>
    %15 = arith.maximumf %11, %14 : vector<128x20xf32>
    %c0_13 = arith.constant 0 : index
    %c0_14 = arith.constant 0 : index
    %16 = vector.load %arg3[%c0_13, %c0_14] : memref<1x20xf32, #tpu.memory_space<vmem>>, vector<1x20xf32>
    %17 = vector.broadcast %16 : vector<1x20xf32> to vector<128x20xf32>
    %18 = arith.addf %15, %17 : vector<128x20xf32>
    %cst_15 = arith.constant 0.000000e+00 : f32
    %19 = vector.broadcast %cst_15 : f32 to vector<128x20xf32>
    %20 = arith.maximumf %18, %19 : vector<128x20xf32>
    %21 = arith.truncf %20 : vector<128x20xf32> to vector<128x20xbf16>
    %cst_16 = arith.constant 0.000000e+00 : f32
    %22 = vector.broadcast %cst_16 : f32 to vector<8x50xf32>
    %23 = vector.extract_strided_slice %21 {offsets = [0, 0], sizes = [8, 20], strides = [1, 1]} : vector<128x20xbf16> to vector<8x20xbf16>
    %c0_17 = arith.constant 0 : index
    %c0_18 = arith.constant 0 : index
    %c0_19 = arith.constant 0 : index
    %24 = vector.load %arg4[%c0_17, %c0_18, %c0_19] : memref<16x20x50xbf16, #tpu.memory_space<vmem>>, vector<1x20x50xbf16>
    %25 = vector.shape_cast %24 : vector<1x20x50xbf16> to vector<20x50xbf16>
    %cst_20 = arith.constant dense<0.000000e+00> : vector<8x50xf32>
    %26 = tpu.matmul %23, %25, %cst_20 {dimension_numbers = #tpu.dot_dimension_numbers<[1], [0], [0], [1], [0, 0, 1, 1], [], []>} : vector<8x20xbf16>, vector<20x50xbf16>, vector<8x50xf32> -> vector<8x50xf32>
    %27 = arith.addf %22, %26 : vector<8x50xf32>
    %28 = vector.extract_strided_slice %21 {offsets = [8, 0], sizes = [8, 20], strides = [1, 1]} : vector<128x20xbf16> to vector<8x20xbf16>
    %c1_21 = arith.constant 1 : index
    %c0_22 = arith.constant 0 : index
    %c0_23 = arith.constant 0 : index
    %29 = vector.load %arg4[%c1_21, %c0_22, %c0_23] : memref<16x20x50xbf16, #tpu.memory_space<vmem>>, vector<1x20x50xbf16>
    %30 = vector.shape_cast %29 : vector<1x20x50xbf16> to vector<20x50xbf16>
    %cst_24 = arith.constant dense<0.000000e+00> : vector<8x50xf32>
    %31 = tpu.matmul %28, %30, %cst_24 {dimension_numbers = #tpu.dot_dimension_numbers<[1], [0], [0], [1], [0, 0, 1, 1], [], []>} : vector<8x20xbf16>, vector<20x50xbf16>, vector<8x50xf32> -> vector<8x50xf32>
    %32 = arith.addf %27, %31 : vector<8x50xf32>
    %33 = vector.extract_strided_slice %21 {offsets = [16, 0], sizes = [8, 20], strides = [1, 1]} : vector<128x20xbf16> to vector<8x20xbf16>
    %c2_25 = arith.constant 2 : index
    %c0_26 = arith.constant 0 : index
    %c0_27 = arith.constant 0 : index
    %34 = vector.load %arg4[%c2_25, %c0_26, %c0_27] : memref<16x20x50xbf16, #tpu.memory_space<vmem>>, vector<1x20x50xbf16>
    %35 = vector.shape_cast %34 : vector<1x20x50xbf16> to vector<20x50xbf16>
    %cst_28 = arith.constant dense<0.000000e+00> : vector<8x50xf32>
    %36 = tpu.matmul %33, %35, %cst_28 {dimension_numbers = #tpu.dot_dimension_numbers<[1], [0], [0], [1], [0, 0, 1, 1], [], []>} : vector<8x20xbf16>, vector<20x50xbf16>, vector<8x50xf32> -> vector<8x50xf32>
    %37 = arith.addf %32, %36 : vector<8x50xf32>
    %38 = vector.extract_strided_slice %21 {offsets = [24, 0], sizes = [8, 20], strides = [1, 1]} : vector<128x20xbf16> to vector<8x20xbf16>
    %c3_29 = arith.constant 3 : index
    %c0_30 = arith.constant 0 : index
    %c0_31 = arith.constant 0 : index
    %39 = vector.load %arg4[%c3_29, %c0_30, %c0_31] : memref<16x20x50xbf16, #tpu.memory_space<vmem>>, vector<1x20x50xbf16>
    %40 = vector.shape_cast %39 : vector<1x20x50xbf16> to vector<20x50xbf16>
    %cst_32 = arith.constant dense<0.000000e+00> : vector<8x50xf32>
    %41 = tpu.matmul %38, %40, %cst_32 {dimension_numbers = #tpu.dot_dimension_numbers<[1], [0], [0], [1], [0, 0, 1, 1], [], []>} : vector<8x20xbf16>, vector<20x50xbf16>, vector<8x50xf32> -> vector<8x50xf32>
    %42 = arith.addf %37, %41 : vector<8x50xf32>
    %43 = vector.extract_strided_slice %21 {offsets = [32, 0], sizes = [8, 20], strides = [1, 1]} : vector<128x20xbf16> to vector<8x20xbf16>
    %c4 = arith.constant 4 : index
    %c0_33 = arith.constant 0 : index
    %c0_34 = arith.constant 0 : index
    %44 = vector.load %arg4[%c4, %c0_33, %c0_34] : memref<16x20x50xbf16, #tpu.memory_space<vmem>>, vector<1x20x50xbf16>
    %45 = vector.shape_cast %44 : vector<1x20x50xbf16> to vector<20x50xbf16>
    %cst_35 = arith.constant dense<0.000000e+00> : vector<8x50xf32>
    %46 = tpu.matmul %43, %45, %cst_35 {dimension_numbers = #tpu.dot_dimension_numbers<[1], [0], [0], [1], [0, 0, 1, 1], [], []>} : vector<8x20xbf16>, vector<20x50xbf16>, vector<8x50xf32> -> vector<8x50xf32>
    %47 = arith.addf %42, %46 : vector<8x50xf32>
    %48 = vector.extract_strided_slice %21 {offsets = [40, 0], sizes = [8, 20], strides = [1, 1]} : vector<128x20xbf16> to vector<8x20xbf16>
    %c5 = arith.constant 5 : index
    %c0_36 = arith.constant 0 : index
    %c0_37 = arith.constant 0 : index
    %49 = vector.load %arg4[%c5, %c0_36, %c0_37] : memref<16x20x50xbf16, #tpu.memory_space<vmem>>, vector<1x20x50xbf16>
    %50 = vector.shape_cast %49 : vector<1x20x50xbf16> to vector<20x50xbf16>
    %cst_38 = arith.constant dense<0.000000e+00> : vector<8x50xf32>
    %51 = tpu.matmul %48, %50, %cst_38 {dimension_numbers = #tpu.dot_dimension_numbers<[1], [0], [0], [1], [0, 0, 1, 1], [], []>} : vector<8x20xbf16>, vector<20x50xbf16>, vector<8x50xf32> -> vector<8x50xf32>
    %52 = arith.addf %47, %51 : vector<8x50xf32>
    %53 = vector.extract_strided_slice %21 {offsets = [48, 0], sizes = [8, 20], strides = [1, 1]} : vector<128x20xbf16> to vector<8x20xbf16>
    %c6 = arith.constant 6 : index
    %c0_39 = arith.constant 0 : index
    %c0_40 = arith.constant 0 : index
    %54 = vector.load %arg4[%c6, %c0_39, %c0_40] : memref<16x20x50xbf16, #tpu.memory_space<vmem>>, vector<1x20x50xbf16>
    %55 = vector.shape_cast %54 : vector<1x20x50xbf16> to vector<20x50xbf16>
    %cst_41 = arith.constant dense<0.000000e+00> : vector<8x50xf32>
    %56 = tpu.matmul %53, %55, %cst_41 {dimension_numbers = #tpu.dot_dimension_numbers<[1], [0], [0], [1], [0, 0, 1, 1], [], []>} : vector<8x20xbf16>, vector<20x50xbf16>, vector<8x50xf32> -> vector<8x50xf32>
    %57 = arith.addf %52, %56 : vector<8x50xf32>
    %58 = vector.extract_strided_slice %21 {offsets = [56, 0], sizes = [8, 20], strides = [1, 1]} : vector<128x20xbf16> to vector<8x20xbf16>
    %c7 = arith.constant 7 : index
    %c0_42 = arith.constant 0 : index
    %c0_43 = arith.constant 0 : index
    %59 = vector.load %arg4[%c7, %c0_42, %c0_43] : memref<16x20x50xbf16, #tpu.memory_space<vmem>>, vector<1x20x50xbf16>
    %60 = vector.shape_cast %59 : vector<1x20x50xbf16> to vector<20x50xbf16>
    %cst_44 = arith.constant dense<0.000000e+00> : vector<8x50xf32>
    %61 = tpu.matmul %58, %60, %cst_44 {dimension_numbers = #tpu.dot_dimension_numbers<[1], [0], [0], [1], [0, 0, 1, 1], [], []>} : vector<8x20xbf16>, vector<20x50xbf16>, vector<8x50xf32> -> vector<8x50xf32>
    %62 = arith.addf %57, %61 : vector<8x50xf32>
    %63 = vector.extract_strided_slice %21 {offsets = [64, 0], sizes = [8, 20], strides = [1, 1]} : vector<128x20xbf16> to vector<8x20xbf16>
    %c8 = arith.constant 8 : index
    %c0_45 = arith.constant 0 : index
    %c0_46 = arith.constant 0 : index
    %64 = vector.load %arg4[%c8, %c0_45, %c0_46] : memref<16x20x50xbf16, #tpu.memory_space<vmem>>, vector<1x20x50xbf16>
    %65 = vector.shape_cast %64 : vector<1x20x50xbf16> to vector<20x50xbf16>
    %cst_47 = arith.constant dense<0.000000e+00> : vector<8x50xf32>
    %66 = tpu.matmul %63, %65, %cst_47 {dimension_numbers = #tpu.dot_dimension_numbers<[1], [0], [0], [1], [0, 0, 1, 1], [], []>} : vector<8x20xbf16>, vector<20x50xbf16>, vector<8x50xf32> -> vector<8x50xf32>
    %67 = arith.addf %62, %66 : vector<8x50xf32>
    %68 = vector.extract_strided_slice %21 {offsets = [72, 0], sizes = [8, 20], strides = [1, 1]} : vector<128x20xbf16> to vector<8x20xbf16>
    %c9 = arith.constant 9 : index
    %c0_48 = arith.constant 0 : index
    %c0_49 = arith.constant 0 : index
    %69 = vector.load %arg4[%c9, %c0_48, %c0_49] : memref<16x20x50xbf16, #tpu.memory_space<vmem>>, vector<1x20x50xbf16>
    %70 = vector.shape_cast %69 : vector<1x20x50xbf16> to vector<20x50xbf16>
    %cst_50 = arith.constant dense<0.000000e+00> : vector<8x50xf32>
    %71 = tpu.matmul %68, %70, %cst_50 {dimension_numbers = #tpu.dot_dimension_numbers<[1], [0], [0], [1], [0, 0, 1, 1], [], []>} : vector<8x20xbf16>, vector<20x50xbf16>, vector<8x50xf32> -> vector<8x50xf32>
    %72 = arith.addf %67, %71 : vector<8x50xf32>
    %73 = vector.extract_strided_slice %21 {offsets = [80, 0], sizes = [8, 20], strides = [1, 1]} : vector<128x20xbf16> to vector<8x20xbf16>
    %c10 = arith.constant 10 : index
    %c0_51 = arith.constant 0 : index
    %c0_52 = arith.constant 0 : index
    %74 = vector.load %arg4[%c10, %c0_51, %c0_52] : memref<16x20x50xbf16, #tpu.memory_space<vmem>>, vector<1x20x50xbf16>
    %75 = vector.shape_cast %74 : vector<1x20x50xbf16> to vector<20x50xbf16>
    %cst_53 = arith.constant dense<0.000000e+00> : vector<8x50xf32>
    %76 = tpu.matmul %73, %75, %cst_53 {dimension_numbers = #tpu.dot_dimension_numbers<[1], [0], [0], [1], [0, 0, 1, 1], [], []>} : vector<8x20xbf16>, vector<20x50xbf16>, vector<8x50xf32> -> vector<8x50xf32>
    %77 = arith.addf %72, %76 : vector<8x50xf32>
    %78 = vector.extract_strided_slice %21 {offsets = [88, 0], sizes = [8, 20], strides = [1, 1]} : vector<128x20xbf16> to vector<8x20xbf16>
    %c11 = arith.constant 11 : index
    %c0_54 = arith.constant 0 : index
    %c0_55 = arith.constant 0 : index
    %79 = vector.load %arg4[%c11, %c0_54, %c0_55] : memref<16x20x50xbf16, #tpu.memory_space<vmem>>, vector<1x20x50xbf16>
    %80 = vector.shape_cast %79 : vector<1x20x50xbf16> to vector<20x50xbf16>
    %cst_56 = arith.constant dense<0.000000e+00> : vector<8x50xf32>
    %81 = tpu.matmul %78, %80, %cst_56 {dimension_numbers = #tpu.dot_dimension_numbers<[1], [0], [0], [1], [0, 0, 1, 1], [], []>} : vector<8x20xbf16>, vector<20x50xbf16>, vector<8x50xf32> -> vector<8x50xf32>
    %82 = arith.addf %77, %81 : vector<8x50xf32>
    %83 = vector.extract_strided_slice %21 {offsets = [96, 0], sizes = [8, 20], strides = [1, 1]} : vector<128x20xbf16> to vector<8x20xbf16>
    %c12 = arith.constant 12 : index
    %c0_57 = arith.constant 0 : index
    %c0_58 = arith.constant 0 : index
    %84 = vector.load %arg4[%c12, %c0_57, %c0_58] : memref<16x20x50xbf16, #tpu.memory_space<vmem>>, vector<1x20x50xbf16>
    %85 = vector.shape_cast %84 : vector<1x20x50xbf16> to vector<20x50xbf16>
    %cst_59 = arith.constant dense<0.000000e+00> : vector<8x50xf32>
    %86 = tpu.matmul %83, %85, %cst_59 {dimension_numbers = #tpu.dot_dimension_numbers<[1], [0], [0], [1], [0, 0, 1, 1], [], []>} : vector<8x20xbf16>, vector<20x50xbf16>, vector<8x50xf32> -> vector<8x50xf32>
    %87 = arith.addf %82, %86 : vector<8x50xf32>
    %88 = vector.extract_strided_slice %21 {offsets = [104, 0], sizes = [8, 20], strides = [1, 1]} : vector<128x20xbf16> to vector<8x20xbf16>
    %c13 = arith.constant 13 : index
    %c0_60 = arith.constant 0 : index
    %c0_61 = arith.constant 0 : index
    %89 = vector.load %arg4[%c13, %c0_60, %c0_61] : memref<16x20x50xbf16, #tpu.memory_space<vmem>>, vector<1x20x50xbf16>
    %90 = vector.shape_cast %89 : vector<1x20x50xbf16> to vector<20x50xbf16>
    %cst_62 = arith.constant dense<0.000000e+00> : vector<8x50xf32>
    %91 = tpu.matmul %88, %90, %cst_62 {dimension_numbers = #tpu.dot_dimension_numbers<[1], [0], [0], [1], [0, 0, 1, 1], [], []>} : vector<8x20xbf16>, vector<20x50xbf16>, vector<8x50xf32> -> vector<8x50xf32>
    %92 = arith.addf %87, %91 : vector<8x50xf32>
    %93 = vector.extract_strided_slice %21 {offsets = [112, 0], sizes = [8, 20], strides = [1, 1]} : vector<128x20xbf16> to vector<8x20xbf16>
    %c14 = arith.constant 14 : index
    %c0_63 = arith.constant 0 : index
    %c0_64 = arith.constant 0 : index
    %94 = vector.load %arg4[%c14, %c0_63, %c0_64] : memref<16x20x50xbf16, #tpu.memory_space<vmem>>, vector<1x20x50xbf16>
    %95 = vector.shape_cast %94 : vector<1x20x50xbf16> to vector<20x50xbf16>
    %cst_65 = arith.constant dense<0.000000e+00> : vector<8x50xf32>
    %96 = tpu.matmul %93, %95, %cst_65 {dimension_numbers = #tpu.dot_dimension_numbers<[1], [0], [0], [1], [0, 0, 1, 1], [], []>} : vector<8x20xbf16>, vector<20x50xbf16>, vector<8x50xf32> -> vector<8x50xf32>
    %97 = arith.addf %92, %96 : vector<8x50xf32>
    %98 = vector.extract_strided_slice %21 {offsets = [120, 0], sizes = [8, 20], strides = [1, 1]} : vector<128x20xbf16> to vector<8x20xbf16>
    %c15 = arith.constant 15 : index
    %c0_66 = arith.constant 0 : index
    %c0_67 = arith.constant 0 : index
    %99 = vector.load %arg4[%c15, %c0_66, %c0_67] : memref<16x20x50xbf16, #tpu.memory_space<vmem>>, vector<1x20x50xbf16>
    %100 = vector.shape_cast %99 : vector<1x20x50xbf16> to vector<20x50xbf16>
    %cst_68 = arith.constant dense<0.000000e+00> : vector<8x50xf32>
    %101 = tpu.matmul %98, %100, %cst_68 {dimension_numbers = #tpu.dot_dimension_numbers<[1], [0], [0], [1], [0, 0, 1, 1], [], []>} : vector<8x20xbf16>, vector<20x50xbf16>, vector<8x50xf32> -> vector<8x50xf32>
    %102 = arith.addf %97, %101 : vector<8x50xf32>
    %c0_69 = arith.constant 0 : index
    %c0_70 = arith.constant 0 : index
    %103 = vector.load %arg5[%c0_69, %c0_70] : memref<1x50xf32, #tpu.memory_space<vmem>>, vector<1x50xf32>
    %104 = vector.broadcast %103 : vector<1x50xf32> to vector<8x50xf32>
    %105 = arith.addf %102, %104 : vector<8x50xf32>
    %cst_71 = arith.constant 0.000000e+00 : f32
    %106 = vector.broadcast %cst_71 : f32 to vector<8x50xf32>
    %107 = arith.maximumf %105, %106 : vector<8x50xf32>
    %c0_72 = arith.constant 0 : index
    %c0_73 = arith.constant 0 : index
    %108 = vector.load %arg6[%c0_72, %c0_73] : memref<8x50xf32, #tpu.memory_space<vmem>>, vector<8x50xf32>
    tpu.vector_store %arg6[%c0_72, %c0_73], %107 {strides = array<i32>} : memref<8x50xf32, #tpu.memory_space<vmem>>, vector<8x50xf32>,
    return
  }
  func.func @transform_0(%arg0: i32) -> (i32, i32, i32) {
    %c0_i32 = arith.constant 0 : i32
    %c0_i32_0 = arith.constant 0 : i32
    %c0_i32_1 = arith.constant 0 : i32
    return %c0_i32, %arg0, %c0_i32_0 : i32, i32, i32
  }
  func.func @transform_1(%arg0: i32) -> (i32, i32) {
    %c0_i32 = arith.constant 0 : i32
    %c0_i32_0 = arith.constant 0 : i32
    %c0_i32_1 = arith.constant 0 : i32
    return %c0_i32, %c0_i32_0 : i32, i32
  }
  func.func @transform_2(%arg0: i32) -> (i32, i32) {
    %c0_i32 = arith.constant 0 : i32
    %c0_i32_0 = arith.constant 0 : i32
    %c0_i32_1 = arith.constant 0 : i32
    return %c0_i32, %c0_i32_0 : i32, i32
  }
  func.func @transform_3(%arg0: i32) -> (i32, i32, i32) {
    %c0_i32 = arith.constant 0 : i32
    %c0_i32_0 = arith.constant 0 : i32
    %c0_i32_1 = arith.constant 0 : i32
    %c0_i32_2 = arith.constant 0 : i32
    return %c0_i32, %c0_i32_0, %c0_i32_1 : i32, i32, i32
  }
  func.func @transform_4(%arg0: i32) -> (i32, i32) {
    %c0_i32 = arith.constant 0 : i32
    %c0_i32_0 = arith.constant 0 : i32
    %c0_i32_1 = arith.constant 0 : i32
    return %c0_i32, %c0_i32_0 : i32, i32
  }
  func.func @transform_5(%arg0: i32) -> (i32, i32) {
    %c0_i32 = arith.constant 0 : i32
    %c0_i32_0 = arith.constant 0 : i32
    return %arg0, %c0_i32 : i32, i32
  }
}

</mosaic_0001>

<llo_original>
// kernel: net_without_last.2
$region0: #{net_without_last.2}
  #allocation0 [shape = 'u32[]', space=smem, size = 0x4, offset = 0x4, fixed_abs, tag = 'smem constant byte address 0x4 - core index']
  #allocation1 [shape = 'u32[72,128]{1,0:T(1,128)}', space=vmem, size = 0x9000, scoped, tag = 'internal scratch']
  %s0 = inlined_call_operand.vmem [shape: bf16[4,25,2304], index: 0, kind: input, shape index: {}]
  %s1 = inlined_call_operand.vmem [shape: bf16[10,25], index: 1, kind: input, shape index: {}]
  %s2 = inlined_call_operand.vmem [shape: f32[10,1], index: 2, kind: input, shape index: {}]
  %s3 = inlined_call_operand.vmem [shape: f32[10,2304], index: 3, kind: output, shape index: {}]
  %s4 = sld [smem:[#allocation0]]
  $region90: #{net_without_last.2} parent=0
    _
  %s6 = ssub.s32 1, %s4
  %s7 = scalar_select 0, %s6, %s4
  $region1: #{net_without_last.2} parent=0
    #allocation2 [shape = 'u8[589824]{0}', space=vmem, size = 0x90000, scoped, tag = 'input window, operand 0']
    #allocation3 [shape = 'u8[147456]{0}', space=vmem, size = 0x24000, scoped, tag = 'output window, operand 0']
    loop: start=0, step=1, limit=4
    $region2: #{net_without_last.2} parent=1 // loop_pre_header
      _
    $region3: #{net_without_last.2} parent=1 // loop_header
      %s9 = sphi 0, %s13
      %p10 = scmp.ge.s32.totalorder %s9, 4
      %s19 = sphi 0, %s21
      %s22 = sphi 0, %s19
      %s23 = sphi 0, %s22
      %s39 = sphi 0, %s23
      %s43 = sphi 0, %s43
      %s45 = sphi 0, %s43
      %s46 = sphi 0, %s45
      %s60 = sphi 0, %s46
      %s64 = sphi 0, %s64
      %s66 = sphi 0, %s64
      %s67 = sphi 0, %s66
      %s81 = sphi 0, %s67
      %s87 = sphi 0, %s89
      %s90 = sphi 0, %s87
      %s91 = sphi 0, %s90
      %s107 = sphi 0, %s91
    $region4: #{net_without_last.2} parent=1 // loop_header_branch
      %12 = sbr.rel (%p10) target = $region8
    $region5: #{net_without_last.2} parent=1 // loop_body
      %s14 = ssub.s32 %s9, 1
      %s15 = ssub.s32 %s9, 2
      %s16 = sadd.s32 %s9, 1
      %s17 = ssub.s32 %s9, %s16
      %p18 = scmp.eq.s32.totalorder %s17, 0
      %s20 = sadd.s32 %s19, 1
      %s21 = scalar_select %p18, %s19, %s20
      %p24 = pneg %p18
      %p25 = scmp.eq.s32.totalorder %s9, 1
      %p26 = por %p24, %p25
      %p27 = scmp.ne.s32.totalorder %s19, %s22
      %p28 = scmp.eq.s32.totalorder %s9, 0
      %p29 = por %p27, %p28
      %p30 = scmp.ne.s32.totalorder %s19, %s22
      %p31 = scmp.eq.s32.totalorder %s14, 1
      %p32 = por %p30, %p31
      %p33 = scmp.ne.s32.totalorder %s22, %s23
      %p34 = scmp.eq.s32.totalorder %s14, 0
      %p35 = por %p33, %p34
      %p36 = scmp.ne.s32.totalorder %s22, %s23
      %p37 = scmp.eq.s32.totalorder %s15, 1
      %p38 = por %p36, %p37
      %p40 = scmp.ne.s32.totalorder %s23, %s39
      %p41 = scmp.eq.s32.totalorder %s15, 0
      %p42 = por %p40, %p41
      %s44 = sadd.s32 %s43, 1
      %p47 = scmp.eq.s32.totalorder %s9, 1
      %p48 = scmp.ne.s32.totalorder %s43, %s45
      %p49 = scmp.eq.s32.totalorder %s9, 0
      %p50 = por %p48, %p49
      %p51 = scmp.ne.s32.totalorder %s43, %s45
      %p52 = scmp.eq.s32.totalorder %s14, 1
      %p53 = por %p51, %p52
      %p54 = scmp.ne.s32.totalorder %s45, %s46
      %p55 = scmp.eq.s32.totalorder %s14, 0
      %p56 = por %p54, %p55
      %p57 = scmp.ne.s32.totalorder %s45, %s46
      %p58 = scmp.eq.s32.totalorder %s15, 1
      %p59 = por %p57, %p58
      %p61 = scmp.ne.s32.totalorder %s46, %s60
      %p62 = scmp.eq.s32.totalorder %s15, 0
      %p63 = por %p61, %p62
      %s65 = sadd.s32 %s64, 1
      %p68 = scmp.eq.s32.totalorder %s9, 1
      %p69 = scmp.ne.s32.totalorder %s64, %s66
      %p70 = scmp.eq.s32.totalorder %s9, 0
      %p71 = por %p69, %p70
      %p72 = scmp.ne.s32.totalorder %s64, %s66
      %p73 = scmp.eq.s32.totalorder %s14, 1
      %p74 = por %p72, %p73
      %p75 = scmp.ne.s32.totalorder %s66, %s67
      %p76 = scmp.eq.s32.totalorder %s14, 0
      %p77 = por %p75, %p76
      %p78 = scmp.ne.s32.totalorder %s66, %s67
      %p79 = scmp.eq.s32.totalorder %s15, 1
      %p80 = por %p78, %p79
      %p82 = scmp.ne.s32.totalorder %s67, %s81
      %p83 = scmp.eq.s32.totalorder %s15, 0
      %p84 = por %p82, %p83
      %s85 = ssub.s32 %s9, %s16
      %p86 = scmp.eq.s32.totalorder %s85, 0
      %s88 = sadd.s32 %s87, 1
      %s89 = scalar_select %p86, %s87, %s88
      %p92 = pneg %p86
      %p93 = scmp.eq.s32.totalorder %s9, 1
      %p94 = por %p92, %p93
      %p95 = scmp.ne.s32.totalorder %s87, %s90
      %p96 = scmp.eq.s32.totalorder %s9, 0
      %p97 = por %p95, %p96
      %p98 = scmp.ne.s32.totalorder %s87, %s90
      %p99 = scmp.eq.s32.totalorder %s14, 1
      %p100 = por %p98, %p99
      %p101 = scmp.ne.s32.totalorder %s90, %s91
      %p102 = scmp.eq.s32.totalorder %s14, 0
      %p103 = por %p101, %p102
      %p104 = scmp.ne.s32.totalorder %s90, %s91
      %p105 = scmp.eq.s32.totalorder %s15, 1
      %p106 = por %p104, %p105
      %p108 = scmp.ne.s32.totalorder %s91, %s107
      %p109 = scmp.eq.s32.totalorder %s15, 0
      %p110 = por %p108, %p109
      %p111 = scmp.le.s32.totalorder 1, %s9
      %p112 = scmp.lt.s32.totalorder %s9, 3
      %p113 = pnand %p111, %p112
      %p114 = pneg %p113
      // Predicated region
      $region9: #{net_without_last.2} parent=5 // pred_check
        _
      $region10: #{net_without_last.2} parent=5 // pred_check_branch
        %116 = sbr.rel (%p113) target = $region12
      $region11: #{net_without_last.2} parent=5 // pred_region
        %s117 = ssub.s32 %s9, 1
        // Predicated region
        $region13: #{net_without_last.2} parent=11 // pred_check
          %p118 = pneg %p56
        $region14: #{net_without_last.2} parent=11 // pred_check_branch
          %120 = sbr.rel (%p118) target = $region16
        $region15: #{net_without_last.2} parent=11 // pred_region
          _
        $region16: #{net_without_last.2} parent=11 // pred_fallthru
          _
        // Predicated region
        $region17: #{net_without_last.2} parent=11 // pred_check
          %p121 = pneg %p77
        $region18: #{net_without_last.2} parent=11 // pred_check_branch
          %123 = sbr.rel (%p121) target = $region20
        $region19: #{net_without_last.2} parent=11 // pred_region
          _
        $region20: #{net_without_last.2} parent=11 // pred_fallthru
          _
      $region12: #{net_without_last.2} parent=5 // pred_fallthru
        _
      %p124 = scmp.lt.s32.totalorder %s9, 2
      // Predicated region
      $region21: #{net_without_last.2} parent=5 // pred_check
        %p125 = pneg %p124
      $region22: #{net_without_last.2} parent=5 // pred_check_branch
        %127 = sbr.rel (%p125) target = $region24
      $region23: #{net_without_last.2} parent=5 // pred_region
        // Predicated region
        $region25: #{net_without_last.2} parent=23 // pred_check
          %p128 = pneg %p29
        $region26: #{net_without_last.2} parent=23 // pred_check_branch
          %130 = sbr.rel (%p128) target = $region28
        $region27: #{net_without_last.2} parent=23 // pred_region
          %s131 = sand.u32 %s19, 1
          %s132 = sand.u32 %s19, 1
          %s133 = smul.addr %s132, 576
          %s134 = scalar_lea.vmem [#allocation2], %s133
          %s135 = smul.u32 9, %s9
          %s136 = smul.addr %s135, 4
          %s137 = scalar_lea.vmem %s0, %s136
          // Predicated region
          $region29: #{net_without_last.2} parent=27 // pred_check
            _
          $region30: #{net_without_last.2} parent=27 // pred_check_branch
            %139 = sbr.rel (0) target = $region32
          $region31: #{net_without_last.2} parent=27 // pred_region
            // Predicated region
            $region33: #{net_without_last.2} parent=31 // pred_check
              _
            $region34: #{net_without_last.2} parent=31 // pred_check_branch
              %141 = sbr.rel (0) target = $region36
            $region35: #{net_without_last.2} parent=31 // pred_region
              %s142 = scalar_lea.vmem %s137, 32
              %s143 = scalar_lea.vmem %s134, 32 [#allocation2]
              loop: start=0, step=1, limit=1
              $region37: #{net_without_last.2} parent=35 // loop_pre_header
                _
              $region38: #{net_without_last.2} parent=35 // loop_header
                %s145 = sphi 0, %s149
                %p146 = scmp.ge.s32.totalorder %s145, 1
                %s150 = sphi %s137, %s137
                %s151 = sphi %s134, %s134
              $region39: #{net_without_last.2} parent=35 // loop_header_branch
                %148 = sbr.rel (%p146) target = $region43
              $region40: #{net_without_last.2} parent=35 // loop_body
                %v152 = vld [vmem:[%s150] sm:$0xff]
                %153 = vst [vmem:[%s151] sm:$0xff] %v152
                %v154 = vld [vmem:[%s150 + $0x8] sm:$0xff]
                %155 = vst [vmem:[%s151 + $0x8] sm:$0xff] %v154
                %v156 = vld [vmem:[%s150 + $0x10] sm:$0xff]
                %157 = vst [vmem:[%s151 + $0x10] sm:$0xff] %v156
                %v158 = vld [vmem:[%s150 + $0x18] sm:$0xff]
                %159 = vst [vmem:[%s151 + $0x18] sm:$0xff] %v158
                %v160 = vld [vmem:[%s150 + $0x48] sm:$0xff]
                %161 = vst [vmem:[%s151 + $0x24] sm:$0xff] %v160
                %v162 = vld [vmem:[%s150 + $0x50] sm:$0xff]
                %163 = vst [vmem:[%s151 + $0x2c] sm:$0xff] %v162
                %v164 = vld [vmem:[%s150 + $0x58] sm:$0xff]
                %165 = vst [vmem:[%s151 + $0x34] sm:$0xff] %v164
                %v166 = vld [vmem:[%s150 + $0x60] sm:$0xff]
                %167 = vst [vmem:[%s151 + $0x3c] sm:$0xff] %v166
                %v168 = vld [vmem:[%s150 + $0x90] sm:$0xff]
                %169 = vst [vmem:[%s151 + $0x48] sm:$0xff] %v168
                %v170 = vld [vmem:[%s150 + $0x98] sm:$0xff]
                %171 = vst [vmem:[%s151 + $0x50] sm:$0xff] %v170
                %v172 = vld [vmem:[%s150 + $0xa0] sm:$0xff]
                %173 = vst [vmem:[%s151 + $0x58] sm:$0xff] %v172
                %v174 = vld [vmem:[%s150 + $0xa8] sm:$0xff]
                %175 = vst [vmem:[%s151 + $0x60] sm:$0xff] %v174
                %v176 = vld [vmem:[%s150 + $0xd8] sm:$0xff]
                %177 = vst [vmem:[%s151 + $0x6c] sm:$0xff] %v176
                %v178 = vld [vmem:[%s150 + $0xe0] sm:$0xff]
                %179 = vst [vmem:[%s151 + $0x74] sm:$0xff] %v178
                %v180 = vld [vmem:[%s150 + $0xe8] sm:$0xff]
                %181 = vst [vmem:[%s151 + $0x7c] sm:$0xff] %v180
                %v182 = vld [vmem:[%s150 + $0xf0] sm:$0xff]
                %183 = vst [vmem:[%s151 + $0x84] sm:$0xff] %v182
                %v184 = vld [vmem:[%s150 + $0x120] sm:$0xff]
                %185 = vst [vmem:[%s151 + $0x90] sm:$0xff] %v184
                %v186 = vld [vmem:[%s150 + $0x128] sm:$0xff]
                %187 = vst [vmem:[%s151 + $0x98] sm:$0xff] %v186
                %v188 = vld [vmem:[%s150 + $0x130] sm:$0xff]
                %189 = vst [vmem:[%s151 + $0xa0] sm:$0xff] %v188
                %v190 = vld [vmem:[%s150 + $0x138] sm:$0xff]
                %191 = vst [vmem:[%s151 + $0xa8] sm:$0xff] %v190
                %v192 = vld [vmem:[%s150 + $0x168] sm:$0xff]
                %193 = vst [vmem:[%s151 + $0xb4] sm:$0xff] %v192
                %v194 = vld [vmem:[%s150 + $0x170] sm:$0xff]
                %195 = vst [vmem:[%s151 + $0xbc] sm:$0xff] %v194
                %v196 = vld [vmem:[%s150 + $0x178] sm:$0xff]
                %197 = vst [vmem:[%s151 + $0xc4] sm:$0xff] %v196
                %v198 = vld [vmem:[%s150 + $0x180] sm:$0xff]
                %199 = vst [vmem:[%s151 + $0xcc] sm:$0xff] %v198
                %v200 = vld [vmem:[%s150 + $0x1b0] sm:$0xff]
                %201 = vst [vmem:[%s151 + $0xd8] sm:$0xff] %v200
                %v202 = vld [vmem:[%s150 + $0x1b8] sm:$0xff]
                %203 = vst [vmem:[%s151 + $0xe0] sm:$0xff] %v202
                %v204 = vld [vmem:[%s150 + $0x1c0] sm:$0xff]
                %205 = vst [vmem:[%s151 + $0xe8] sm:$0xff] %v204
                %v206 = vld [vmem:[%s150 + $0x1c8] sm:$0xff]
                %207 = vst [vmem:[%s151 + $0xf0] sm:$0xff] %v206
                %v208 = vld [vmem:[%s150 + $0x1f8] sm:$0xff]
                %209 = vst [vmem:[%s151 + $0xfc] sm:$0xff] %v208
                %v210 = vld [vmem:[%s150 + $0x200] sm:$0xff]
                %211 = vst [vmem:[%s151 + $0x104] sm:$0xff] %v210
                %v212 = vld [vmem:[%s150 + $0x208] sm:$0xff]
                %213 = vst [vmem:[%s151 + $0x10c] sm:$0xff] %v212
                %v214 = vld [vmem:[%s150 + $0x210] sm:$0xff]
                %215 = vst [vmem:[%s151 + $0x114] sm:$0xff] %v214
                %v216 = vld [vmem:[%s150 + $0x240] sm:$0xff]
                %217 = vst [vmem:[%s151 + $0x120] sm:$0xff] %v216
                %v218 = vld [vmem:[%s150 + $0x248] sm:$0xff]
                %219 = vst [vmem:[%s151 + $0x128] sm:$0xff] %v218
                %v220 = vld [vmem:[%s150 + $0x250] sm:$0xff]
                %221 = vst [vmem:[%s151 + $0x130] sm:$0xff] %v220
                %v222 = vld [vmem:[%s150 + $0x258] sm:$0xff]
                %223 = vst [vmem:[%s151 + $0x138] sm:$0xff] %v222
                %v224 = vld [vmem:[%s150 + $0x288] sm:$0xff]
                %225 = vst [vmem:[%s151 + $0x144] sm:$0xff] %v224
                %v226 = vld [vmem:[%s150 + $0x290] sm:$0xff]
                %227 = vst [vmem:[%s151 + $0x14c] sm:$0xff] %v226
                %v228 = vld [vmem:[%s150 + $0x298] sm:$0xff]
                %229 = vst [vmem:[%s151 + $0x154] sm:$0xff] %v228
                %v230 = vld [vmem:[%s150 + $0x2a0] sm:$0xff]
                %231 = vst [vmem:[%s151 + $0x15c] sm:$0xff] %v230
                %v232 = vld [vmem:[%s150 + $0x2d0] sm:$0xff]
                %233 = vst [vmem:[%s151 + $0x168] sm:$0xff] %v232
                %v234 = vld [vmem:[%s150 + $0x2d8] sm:$0xff]
                %235 = vst [vmem:[%s151 + $0x170] sm:$0xff] %v234
                %v236 = vld [vmem:[%s150 + $0x2e0] sm:$0xff]
                %237 = vst [vmem:[%s151 + $0x178] sm:$0xff] %v236
                %v238 = vld [vmem:[%s150 + $0x2e8] sm:$0xff]
                %239 = vst [vmem:[%s151 + $0x180] sm:$0xff] %v238
                %v240 = vld [vmem:[%s150 + $0x318] sm:$0xff]
                %241 = vst [vmem:[%s151 + $0x18c] sm:$0xff] %v240
                %v242 = vld [vmem:[%s150 + $0x320] sm:$0xff]
                %243 = vst [vmem:[%s151 + $0x194] sm:$0xff] %v242
                %v244 = vld [vmem:[%s150 + $0x328] sm:$0xff]
                %245 = vst [vmem:[%s151 + $0x19c] sm:$0xff] %v244
                %v246 = vld [vmem:[%s150 + $0x330] sm:$0xff]
                %247 = vst [vmem:[%s151 + $0x1a4] sm:$0xff] %v246
                %v248 = vld [vmem:[%s150 + $0x360] sm:$0xff]
                %249 = vst [vmem:[%s151 + $0x1b0] sm:$0xff] %v248
                %v250 = vld [vmem:[%s150 + $0x368] sm:$0xff]
                %251 = vst [vmem:[%s151 + $0x1b8] sm:$0xff] %v250
                %v252 = vld [vmem:[%s150 + $0x370] sm:$0xff]
                %253 = vst [vmem:[%s151 + $0x1c0] sm:$0xff] %v252
                %v254 = vld [vmem:[%s150 + $0x378] sm:$0xff]
                %255 = vst [vmem:[%s151 + $0x1c8] sm:$0xff] %v254
                %v256 = vld [vmem:[%s150 + $0x3a8] sm:$0xff]
                %257 = vst [vmem:[%s151 + $0x1d4] sm:$0xff] %v256
                %v258 = vld [vmem:[%s150 + $0x3b0] sm:$0xff]
                %259 = vst [vmem:[%s151 + $0x1dc] sm:$0xff] %v258
                %v260 = vld [vmem:[%s150 + $0x3b8] sm:$0xff]
                %261 = vst [vmem:[%s151 + $0x1e4] sm:$0xff] %v260
                %v262 = vld [vmem:[%s150 + $0x3c0] sm:$0xff]
                %263 = vst [vmem:[%s151 + $0x1ec] sm:$0xff] %v262
                %v264 = vld [vmem:[%s150 + $0x3f0] sm:$0xff]
                %265 = vst [vmem:[%s151 + $0x1f8] sm:$0xff] %v264
                %v266 = vld [vmem:[%s150 + $0x3f8] sm:$0xff]
                %267 = vst [vmem:[%s151 + $0x200] sm:$0xff] %v266
                %v268 = vld [vmem:[%s150 + $0x400] sm:$0xff]
                %269 = vst [vmem:[%s151 + $0x208] sm:$0xff] %v268
                %v270 = vld [vmem:[%s150 + $0x408] sm:$0xff]
                %271 = vst [vmem:[%s151 + $0x210] sm:$0xff] %v270
                %v272 = vld [vmem:[%s150 + $0x438] sm:$0xff]
                %273 = vst [vmem:[%s151 + $0x21c] sm:$0xff] %v272
                %v274 = vld [vmem:[%s150 + $0x440] sm:$0xff]
                %275 = vst [vmem:[%s151 + $0x224] sm:$0xff] %v274
                %v276 = vld [vmem:[%s150 + $0x448] sm:$0xff]
                %277 = vst [vmem:[%s151 + $0x22c] sm:$0xff] %v276
                %v278 = vld [vmem:[%s150 + $0x450] sm:$0xff]
                %279 = vst [vmem:[%s151 + $0x234] sm:$0xff] %v278
              $region41: #{net_without_last.2} parent=35 // loop_footer
                %s149 = sadd.s32 1, %s145
              $region42: #{net_without_last.2} parent=35 // loop_footer_branch
                %144 = sbr.rel target = $region38
              $region43: #{net_without_last.2} parent=35 // loop_exit
                _
              %s281 = ssub.s32 16, 1
              loop: start=0, step=1, limit=1
              $region44: #{net_without_last.2} parent=35 // loop_pre_header
                _
              $region45: #{net_without_last.2} parent=35 // loop_header
                %s283 = sphi 0, %s287
                %p284 = scmp.ge.s32.totalorder %s283, 1
                %s288 = sphi %s142, %s142
                %s289 = sphi %s143, %s143
              $region46: #{net_without_last.2} parent=35 // loop_header_branch
                %286 = sbr.rel (%p284) target = $region50
              $region47: #{net_without_last.2} parent=35 // loop_body
                %v290 = vld [vmem:[%s288] sm:%s281]
                %291 = vst [vmem:[%s289] sm:%s281] %v290
                %v292 = vld [vmem:[%s288 + $0x48] sm:%s281]
                %293 = vst [vmem:[%s289 + $0x24] sm:%s281] %v292
                %v294 = vld [vmem:[%s288 + $0x90] sm:%s281]
                %295 = vst [vmem:[%s289 + $0x48] sm:%s281] %v294
                %v296 = vld [vmem:[%s288 + $0xd8] sm:%s281]
                %297 = vst [vmem:[%s289 + $0x6c] sm:%s281] %v296
                %v298 = vld [vmem:[%s288 + $0x120] sm:%s281]
                %299 = vst [vmem:[%s289 + $0x90] sm:%s281] %v298
                %v300 = vld [vmem:[%s288 + $0x168] sm:%s281]
                %301 = vst [vmem:[%s289 + $0xb4] sm:%s281] %v300
                %v302 = vld [vmem:[%s288 + $0x1b0] sm:%s281]
                %303 = vst [vmem:[%s289 + $0xd8] sm:%s281] %v302
                %v304 = vld [vmem:[%s288 + $0x1f8] sm:%s281]
                %305 = vst [vmem:[%s289 + $0xfc] sm:%s281] %v304
                %v306 = vld [vmem:[%s288 + $0x240] sm:%s281]
                %307 = vst [vmem:[%s289 + $0x120] sm:%s281] %v306
                %v308 = vld [vmem:[%s288 + $0x288] sm:%s281]
                %309 = vst [vmem:[%s289 + $0x144] sm:%s281] %v308
                %v310 = vld [vmem:[%s288 + $0x2d0] sm:%s281]
                %311 = vst [vmem:[%s289 + $0x168] sm:%s281] %v310
                %v312 = vld [vmem:[%s288 + $0x318] sm:%s281]
                %313 = vst [vmem:[%s289 + $0x18c] sm:%s281] %v312
                %v314 = vld [vmem:[%s288 + $0x360] sm:%s281]
                %315 = vst [vmem:[%s289 + $0x1b0] sm:%s281] %v314
                %v316 = vld [vmem:[%s288 + $0x3a8] sm:%s281]
                %317 = vst [vmem:[%s289 + $0x1d4] sm:%s281] %v316
                %v318 = vld [vmem:[%s288 + $0x3f0] sm:%s281]
                %319 = vst [vmem:[%s289 + $0x1f8] sm:%s281] %v318
                %v320 = vld [vmem:[%s288 + $0x438] sm:%s281]
                %321 = vst [vmem:[%s289 + $0x21c] sm:%s281] %v320
              $region48: #{net_without_last.2} parent=35 // loop_footer
                %s287 = sadd.s32 1, %s283
              $region49: #{net_without_last.2} parent=35 // loop_footer_branch
                %282 = sbr.rel target = $region45
              $region50: #{net_without_last.2} parent=35 // loop_exit
                _
            $region36: #{net_without_last.2} parent=31 // pred_fallthru
              _
          $region32: #{net_without_last.2} parent=27 // pred_fallthru
            _
          %322 = vnop
        $region28: #{net_without_last.2} parent=23 // pred_fallthru
          _
      $region24: #{net_without_last.2} parent=5 // pred_fallthru
        _
      %p323 = scmp.le.s32.totalorder 1, %s9
      %p324 = scmp.lt.s32.totalorder %s9, 3
      %p325 = pnand %p323, %p324
      %p326 = pneg %p325
      // Predicated region
      $region51: #{net_without_last.2} parent=5 // pred_check
        _
      $region52: #{net_without_last.2} parent=5 // pred_check_branch
        %328 = sbr.rel (%p325) target = $region54
      $region53: #{net_without_last.2} parent=5 // pred_region
        %s329 = ssub.s32 %s9, 1
        %s330 = sand.u32 %s22, 1
        %s331 = sand.u32 %s22, 1
        %s332 = smul.addr %s331, 576
        %s333 = scalar_lea.vmem [#allocation2], %s332
        // Predicated region
        $region55: #{net_without_last.2} parent=53 // pred_check
          %p334 = pneg %p35
        $region56: #{net_without_last.2} parent=53 // pred_check_branch
          %336 = sbr.rel (%p334) target = $region58
        $region57: #{net_without_last.2} parent=53 // pred_region
          _
        $region58: #{net_without_last.2} parent=53 // pred_fallthru
          _
        %s337 = sand.u32 %s22, 1
        %s338 = sand.u32 %s22, 1
        %s339 = smul.addr %s338, 576
        %s340 = scalar_lea.vmem [#allocation2], %s339
        %p341 = pneg %p35
        %p342 = pneg %p32
        %p343 = pneg %p56
        %p344 = pneg %p53
        %p345 = pneg %p77
        %p346 = pneg %p74
        %p347 = pneg %p103
        %p348 = pneg %p100
        %s349 = sand.u32 %s90, 1
        %s350 = sand.u32 %s90, 1
        %s351 = smul.addr %s350, 144
        %s352 = scalar_lea.vmem [#allocation3], %s351
        %s353 = smul.u32 9, %s14
        %s354 = smul.u32 9, %s14
        %v356 = vld [vmem:[%s1] sm:$0xf]
        %v357 = vld [vmem:[%s1 + $0x4] sm:$0x1]
        %v358 = vld [vmem:[%s333] sm:$0xff]
        %v359 = vld [vmem:[%s333 + $0x8] sm:$0xff]
        %v360 = vld [vmem:[%s333 + $0x10] sm:$0xff]
        %v361 = vld [vmem:[%s333 + $0x18] sm:$0xff]
        %v362 = vld [vmem:[%s333 + $0x20] sm:$0xf]
        %v363 = vld [vmem:[%s333 + $0x24] sm:$0xff]
        %v364 = vld [vmem:[%s333 + $0x2c] sm:$0xff]
        %v365 = vld [vmem:[%s333 + $0x34] sm:$0xff]
        %v366 = vld [vmem:[%s333 + $0x3c] sm:$0xff]
        %v367 = vld [vmem:[%s333 + $0x44] sm:$0xf]
        %v368 = vld [vmem:[%s333 + $0x48] sm:$0xff]
        %v369 = vld [vmem:[%s333 + $0x50] sm:$0xff]
        %v370 = vld [vmem:[%s333 + $0x58] sm:$0xff]
        %v371 = vld [vmem:[%s333 + $0x60] sm:$0xff]
        %v372 = vld [vmem:[%s333 + $0x68] sm:$0xf]
        %v373 = vld [vmem:[%s333 + $0x6c] sm:$0x11]
        %v374 = vld [vmem:[%s333 + $0x74] sm:$0x11]
        %v375 = vld [vmem:[%s333 + $0x7c] sm:$0x11]
        %v376 = vld [vmem:[%s333 + $0x84] sm:$0x11]
        %v377 = vld [vmem:[%s333 + $0x8c] sm:$0x1]
        %v380 = vunpack.c.l.b16 %v356
        %v381 = vunpack.c.l.b16 %v357
        %v382 = vpack.c.b16 %v381, %v380
        %v403 = vunpack.c.l.b16 %v358
        %v404 = vunpack.c.h.b16 %v358
        %v405 = vunpack.c.l.b16 %v359
        %v406 = vunpack.c.h.b16 %v359
        %v407 = vunpack.c.l.b16 %v360
        %v408 = vunpack.c.h.b16 %v360
        %v409 = vunpack.c.l.b16 %v361
        %v410 = vunpack.c.h.b16 %v361
        %v411 = vunpack.c.l.b16 %v362
        %v412 = vunpack.c.l.b16 %v363
        %v413 = vunpack.c.h.b16 %v363
        %v414 = vunpack.c.l.b16 %v364
        %v415 = vunpack.c.h.b16 %v364
        %v416 = vunpack.c.l.b16 %v365
        %v417 = vunpack.c.h.b16 %v365
        %v418 = vunpack.c.l.b16 %v366
        %v419 = vunpack.c.h.b16 %v366
        %v420 = vunpack.c.l.b16 %v367
        %v421 = vunpack.c.l.b16 %v368
        %v422 = vunpack.c.h.b16 %v368
        %v423 = vunpack.c.l.b16 %v369
        %v424 = vunpack.c.h.b16 %v369
        %v425 = vunpack.c.l.b16 %v370
        %v426 = vunpack.c.h.b16 %v370
        %v427 = vunpack.c.l.b16 %v371
        %v428 = vunpack.c.h.b16 %v371
        %v429 = vunpack.c.l.b16 %v372
        %v430 = vunpack.c.l.b16 %v373
        %v431 = vunpack.c.h.b16 %v373
        %v432 = vunpack.c.l.b16 %v374
        %v433 = vunpack.c.h.b16 %v374
        %v434 = vunpack.c.l.b16 %v375
        %v435 = vunpack.c.h.b16 %v375
        %v436 = vunpack.c.l.b16 %v376
        %v437 = vunpack.c.h.b16 %v376
        %v438 = vunpack.c.l.b16 %v377
        %v439 = vpack.c.b16 %v412, %v403
        %v440 = vpack.c.b16 %v413, %v404
        %v441 = vpack.c.b16 %v414, %v405
        %v442 = vpack.c.b16 %v415, %v406
        %v443 = vpack.c.b16 %v416, %v407
        %v444 = vpack.c.b16 %v417, %v408
        %v445 = vpack.c.b16 %v418, %v409
        %v446 = vpack.c.b16 %v419, %v410
        %v447 = vpack.c.b16 %v420, %v411
        %v448 = vpack.c.b16 %v430, %v421
        %v449 = vpack.c.b16 %v431, %v422
        %v450 = vpack.c.b16 %v432, %v423
        %v451 = vpack.c.b16 %v433, %v424
        %v452 = vpack.c.b16 %v434, %v425
        %v453 = vpack.c.b16 %v435, %v426
        %v454 = vpack.c.b16 %v436, %v427
        %v455 = vpack.c.b16 %v437, %v428
        %v456 = vpack.c.b16 %v438, %v429
        %vm466 = vcmask 203776
        %v468 = vsel %vm466, %v382, 0
        %vm470 = vcmask 1043456
        %vm471 = vcmask 1044480
        %v472 = vsel %vm470, 4294967295, 65535
        %v473 = vsel %vm471, %v472, 0
        %v475 = vand.u32 %v448, %v473
        %v478 = vand.u32 %v449, %v473
        %v481 = vand.u32 %v450, %v473
        %v484 = vand.u32 %v451, %v473
        %v487 = vand.u32 %v452, %v473
        %v490 = vand.u32 %v453, %v473
        %v493 = vand.u32 %v454, %v473
        %v496 = vand.u32 %v455, %v473
        %v499 = vand.u32 %v456, %v473
        %501 = vmatpush.bf16.msra.mxu0 0
        %502 = vmatpush.bf16.msra.mxu0 0
        %503 = vmatpush.bf16.msra.mxu0 0
        %504 = vmatpush.bf16.msra.mxu0 0
        %505 = vmatpush.bf16.msra.mxu0 0
        %506 = vmatpush.bf16.msra.mxu0 0
        %507 = vmatpush.bf16.msra.mxu0 %v475
        %508 = vmatpush.bf16.msra.mxu0 %v439
        %509 = vmatmul.bf16.gmra.mxu0 %v468
        %v510 = vpop.f32.mrf.mxu0
        %v511 = vadd.f32 0.0, %v510
        %v512 = vpop.f32.mrf.mxu0
        %v513 = vadd.f32 0.0, %v512
        %514 = vdwg.mxu0
        %515 = vmatpush.bf16.msra.mxu0 0
        %516 = vmatpush.bf16.msra.mxu0 0
        %517 = vmatpush.bf16.msra.mxu0 0
        %518 = vmatpush.bf16.msra.mxu0 0
        %519 = vmatpush.bf16.msra.mxu0 0
        %520 = vmatpush.bf16.msra.mxu0 0
        %521 = vmatpush.bf16.msra.mxu0 %v478
        %522 = vmatpush.bf16.msra.mxu0 %v440
        %523 = vmatmul.bf16.gmra.mxu0 %v468
        %v524 = vpop.f32.mrf.mxu0
        %v525 = vadd.f32 0.0, %v524
        %v526 = vpop.f32.mrf.mxu0
        %v527 = vadd.f32 0.0, %v526
        %528 = vdwg.mxu0
        %529 = vmatpush.bf16.msra.mxu0 0
        %530 = vmatpush.bf16.msra.mxu0 0
        %531 = vmatpush.bf16.msra.mxu0 0
        %532 = vmatpush.bf16.msra.mxu0 0
        %533 = vmatpush.bf16.msra.mxu0 0
        %534 = vmatpush.bf16.msra.mxu0 0
        %535 = vmatpush.bf16.msra.mxu0 %v481
        %536 = vmatpush.bf16.msra.mxu0 %v441
        %537 = vmatmul.bf16.gmra.mxu0 %v468
        %v538 = vpop.f32.mrf.mxu0
        %v539 = vadd.f32 0.0, %v538
        %v540 = vpop.f32.mrf.mxu0
        %v541 = vadd.f32 0.0, %v540
        %542 = vdwg.mxu0
        %543 = vmatpush.bf16.msra.mxu0 0
        %544 = vmatpush.bf16.msra.mxu0 0
        %545 = vmatpush.bf16.msra.mxu0 0
        %546 = vmatpush.bf16.msra.mxu0 0
        %547 = vmatpush.bf16.msra.mxu0 0
        %548 = vmatpush.bf16.msra.mxu0 0
        %549 = vmatpush.bf16.msra.mxu0 %v484
        %550 = vmatpush.bf16.msra.mxu0 %v442
        %551 = vmatmul.bf16.gmra.mxu0 %v468
        %v552 = vpop.f32.mrf.mxu0
        %v553 = vadd.f32 0.0, %v552
        %v554 = vpop.f32.mrf.mxu0
        %v555 = vadd.f32 0.0, %v554
        %556 = vdwg.mxu0
        %557 = vmatpush.bf16.msra.mxu0 0
        %558 = vmatpush.bf16.msra.mxu0 0
        %559 = vmatpush.bf16.msra.mxu0 0
        %560 = vmatpush.bf16.msra.mxu0 0
        %561 = vmatpush.bf16.msra.mxu0 0
        %562 = vmatpush.bf16.msra.mxu0 0
        %563 = vmatpush.bf16.msra.mxu0 %v487
        %564 = vmatpush.bf16.msra.mxu0 %v443
        %565 = vmatmul.bf16.gmra.mxu0 %v468
        %v566 = vpop.f32.mrf.mxu0
        %v567 = vadd.f32 0.0, %v566
        %v568 = vpop.f32.mrf.mxu0
        %v569 = vadd.f32 0.0, %v568
        %570 = vdwg.mxu0
        %571 = vmatpush.bf16.msra.mxu0 0
        %572 = vmatpush.bf16.msra.mxu0 0
        %573 = vmatpush.bf16.msra.mxu0 0
        %574 = vmatpush.bf16.msra.mxu0 0
        %575 = vmatpush.bf16.msra.mxu0 0
        %576 = vmatpush.bf16.msra.mxu0 0
        %577 = vmatpush.bf16.msra.mxu0 %v490
        %578 = vmatpush.bf16.msra.mxu0 %v444
        %579 = vmatmul.bf16.gmra.mxu0 %v468
        %v580 = vpop.f32.mrf.mxu0
        %v581 = vadd.f32 0.0, %v580
        %v582 = vpop.f32.mrf.mxu0
        %v583 = vadd.f32 0.0, %v582
        %584 = vdwg.mxu0
        %585 = vmatpush.bf16.msra.mxu0 0
        %586 = vmatpush.bf16.msra.mxu0 0
        %587 = vmatpush.bf16.msra.mxu0 0
        %588 = vmatpush.bf16.msra.mxu0 0
        %589 = vmatpush.bf16.msra.mxu0 0
        %590 = vmatpush.bf16.msra.mxu0 0
        %591 = vmatpush.bf16.msra.mxu0 %v493
        %592 = vmatpush.bf16.msra.mxu0 %v445
        %593 = vmatmul.bf16.gmra.mxu0 %v468
        %v594 = vpop.f32.mrf.mxu0
        %v595 = vadd.f32 0.0, %v594
        %v596 = vpop.f32.mrf.mxu0
        %v597 = vadd.f32 0.0, %v596
        %598 = vdwg.mxu0
        %599 = vmatpush.bf16.msra.mxu0 0
        %600 = vmatpush.bf16.msra.mxu0 0
        %601 = vmatpush.bf16.msra.mxu0 0
        %602 = vmatpush.bf16.msra.mxu0 0
        %603 = vmatpush.bf16.msra.mxu0 0
        %604 = vmatpush.bf16.msra.mxu0 0
        %605 = vmatpush.bf16.msra.mxu0 %v496
        %606 = vmatpush.bf16.msra.mxu0 %v446
        %607 = vmatmul.bf16.gmra.mxu0 %v468
        %v608 = vpop.f32.mrf.mxu0
        %v609 = vadd.f32 0.0, %v608
        %v610 = vpop.f32.mrf.mxu0
        %v611 = vadd.f32 0.0, %v610
        %612 = vdwg.mxu0
        %613 = vmatpush.bf16.msra.mxu0 0
        %614 = vmatpush.bf16.msra.mxu0 0
        %615 = vmatpush.bf16.msra.mxu0 0
        %616 = vmatpush.bf16.msra.mxu0 0
        %617 = vmatpush.bf16.msra.mxu0 0
        %618 = vmatpush.bf16.msra.mxu0 0
        %619 = vmatpush.bf16.msra.mxu0 %v499
        %620 = vmatpush.bf16.msra.mxu0 %v447
        %621 = vmatmul.bf16.gmra.mxu0 %v468
        %v622 = vpop.f32.mrf.mxu0
        %v623 = vadd.f32 0.0, %v622
        %v624 = vpop.f32.mrf.mxu0
        %v625 = vadd.f32 0.0, %v624
        %626 = vdwg.mxu0
        %s627 = scalar_lea.vmem %s333, 144 [#allocation2]
        %v628 = vld [vmem:[%s627] sm:$0xff]
        %v629 = vld [vmem:[%s627 + $0x8] sm:$0xff]
        %v630 = vld [vmem:[%s627 + $0x10] sm:$0xff]
        %v631 = vld [vmem:[%s627 + $0x18] sm:$0xff]
        %v632 = vld [vmem:[%s627 + $0x20] sm:$0xf]
        %v633 = vld [vmem:[%s627 + $0x24] sm:$0xff]
        %v634 = vld [vmem:[%s627 + $0x2c] sm:$0xff]
        %v635 = vld [vmem:[%s627 + $0x34] sm:$0xff]
        %v636 = vld [vmem:[%s627 + $0x3c] sm:$0xff]
        %v637 = vld [vmem:[%s627 + $0x44] sm:$0xf]
        %v638 = vld [vmem:[%s627 + $0x48] sm:$0xff]
        %v639 = vld [vmem:[%s627 + $0x50] sm:$0xff]
        %v640 = vld [vmem:[%s627 + $0x58] sm:$0xff]
        %v641 = vld [vmem:[%s627 + $0x60] sm:$0xff]
        %v642 = vld [vmem:[%s627 + $0x68] sm:$0xf]
        %v643 = vld [vmem:[%s627 + $0x6c] sm:$0x11]
        %v644 = vld [vmem:[%s627 + $0x74] sm:$0x11]
        %v645 = vld [vmem:[%s627 + $0x7c] sm:$0x11]
        %v646 = vld [vmem:[%s627 + $0x84] sm:$0x11]
        %v647 = vld [vmem:[%s627 + $0x8c] sm:$0x1]
        %v668 = vunpack.c.l.b16 %v628
        %v669 = vunpack.c.h.b16 %v628
        %v670 = vunpack.c.l.b16 %v629
        %v671 = vunpack.c.h.b16 %v629
        %v672 = vunpack.c.l.b16 %v630
        %v673 = vunpack.c.h.b16 %v630
        %v674 = vunpack.c.l.b16 %v631
        %v675 = vunpack.c.h.b16 %v631
        %v676 = vunpack.c.l.b16 %v632
        %v677 = vunpack.c.l.b16 %v633
        %v678 = vunpack.c.h.b16 %v633
        %v679 = vunpack.c.l.b16 %v634
        %v680 = vunpack.c.h.b16 %v634
        %v681 = vunpack.c.l.b16 %v635
        %v682 = vunpack.c.h.b16 %v635
        %v683 = vunpack.c.l.b16 %v636
        %v684 = vunpack.c.h.b16 %v636
        %v685 = vunpack.c.l.b16 %v637
        %v686 = vunpack.c.l.b16 %v638
        %v687 = vunpack.c.h.b16 %v638
        %v688 = vunpack.c.l.b16 %v639
        %v689 = vunpack.c.h.b16 %v639
        %v690 = vunpack.c.l.b16 %v640
        %v691 = vunpack.c.h.b16 %v640
        %v692 = vunpack.c.l.b16 %v641
        %v693 = vunpack.c.h.b16 %v641
        %v694 = vunpack.c.l.b16 %v642
        %v695 = vunpack.c.l.b16 %v643
        %v696 = vunpack.c.h.b16 %v643
        %v697 = vunpack.c.l.b16 %v644
        %v698 = vunpack.c.h.b16 %v644
        %v699 = vunpack.c.l.b16 %v645
        %v700 = vunpack.c.h.b16 %v645
        %v701 = vunpack.c.l.b16 %v646
        %v702 = vunpack.c.h.b16 %v646
        %v703 = vunpack.c.l.b16 %v647
        %v704 = vpack.c.b16 %v677, %v668
        %v705 = vpack.c.b16 %v678, %v669
        %v706 = vpack.c.b16 %v679, %v670
        %v707 = vpack.c.b16 %v680, %v671
        %v708 = vpack.c.b16 %v681, %v672
        %v709 = vpack.c.b16 %v682, %v673
        %v710 = vpack.c.b16 %v683, %v674
        %v711 = vpack.c.b16 %v684, %v675
        %v712 = vpack.c.b16 %v685, %v676
        %v713 = vpack.c.b16 %v695, %v686
        %v714 = vpack.c.b16 %v696, %v687
        %v715 = vpack.c.b16 %v697, %v688
        %v716 = vpack.c.b16 %v698, %v689
        %v717 = vpack.c.b16 %v699, %v690
        %v718 = vpack.c.b16 %v700, %v691
        %v719 = vpack.c.b16 %v701, %v692
        %v720 = vpack.c.b16 %v702, %v693
        %v721 = vpack.c.b16 %v703, %v694
        %v732 = vand.u32 %v713, %v473
        %v735 = vand.u32 %v714, %v473
        %v738 = vand.u32 %v715, %v473
        %v741 = vand.u32 %v716, %v473
        %v744 = vand.u32 %v717, %v473
        %v747 = vand.u32 %v718, %v473
        %v750 = vand.u32 %v719, %v473
        %v753 = vand.u32 %v720, %v473
        %v756 = vand.u32 %v721, %v473
        %758 = vmatpush.bf16.msra.mxu0 0
        %759 = vmatpush.bf16.msra.mxu0 0
        %760 = vmatpush.bf16.msra.mxu0 0
        %761 = vmatpush.bf16.msra.mxu0 0
        %762 = vmatpush.bf16.msra.mxu0 0
        %763 = vmatpush.bf16.msra.mxu0 0
        %764 = vmatpush.bf16.msra.mxu0 %v732
        %765 = vmatpush.bf16.msra.mxu0 %v704
        %766 = vmatmul.bf16.gmra.mxu0 %v468
        %v767 = vpop.f32.mrf.mxu0
        %v768 = vadd.f32 0.0, %v767
        %v769 = vpop.f32.mrf.mxu0
        %v770 = vadd.f32 0.0, %v769
        %771 = vdwg.mxu0
        %772 = vmatpush.bf16.msra.mxu0 0
        %773 = vmatpush.bf16.msra.mxu0 0
        %774 = vmatpush.bf16.msra.mxu0 0
        %775 = vmatpush.bf16.msra.mxu0 0
        %776 = vmatpush.bf16.msra.mxu0 0
        %777 = vmatpush.bf16.msra.mxu0 0
        %778 = vmatpush.bf16.msra.mxu0 %v735
        %779 = vmatpush.bf16.msra.mxu0 %v705
        %780 = vmatmul.bf16.gmra.mxu0 %v468
        %v781 = vpop.f32.mrf.mxu0
        %v782 = vadd.f32 0.0, %v781
        %v783 = vpop.f32.mrf.mxu0
        %v784 = vadd.f32 0.0, %v783
        %785 = vdwg.mxu0
        %786 = vmatpush.bf16.msra.mxu0 0
        %787 = vmatpush.bf16.msra.mxu0 0
        %788 = vmatpush.bf16.msra.mxu0 0
        %789 = vmatpush.bf16.msra.mxu0 0
        %790 = vmatpush.bf16.msra.mxu0 0
        %791 = vmatpush.bf16.msra.mxu0 0
        %792 = vmatpush.bf16.msra.mxu0 %v738
        %793 = vmatpush.bf16.msra.mxu0 %v706
        %794 = vmatmul.bf16.gmra.mxu0 %v468
        %v795 = vpop.f32.mrf.mxu0
        %v796 = vadd.f32 0.0, %v795
        %v797 = vpop.f32.mrf.mxu0
        %v798 = vadd.f32 0.0, %v797
        %799 = vdwg.mxu0
        %800 = vmatpush.bf16.msra.mxu0 0
        %801 = vmatpush.bf16.msra.mxu0 0
        %802 = vmatpush.bf16.msra.mxu0 0
        %803 = vmatpush.bf16.msra.mxu0 0
        %804 = vmatpush.bf16.msra.mxu0 0
        %805 = vmatpush.bf16.msra.mxu0 0
        %806 = vmatpush.bf16.msra.mxu0 %v741
        %807 = vmatpush.bf16.msra.mxu0 %v707
        %808 = vmatmul.bf16.gmra.mxu0 %v468
        %v809 = vpop.f32.mrf.mxu0
        %v810 = vadd.f32 0.0, %v809
        %v811 = vpop.f32.mrf.mxu0
        %v812 = vadd.f32 0.0, %v811
        %813 = vdwg.mxu0
        %814 = vmatpush.bf16.msra.mxu0 0
        %815 = vmatpush.bf16.msra.mxu0 0
        %816 = vmatpush.bf16.msra.mxu0 0
        %817 = vmatpush.bf16.msra.mxu0 0
        %818 = vmatpush.bf16.msra.mxu0 0
        %819 = vmatpush.bf16.msra.mxu0 0
        %820 = vmatpush.bf16.msra.mxu0 %v744
        %821 = vmatpush.bf16.msra.mxu0 %v708
        %822 = vmatmul.bf16.gmra.mxu0 %v468
        %v823 = vpop.f32.mrf.mxu0
        %v824 = vadd.f32 0.0, %v823
        %v825 = vpop.f32.mrf.mxu0
        %v826 = vadd.f32 0.0, %v825
        %827 = vdwg.mxu0
        %828 = vmatpush.bf16.msra.mxu0 0
        %829 = vmatpush.bf16.msra.mxu0 0
        %830 = vmatpush.bf16.msra.mxu0 0
        %831 = vmatpush.bf16.msra.mxu0 0
        %832 = vmatpush.bf16.msra.mxu0 0
        %833 = vmatpush.bf16.msra.mxu0 0
        %834 = vmatpush.bf16.msra.mxu0 %v747
        %835 = vmatpush.bf16.msra.mxu0 %v709
        %836 = vmatmul.bf16.gmra.mxu0 %v468
        %v837 = vpop.f32.mrf.mxu0
        %v838 = vadd.f32 0.0, %v837
        %v839 = vpop.f32.mrf.mxu0
        %v840 = vadd.f32 0.0, %v839
        %841 = vdwg.mxu0
        %842 = vmatpush.bf16.msra.mxu0 0
        %843 = vmatpush.bf16.msra.mxu0 0
        %844 = vmatpush.bf16.msra.mxu0 0
        %845 = vmatpush.bf16.msra.mxu0 0
        %846 = vmatpush.bf16.msra.mxu0 0
        %847 = vmatpush.bf16.msra.mxu0 0
        %848 = vmatpush.bf16.msra.mxu0 %v750
        %849 = vmatpush.bf16.msra.mxu0 %v710
        %850 = vmatmul.bf16.gmra.mxu0 %v468
        %v851 = vpop.f32.mrf.mxu0
        %v852 = vadd.f32 0.0, %v851
        %v853 = vpop.f32.mrf.mxu0
        %v854 = vadd.f32 0.0, %v853
        %855 = vdwg.mxu0
        %856 = vmatpush.bf16.msra.mxu0 0
        %857 = vmatpush.bf16.msra.mxu0 0
        %858 = vmatpush.bf16.msra.mxu0 0
        %859 = vmatpush.bf16.msra.mxu0 0
        %860 = vmatpush.bf16.msra.mxu0 0
        %861 = vmatpush.bf16.msra.mxu0 0
        %862 = vmatpush.bf16.msra.mxu0 %v753
        %863 = vmatpush.bf16.msra.mxu0 %v711
        %864 = vmatmul.bf16.gmra.mxu0 %v468
        %v865 = vpop.f32.mrf.mxu0
        %v866 = vadd.f32 0.0, %v865
        %v867 = vpop.f32.mrf.mxu0
        %v868 = vadd.f32 0.0, %v867
        %869 = vdwg.mxu0
        %870 = vmatpush.bf16.msra.mxu0 0
        %871 = vmatpush.bf16.msra.mxu0 0
        %872 = vmatpush.bf16.msra.mxu0 0
        %873 = vmatpush.bf16.msra.mxu0 0
        %874 = vmatpush.bf16.msra.mxu0 0
        %875 = vmatpush.bf16.msra.mxu0 0
        %876 = vmatpush.bf16.msra.mxu0 %v756
        %877 = vmatpush.bf16.msra.mxu0 %v712
        %878 = vmatmul.bf16.gmra.mxu0 %v468
        %v879 = vpop.f32.mrf.mxu0
        %v880 = vadd.f32 0.0, %v879
        %v881 = vpop.f32.mrf.mxu0
        %v882 = vadd.f32 0.0, %v881
        %883 = vdwg.mxu0
        %v884 = vmax.f32 %v511, %v768
        %v885 = vmax.f32 %v525, %v782
        %v886 = vmax.f32 %v539, %v796
        %v887 = vmax.f32 %v553, %v810
        %v888 = vmax.f32 %v567, %v824
        %v889 = vmax.f32 %v581, %v838
        %v890 = vmax.f32 %v595, %v852
        %v891 = vmax.f32 %v609, %v866
        %v892 = vmax.f32 %v623, %v880
        %v893 = vmax.f32 %v513, %v770
        %v894 = vmax.f32 %v527, %v784
        %v895 = vmax.f32 %v541, %v798
        %v896 = vmax.f32 %v555, %v812
        %v897 = vmax.f32 %v569, %v826
        %v898 = vmax.f32 %v583, %v840
        %v899 = vmax.f32 %v597, %v854
        %v900 = vmax.f32 %v611, %v868
        %v901 = vmax.f32 %v625, %v882
        %s902 = scalar_lea.vmem %s333, 288 [#allocation2]
        %v903 = vld [vmem:[%s902] sm:$0xff]
        %v904 = vld [vmem:[%s902 + $0x8] sm:$0xff]
        %v905 = vld [vmem:[%s902 + $0x10] sm:$0xff]
        %v906 = vld [vmem:[%s902 + $0x18] sm:$0xff]
        %v907 = vld [vmem:[%s902 + $0x20] sm:$0xf]
        %v908 = vld [vmem:[%s902 + $0x24] sm:$0xff]
        %v909 = vld [vmem:[%s902 + $0x2c] sm:$0xff]
        %v910 = vld [vmem:[%s902 + $0x34] sm:$0xff]
        %v911 = vld [vmem:[%s902 + $0x3c] sm:$0xff]
        %v912 = vld [vmem:[%s902 + $0x44] sm:$0xf]
        %v913 = vld [vmem:[%s902 + $0x48] sm:$0xff]
        %v914 = vld [vmem:[%s902 + $0x50] sm:$0xff]
        %v915 = vld [vmem:[%s902 + $0x58] sm:$0xff]
        %v916 = vld [vmem:[%s902 + $0x60] sm:$0xff]
        %v917 = vld [vmem:[%s902 + $0x68] sm:$0xf]
        %v918 = vld [vmem:[%s902 + $0x6c] sm:$0x11]
        %v919 = vld [vmem:[%s902 + $0x74] sm:$0x11]
        %v920 = vld [vmem:[%s902 + $0x7c] sm:$0x11]
        %v921 = vld [vmem:[%s902 + $0x84] sm:$0x11]
        %v922 = vld [vmem:[%s902 + $0x8c] sm:$0x1]
        %v943 = vunpack.c.l.b16 %v903
        %v944 = vunpack.c.h.b16 %v903
        %v945 = vunpack.c.l.b16 %v904
        %v946 = vunpack.c.h.b16 %v904
        %v947 = vunpack.c.l.b16 %v905
        %v948 = vunpack.c.h.b16 %v905
        %v949 = vunpack.c.l.b16 %v906
        %v950 = vunpack.c.h.b16 %v906
        %v951 = vunpack.c.l.b16 %v907
        %v952 = vunpack.c.l.b16 %v908
        %v953 = vunpack.c.h.b16 %v908
        %v954 = vunpack.c.l.b16 %v909
        %v955 = vunpack.c.h.b16 %v909
        %v956 = vunpack.c.l.b16 %v910
        %v957 = vunpack.c.h.b16 %v910
        %v958 = vunpack.c.l.b16 %v911
        %v959 = vunpack.c.h.b16 %v911
        %v960 = vunpack.c.l.b16 %v912
        %v961 = vunpack.c.l.b16 %v913
        %v962 = vunpack.c.h.b16 %v913
        %v963 = vunpack.c.l.b16 %v914
        %v964 = vunpack.c.h.b16 %v914
        %v965 = vunpack.c.l.b16 %v915
        %v966 = vunpack.c.h.b16 %v915
        %v967 = vunpack.c.l.b16 %v916
        %v968 = vunpack.c.h.b16 %v916
        %v969 = vunpack.c.l.b16 %v917
        %v970 = vunpack.c.l.b16 %v918
        %v971 = vunpack.c.h.b16 %v918
        %v972 = vunpack.c.l.b16 %v919
        %v973 = vunpack.c.h.b16 %v919
        %v974 = vunpack.c.l.b16 %v920
        %v975 = vunpack.c.h.b16 %v920
        %v976 = vunpack.c.l.b16 %v921
        %v977 = vunpack.c.h.b16 %v921
        %v978 = vunpack.c.l.b16 %v922
        %v979 = vpack.c.b16 %v952, %v943
        %v980 = vpack.c.b16 %v953, %v944
        %v981 = vpack.c.b16 %v954, %v945
        %v982 = vpack.c.b16 %v955, %v946
        %v983 = vpack.c.b16 %v956, %v947
        %v984 = vpack.c.b16 %v957, %v948
        %v985 = vpack.c.b16 %v958, %v949
        %v986 = vpack.c.b16 %v959, %v950
        %v987 = vpack.c.b16 %v960, %v951
        %v988 = vpack.c.b16 %v970, %v961
        %v989 = vpack.c.b16 %v971, %v962
        %v990 = vpack.c.b16 %v972, %v963
        %v991 = vpack.c.b16 %v973, %v964
        %v992 = vpack.c.b16 %v974, %v965
        %v993 = vpack.c.b16 %v975, %v966
        %v994 = vpack.c.b16 %v976, %v967
        %v995 = vpack.c.b16 %v977, %v968
        %v996 = vpack.c.b16 %v978, %v969
        %v1007 = vand.u32 %v988, %v473
        %v1010 = vand.u32 %v989, %v473
        %v1013 = vand.u32 %v990, %v473
        %v1016 = vand.u32 %v991, %v473
        %v1019 = vand.u32 %v992, %v473
        %v1022 = vand.u32 %v993, %v473
        %v1025 = vand.u32 %v994, %v473
        %v1028 = vand.u32 %v995, %v473
        %v1031 = vand.u32 %v996, %v473
        %1033 = vmatpush.bf16.msra.mxu0 0
        %1034 = vmatpush.bf16.msra.mxu0 0
        %1035 = vmatpush.bf16.msra.mxu0 0
        %1036 = vmatpush.bf16.msra.mxu0 0
        %1037 = vmatpush.bf16.msra.mxu0 0
        %1038 = vmatpush.bf16.msra.mxu0 0
        %1039 = vmatpush.bf16.msra.mxu0 %v1007
        %1040 = vmatpush.bf16.msra.mxu0 %v979
        %1041 = vmatmul.bf16.gmra.mxu0 %v468
        %v1042 = vpop.f32.mrf.mxu0
        %v1043 = vadd.f32 0.0, %v1042
        %v1044 = vpop.f32.mrf.mxu0
        %v1045 = vadd.f32 0.0, %v1044
        %1046 = vdwg.mxu0
        %1047 = vmatpush.bf16.msra.mxu0 0
        %1048 = vmatpush.bf16.msra.mxu0 0
        %1049 = vmatpush.bf16.msra.mxu0 0
        %1050 = vmatpush.bf16.msra.mxu0 0
        %1051 = vmatpush.bf16.msra.mxu0 0
        %1052 = vmatpush.bf16.msra.mxu0 0
        %1053 = vmatpush.bf16.msra.mxu0 %v1010
        %1054 = vmatpush.bf16.msra.mxu0 %v980
        %1055 = vmatmul.bf16.gmra.mxu0 %v468
        %v1056 = vpop.f32.mrf.mxu0
        %v1057 = vadd.f32 0.0, %v1056
        %v1058 = vpop.f32.mrf.mxu0
        %v1059 = vadd.f32 0.0, %v1058
        %1060 = vdwg.mxu0
        %1061 = vmatpush.bf16.msra.mxu0 0
        %1062 = vmatpush.bf16.msra.mxu0 0
        %1063 = vmatpush.bf16.msra.mxu0 0
        %1064 = vmatpush.bf16.msra.mxu0 0
        %1065 = vmatpush.bf16.msra.mxu0 0
        %1066 = vmatpush.bf16.msra.mxu0 0
        %1067 = vmatpush.bf16.msra.mxu0 %v1013
        %1068 = vmatpush.bf16.msra.mxu0 %v981
        %1069 = vmatmul.bf16.gmra.mxu0 %v468
        %v1070 = vpop.f32.mrf.mxu0
        %v1071 = vadd.f32 0.0, %v1070
        %v1072 = vpop.f32.mrf.mxu0
        %v1073 = vadd.f32 0.0, %v1072
        %1074 = vdwg.mxu0
        %1075 = vmatpush.bf16.msra.mxu0 0
        %1076 = vmatpush.bf16.msra.mxu0 0
        %1077 = vmatpush.bf16.msra.mxu0 0
        %1078 = vmatpush.bf16.msra.mxu0 0
        %1079 = vmatpush.bf16.msra.mxu0 0
        %1080 = vmatpush.bf16.msra.mxu0 0
        %1081 = vmatpush.bf16.msra.mxu0 %v1016
        %1082 = vmatpush.bf16.msra.mxu0 %v982
        %1083 = vmatmul.bf16.gmra.mxu0 %v468
        %v1084 = vpop.f32.mrf.mxu0
        %v1085 = vadd.f32 0.0, %v1084
        %v1086 = vpop.f32.mrf.mxu0
        %v1087 = vadd.f32 0.0, %v1086
        %1088 = vdwg.mxu0
        %1089 = vmatpush.bf16.msra.mxu0 0
        %1090 = vmatpush.bf16.msra.mxu0 0
        %1091 = vmatpush.bf16.msra.mxu0 0
        %1092 = vmatpush.bf16.msra.mxu0 0
        %1093 = vmatpush.bf16.msra.mxu0 0
        %1094 = vmatpush.bf16.msra.mxu0 0
        %1095 = vmatpush.bf16.msra.mxu0 %v1019
        %1096 = vmatpush.bf16.msra.mxu0 %v983
        %1097 = vmatmul.bf16.gmra.mxu0 %v468
        %v1098 = vpop.f32.mrf.mxu0
        %v1099 = vadd.f32 0.0, %v1098
        %v1100 = vpop.f32.mrf.mxu0
        %v1101 = vadd.f32 0.0, %v1100
        %1102 = vdwg.mxu0
        %1103 = vmatpush.bf16.msra.mxu0 0
        %1104 = vmatpush.bf16.msra.mxu0 0
        %1105 = vmatpush.bf16.msra.mxu0 0
        %1106 = vmatpush.bf16.msra.mxu0 0
        %1107 = vmatpush.bf16.msra.mxu0 0
        %1108 = vmatpush.bf16.msra.mxu0 0
        %1109 = vmatpush.bf16.msra.mxu0 %v1022
        %1110 = vmatpush.bf16.msra.mxu0 %v984
        %1111 = vmatmul.bf16.gmra.mxu0 %v468
        %v1112 = vpop.f32.mrf.mxu0
        %v1113 = vadd.f32 0.0, %v1112
        %v1114 = vpop.f32.mrf.mxu0
        %v1115 = vadd.f32 0.0, %v1114
        %1116 = vdwg.mxu0
        %1117 = vmatpush.bf16.msra.mxu0 0
        %1118 = vmatpush.bf16.msra.mxu0 0
        %1119 = vmatpush.bf16.msra.mxu0 0
        %1120 = vmatpush.bf16.msra.mxu0 0
        %1121 = vmatpush.bf16.msra.mxu0 0
        %1122 = vmatpush.bf16.msra.mxu0 0
        %1123 = vmatpush.bf16.msra.mxu0 %v1025
        %1124 = vmatpush.bf16.msra.mxu0 %v985
        %1125 = vmatmul.bf16.gmra.mxu0 %v468
        %v1126 = vpop.f32.mrf.mxu0
        %v1127 = vadd.f32 0.0, %v1126
        %v1128 = vpop.f32.mrf.mxu0
        %v1129 = vadd.f32 0.0, %v1128
        %1130 = vdwg.mxu0
        %1131 = vmatpush.bf16.msra.mxu0 0
        %1132 = vmatpush.bf16.msra.mxu0 0
        %1133 = vmatpush.bf16.msra.mxu0 0
        %1134 = vmatpush.bf16.msra.mxu0 0
        %1135 = vmatpush.bf16.msra.mxu0 0
        %1136 = vmatpush.bf16.msra.mxu0 0
        %1137 = vmatpush.bf16.msra.mxu0 %v1028
        %1138 = vmatpush.bf16.msra.mxu0 %v986
        %1139 = vmatmul.bf16.gmra.mxu0 %v468
        %v1140 = vpop.f32.mrf.mxu0
        %v1141 = vadd.f32 0.0, %v1140
        %v1142 = vpop.f32.mrf.mxu0
        %v1143 = vadd.f32 0.0, %v1142
        %1144 = vdwg.mxu0
        %1145 = vmatpush.bf16.msra.mxu0 0
        %1146 = vmatpush.bf16.msra.mxu0 0
        %1147 = vmatpush.bf16.msra.mxu0 0
        %1148 = vmatpush.bf16.msra.mxu0 0
        %1149 = vmatpush.bf16.msra.mxu0 0
        %1150 = vmatpush.bf16.msra.mxu0 0
        %1151 = vmatpush.bf16.msra.mxu0 %v1031
        %1152 = vmatpush.bf16.msra.mxu0 %v987
        %1153 = vmatmul.bf16.gmra.mxu0 %v468
        %v1154 = vpop.f32.mrf.mxu0
        %v1155 = vadd.f32 0.0, %v1154
        %v1156 = vpop.f32.mrf.mxu0
        %v1157 = vadd.f32 0.0, %v1156
        %1158 = vdwg.mxu0
        %v1159 = vmax.f32 %v884, %v1043
        %v1160 = vmax.f32 %v885, %v1057
        %v1161 = vmax.f32 %v886, %v1071
        %v1162 = vmax.f32 %v887, %v1085
        %v1163 = vmax.f32 %v888, %v1099
        %v1164 = vmax.f32 %v889, %v1113
        %v1165 = vmax.f32 %v890, %v1127
        %v1166 = vmax.f32 %v891, %v1141
        %v1167 = vmax.f32 %v892, %v1155
        %v1168 = vmax.f32 %v893, %v1045
        %v1169 = vmax.f32 %v894, %v1059
        %v1170 = vmax.f32 %v895, %v1073
        %v1171 = vmax.f32 %v896, %v1087
        %v1172 = vmax.f32 %v897, %v1101
        %v1173 = vmax.f32 %v898, %v1115
        %v1174 = vmax.f32 %v899, %v1129
        %v1175 = vmax.f32 %v900, %v1143
        %v1176 = vmax.f32 %v901, %v1157
        %s1177 = scalar_lea.vmem %s333, 432 [#allocation2]
        %v1178 = vld [vmem:[%s1177] sm:$0xff]
        %v1179 = vld [vmem:[%s1177 + $0x8] sm:$0xff]
        %v1180 = vld [vmem:[%s1177 + $0x10] sm:$0xff]
        %v1181 = vld [vmem:[%s1177 + $0x18] sm:$0xff]
        %v1182 = vld [vmem:[%s1177 + $0x20] sm:$0xf]
        %v1183 = vld [vmem:[%s1177 + $0x24] sm:$0xff]
        %v1184 = vld [vmem:[%s1177 + $0x2c] sm:$0xff]
        %v1185 = vld [vmem:[%s1177 + $0x34] sm:$0xff]
        %v1186 = vld [vmem:[%s1177 + $0x3c] sm:$0xff]
        %v1187 = vld [vmem:[%s1177 + $0x44] sm:$0xf]
        %v1188 = vld [vmem:[%s1177 + $0x48] sm:$0xff]
        %v1189 = vld [vmem:[%s1177 + $0x50] sm:$0xff]
        %v1190 = vld [vmem:[%s1177 + $0x58] sm:$0xff]
        %v1191 = vld [vmem:[%s1177 + $0x60] sm:$0xff]
        %v1192 = vld [vmem:[%s1177 + $0x68] sm:$0xf]
        %v1193 = vld [vmem:[%s1177 + $0x6c] sm:$0x11]
        %v1194 = vld [vmem:[%s1177 + $0x74] sm:$0x11]
        %v1195 = vld [vmem:[%s1177 + $0x7c] sm:$0x11]
        %v1196 = vld [vmem:[%s1177 + $0x84] sm:$0x11]
        %v1197 = vld [vmem:[%s1177 + $0x8c] sm:$0x1]
        %v1218 = vunpack.c.l.b16 %v1178
        %v1219 = vunpack.c.h.b16 %v1178
        %v1220 = vunpack.c.l.b16 %v1179
        %v1221 = vunpack.c.h.b16 %v1179
        %v1222 = vunpack.c.l.b16 %v1180
        %v1223 = vunpack.c.h.b16 %v1180
        %v1224 = vunpack.c.l.b16 %v1181
        %v1225 = vunpack.c.h.b16 %v1181
        %v1226 = vunpack.c.l.b16 %v1182
        %v1227 = vunpack.c.l.b16 %v1183
        %v1228 = vunpack.c.h.b16 %v1183
        %v1229 = vunpack.c.l.b16 %v1184
        %v1230 = vunpack.c.h.b16 %v1184
        %v1231 = vunpack.c.l.b16 %v1185
        %v1232 = vunpack.c.h.b16 %v1185
        %v1233 = vunpack.c.l.b16 %v1186
        %v1234 = vunpack.c.h.b16 %v1186
        %v1235 = vunpack.c.l.b16 %v1187
        %v1236 = vunpack.c.l.b16 %v1188
        %v1237 = vunpack.c.h.b16 %v1188
        %v1238 = vunpack.c.l.b16 %v1189
        %v1239 = vunpack.c.h.b16 %v1189
        %v1240 = vunpack.c.l.b16 %v1190
        %v1241 = vunpack.c.h.b16 %v1190
        %v1242 = vunpack.c.l.b16 %v1191
        %v1243 = vunpack.c.h.b16 %v1191
        %v1244 = vunpack.c.l.b16 %v1192
        %v1245 = vunpack.c.l.b16 %v1193
        %v1246 = vunpack.c.h.b16 %v1193
        %v1247 = vunpack.c.l.b16 %v1194
        %v1248 = vunpack.c.h.b16 %v1194
        %v1249 = vunpack.c.l.b16 %v1195
        %v1250 = vunpack.c.h.b16 %v1195
        %v1251 = vunpack.c.l.b16 %v1196
        %v1252 = vunpack.c.h.b16 %v1196
        %v1253 = vunpack.c.l.b16 %v1197
        %v1254 = vpack.c.b16 %v1227, %v1218
        %v1255 = vpack.c.b16 %v1228, %v1219
        %v1256 = vpack.c.b16 %v1229, %v1220
        %v1257 = vpack.c.b16 %v1230, %v1221
        %v1258 = vpack.c.b16 %v1231, %v1222
        %v1259 = vpack.c.b16 %v1232, %v1223
        %v1260 = vpack.c.b16 %v1233, %v1224
        %v1261 = vpack.c.b16 %v1234, %v1225
        %v1262 = vpack.c.b16 %v1235, %v1226
        %v1263 = vpack.c.b16 %v1245, %v1236
        %v1264 = vpack.c.b16 %v1246, %v1237
        %v1265 = vpack.c.b16 %v1247, %v1238
        %v1266 = vpack.c.b16 %v1248, %v1239
        %v1267 = vpack.c.b16 %v1249, %v1240
        %v1268 = vpack.c.b16 %v1250, %v1241
        %v1269 = vpack.c.b16 %v1251, %v1242
        %v1270 = vpack.c.b16 %v1252, %v1243
        %v1271 = vpack.c.b16 %v1253, %v1244
        %v1282 = vand.u32 %v1263, %v473
        %v1285 = vand.u32 %v1264, %v473
        %v1288 = vand.u32 %v1265, %v473
        %v1291 = vand.u32 %v1266, %v473
        %v1294 = vand.u32 %v1267, %v473
        %v1297 = vand.u32 %v1268, %v473
        %v1300 = vand.u32 %v1269, %v473
        %v1303 = vand.u32 %v1270, %v473
        %v1306 = vand.u32 %v1271, %v473
        %1308 = vmatpush.bf16.msra.mxu0 0
        %1309 = vmatpush.bf16.msra.mxu0 0
        %1310 = vmatpush.bf16.msra.mxu0 0
        %1311 = vmatpush.bf16.msra.mxu0 0
        %1312 = vmatpush.bf16.msra.mxu0 0
        %1313 = vmatpush.bf16.msra.mxu0 0
        %1314 = vmatpush.bf16.msra.mxu0 %v1282
        %1315 = vmatpush.bf16.msra.mxu0 %v1254
        %1316 = vmatmul.bf16.gmra.mxu0 %v468
        %v1317 = vpop.f32.mrf.mxu0
        %v1318 = vadd.f32 0.0, %v1317
        %v1319 = vpop.f32.mrf.mxu0
        %v1320 = vadd.f32 0.0, %v1319
        %1321 = vdwg.mxu0
        %1322 = vmatpush.bf16.msra.mxu0 0
        %1323 = vmatpush.bf16.msra.mxu0 0
        %1324 = vmatpush.bf16.msra.mxu0 0
        %1325 = vmatpush.bf16.msra.mxu0 0
        %1326 = vmatpush.bf16.msra.mxu0 0
        %1327 = vmatpush.bf16.msra.mxu0 0
        %1328 = vmatpush.bf16.msra.mxu0 %v1285
        %1329 = vmatpush.bf16.msra.mxu0 %v1255
        %1330 = vmatmul.bf16.gmra.mxu0 %v468
        %v1331 = vpop.f32.mrf.mxu0
        %v1332 = vadd.f32 0.0, %v1331
        %v1333 = vpop.f32.mrf.mxu0
        %v1334 = vadd.f32 0.0, %v1333
        %1335 = vdwg.mxu0
        %1336 = vmatpush.bf16.msra.mxu0 0
        %1337 = vmatpush.bf16.msra.mxu0 0
        %1338 = vmatpush.bf16.msra.mxu0 0
        %1339 = vmatpush.bf16.msra.mxu0 0
        %1340 = vmatpush.bf16.msra.mxu0 0
        %1341 = vmatpush.bf16.msra.mxu0 0
        %1342 = vmatpush.bf16.msra.mxu0 %v1288
        %1343 = vmatpush.bf16.msra.mxu0 %v1256
        %1344 = vmatmul.bf16.gmra.mxu0 %v468
        %v1345 = vpop.f32.mrf.mxu0
        %v1346 = vadd.f32 0.0, %v1345
        %v1347 = vpop.f32.mrf.mxu0
        %v1348 = vadd.f32 0.0, %v1347
        %1349 = vdwg.mxu0
        %1350 = vmatpush.bf16.msra.mxu0 0
        %1351 = vmatpush.bf16.msra.mxu0 0
        %1352 = vmatpush.bf16.msra.mxu0 0
        %1353 = vmatpush.bf16.msra.mxu0 0
        %1354 = vmatpush.bf16.msra.mxu0 0
        %1355 = vmatpush.bf16.msra.mxu0 0
        %1356 = vmatpush.bf16.msra.mxu0 %v1291
        %1357 = vmatpush.bf16.msra.mxu0 %v1257
        %1358 = vmatmul.bf16.gmra.mxu0 %v468
        %v1359 = vpop.f32.mrf.mxu0
        %v1360 = vadd.f32 0.0, %v1359
        %v1361 = vpop.f32.mrf.mxu0
        %v1362 = vadd.f32 0.0, %v1361
        %1363 = vdwg.mxu0
        %1364 = vmatpush.bf16.msra.mxu0 0
        %1365 = vmatpush.bf16.msra.mxu0 0
        %1366 = vmatpush.bf16.msra.mxu0 0
        %1367 = vmatpush.bf16.msra.mxu0 0
        %1368 = vmatpush.bf16.msra.mxu0 0
        %1369 = vmatpush.bf16.msra.mxu0 0
        %1370 = vmatpush.bf16.msra.mxu0 %v1294
        %1371 = vmatpush.bf16.msra.mxu0 %v1258
        %1372 = vmatmul.bf16.gmra.mxu0 %v468
        %v1373 = vpop.f32.mrf.mxu0
        %v1374 = vadd.f32 0.0, %v1373
        %v1375 = vpop.f32.mrf.mxu0
        %v1376 = vadd.f32 0.0, %v1375
        %1377 = vdwg.mxu0
        %1378 = vmatpush.bf16.msra.mxu0 0
        %1379 = vmatpush.bf16.msra.mxu0 0
        %1380 = vmatpush.bf16.msra.mxu0 0
        %1381 = vmatpush.bf16.msra.mxu0 0
        %1382 = vmatpush.bf16.msra.mxu0 0
        %1383 = vmatpush.bf16.msra.mxu0 0
        %1384 = vmatpush.bf16.msra.mxu0 %v1297
        %1385 = vmatpush.bf16.msra.mxu0 %v1259
        %1386 = vmatmul.bf16.gmra.mxu0 %v468
        %v1387 = vpop.f32.mrf.mxu0
        %v1388 = vadd.f32 0.0, %v1387
        %v1389 = vpop.f32.mrf.mxu0
        %v1390 = vadd.f32 0.0, %v1389
        %1391 = vdwg.mxu0
        %1392 = vmatpush.bf16.msra.mxu0 0
        %1393 = vmatpush.bf16.msra.mxu0 0
        %1394 = vmatpush.bf16.msra.mxu0 0
        %1395 = vmatpush.bf16.msra.mxu0 0
        %1396 = vmatpush.bf16.msra.mxu0 0
        %1397 = vmatpush.bf16.msra.mxu0 0
        %1398 = vmatpush.bf16.msra.mxu0 %v1300
        %1399 = vmatpush.bf16.msra.mxu0 %v1260
        %1400 = vmatmul.bf16.gmra.mxu0 %v468
        %v1401 = vpop.f32.mrf.mxu0
        %v1402 = vadd.f32 0.0, %v1401
        %v1403 = vpop.f32.mrf.mxu0
        %v1404 = vadd.f32 0.0, %v1403
        %1405 = vdwg.mxu0
        %1406 = vmatpush.bf16.msra.mxu0 0
        %1407 = vmatpush.bf16.msra.mxu0 0
        %1408 = vmatpush.bf16.msra.mxu0 0
        %1409 = vmatpush.bf16.msra.mxu0 0
        %1410 = vmatpush.bf16.msra.mxu0 0
        %1411 = vmatpush.bf16.msra.mxu0 0
        %1412 = vmatpush.bf16.msra.mxu0 %v1303
        %1413 = vmatpush.bf16.msra.mxu0 %v1261
        %1414 = vmatmul.bf16.gmra.mxu0 %v468
        %v1415 = vpop.f32.mrf.mxu0
        %v1416 = vadd.f32 0.0, %v1415
        %v1417 = vpop.f32.mrf.mxu0
        %v1418 = vadd.f32 0.0, %v1417
        %1419 = vdwg.mxu0
        %1420 = vmatpush.bf16.msra.mxu0 0
        %1421 = vmatpush.bf16.msra.mxu0 0
        %1422 = vmatpush.bf16.msra.mxu0 0
        %1423 = vmatpush.bf16.msra.mxu0 0
        %1424 = vmatpush.bf16.msra.mxu0 0
        %1425 = vmatpush.bf16.msra.mxu0 0
        %1426 = vmatpush.bf16.msra.mxu0 %v1306
        %1427 = vmatpush.bf16.msra.mxu0 %v1262
        %1428 = vmatmul.bf16.gmra.mxu0 %v468
        %v1429 = vpop.f32.mrf.mxu0
        %v1430 = vadd.f32 0.0, %v1429
        %v1431 = vpop.f32.mrf.mxu0
        %v1432 = vadd.f32 0.0, %v1431
        %1433 = vdwg.mxu0
        %v1434 = vmax.f32 %v1159, %v1318
        %v1435 = vmax.f32 %v1160, %v1332
        %v1436 = vmax.f32 %v1161, %v1346
        %v1437 = vmax.f32 %v1162, %v1360
        %v1438 = vmax.f32 %v1163, %v1374
        %v1439 = vmax.f32 %v1164, %v1388
        %v1440 = vmax.f32 %v1165, %v1402
        %v1441 = vmax.f32 %v1166, %v1416
        %v1442 = vmax.f32 %v1167, %v1430
        %v1443 = vmax.f32 %v1168, %v1320
        %v1444 = vmax.f32 %v1169, %v1334
        %v1445 = vmax.f32 %v1170, %v1348
        %v1446 = vmax.f32 %v1171, %v1362
        %v1447 = vmax.f32 %v1172, %v1376
        %v1448 = vmax.f32 %v1173, %v1390
        %v1449 = vmax.f32 %v1174, %v1404
        %v1450 = vmax.f32 %v1175, %v1418
        %v1451 = vmax.f32 %v1176, %v1432
        %v1452 = vld [vmem:[%s2] sm:$0xff]
        %v1453 = vld [vmem:[%s2 + $0x8] sm:$0x3]
        %1455 = vset.pattern.permute.xlu0 0
        %1456 = vperm.xlu0 %1455, %v1452
        %v1457 = vpop.permute.xlu0 %1456
        %1460 = vset.pattern.permute.xlu0 0
        %1461 = vperm.xlu0 %1460, %v1453
        %v1462 = vpop.permute.xlu0 %1461
        %v1464 = vadd.f32 %v1434, %v1457
        %v1465 = vadd.f32 %v1435, %v1457
        %v1466 = vadd.f32 %v1436, %v1457
        %v1467 = vadd.f32 %v1437, %v1457
        %v1468 = vadd.f32 %v1438, %v1457
        %v1469 = vadd.f32 %v1439, %v1457
        %v1470 = vadd.f32 %v1440, %v1457
        %v1471 = vadd.f32 %v1441, %v1457
        %v1472 = vadd.f32 %v1442, %v1457
        %v1473 = vadd.f32 %v1443, %v1462
        %v1474 = vadd.f32 %v1444, %v1462
        %v1475 = vadd.f32 %v1445, %v1462
        %v1476 = vadd.f32 %v1446, %v1462
        %v1477 = vadd.f32 %v1447, %v1462
        %v1478 = vadd.f32 %v1448, %v1462
        %v1479 = vadd.f32 %v1449, %v1462
        %v1480 = vadd.f32 %v1450, %v1462
        %v1481 = vadd.f32 %v1451, %v1462
        %v1482 = vmax.f32 %v1464, 0.0
        %v1483 = vmax.f32 %v1465, 0.0
        %v1484 = vmax.f32 %v1466, 0.0
        %v1485 = vmax.f32 %v1467, 0.0
        %v1486 = vmax.f32 %v1468, 0.0
        %v1487 = vmax.f32 %v1469, 0.0
        %v1488 = vmax.f32 %v1470, 0.0
        %v1489 = vmax.f32 %v1471, 0.0
        %v1490 = vmax.f32 %v1472, 0.0
        %v1491 = vmax.f32 %v1473, 0.0
        %v1492 = vmax.f32 %v1474, 0.0
        %v1493 = vmax.f32 %v1475, 0.0
        %v1494 = vmax.f32 %v1476, 0.0
        %v1495 = vmax.f32 %v1477, 0.0
        %v1496 = vmax.f32 %v1478, 0.0
        %v1497 = vmax.f32 %v1479, 0.0
        %v1498 = vmax.f32 %v1480, 0.0
        %v1499 = vmax.f32 %v1481, 0.0
        %1500 = vst [vmem:[%s352] sm:$0xff] %v1482
        %1501 = vst [vmem:[%s352 + $0x8] sm:$0xff] %v1483
        %1502 = vst [vmem:[%s352 + $0x10] sm:$0xff] %v1484
        %1503 = vst [vmem:[%s352 + $0x18] sm:$0xff] %v1485
        %1504 = vst [vmem:[%s352 + $0x20] sm:$0xff] %v1486
        %1505 = vst [vmem:[%s352 + $0x28] sm:$0xff] %v1487
        %1506 = vst [vmem:[%s352 + $0x30] sm:$0xff] %v1488
        %1507 = vst [vmem:[%s352 + $0x38] sm:$0xff] %v1489
        %1508 = vst [vmem:[%s352 + $0x40] sm:$0xff] %v1490
        %1509 = vst [vmem:[%s352 + $0x48] sm:$0x3] %v1491
        %1510 = vst [vmem:[%s352 + $0x50] sm:$0x3] %v1492
        %1511 = vst [vmem:[%s352 + $0x58] sm:$0x3] %v1493
        %1512 = vst [vmem:[%s352 + $0x60] sm:$0x3] %v1494
        %1513 = vst [vmem:[%s352 + $0x68] sm:$0x3] %v1495
        %1514 = vst [vmem:[%s352 + $0x70] sm:$0x3] %v1496
        %1515 = vst [vmem:[%s352 + $0x78] sm:$0x3] %v1497
        %1516 = vst [vmem:[%s352 + $0x80] sm:$0x3] %v1498
        %1517 = vst [vmem:[%s352 + $0x88] sm:$0x3] %v1499
        %s1518 = sand.u32 %s90, 1
        %s1519 = sand.u32 %s90, 1
        %s1520 = smul.addr %s1519, 144
        %s1521 = scalar_lea.vmem [#allocation3], %s1520
        // Predicated region
        $region59: #{net_without_last.2} parent=53 // pred_check
          %p1522 = pneg %p100
        $region60: #{net_without_last.2} parent=53 // pred_check_branch
          %1524 = sbr.rel (%p1522) target = $region62
        $region61: #{net_without_last.2} parent=53 // pred_region
          %s1525 = smul.u32 9, %s14
          %s1526 = smul.addr %s1525, 8
          %s1527 = scalar_lea.vmem %s3, %s1526
          // Predicated region
          $region63: #{net_without_last.2} parent=61 // pred_check
            _
          $region64: #{net_without_last.2} parent=61 // pred_check_branch
            %1529 = sbr.rel (0) target = $region66
          $region65: #{net_without_last.2} parent=61 // pred_region
            // Predicated region
            $region67: #{net_without_last.2} parent=65 // pred_check
              _
            $region68: #{net_without_last.2} parent=65 // pred_check_branch
              %1531 = sbr.rel (0) target = $region70
            $region69: #{net_without_last.2} parent=65 // pred_region
              loop: start=0, step=1, limit=1
              $region71: #{net_without_last.2} parent=69 // loop_pre_header
                _
              $region72: #{net_without_last.2} parent=69 // loop_header
                %s1533 = sphi 0, %s1537
                %p1534 = scmp.ge.s32.totalorder %s1533, 1
                %s1538 = sphi %s1521, %s1521
                %s1539 = sphi %s1527, %s1527
              $region73: #{net_without_last.2} parent=69 // loop_header_branch
                %1536 = sbr.rel (%p1534) target = $region77
              $region74: #{net_without_last.2} parent=69 // loop_body
                %v1540 = vld [vmem:[%s1538] sm:$0xff]
                %1541 = vst [vmem:[%s1539] sm:$0xff] %v1540
                %v1542 = vld [vmem:[%s1538 + $0x8] sm:$0xff]
                %1543 = vst [vmem:[%s1539 + $0x8] sm:$0xff] %v1542
                %v1544 = vld [vmem:[%s1538 + $0x10] sm:$0xff]
                %1545 = vst [vmem:[%s1539 + $0x10] sm:$0xff] %v1544
                %v1546 = vld [vmem:[%s1538 + $0x18] sm:$0xff]
                %1547 = vst [vmem:[%s1539 + $0x18] sm:$0xff] %v1546
                %v1548 = vld [vmem:[%s1538 + $0x20] sm:$0xff]
                %1549 = vst [vmem:[%s1539 + $0x20] sm:$0xff] %v1548
                %v1550 = vld [vmem:[%s1538 + $0x28] sm:$0xff]
                %1551 = vst [vmem:[%s1539 + $0x28] sm:$0xff] %v1550
                %v1552 = vld [vmem:[%s1538 + $0x30] sm:$0xff]
                %1553 = vst [vmem:[%s1539 + $0x30] sm:$0xff] %v1552
                %v1554 = vld [vmem:[%s1538 + $0x38] sm:$0xff]
                %1555 = vst [vmem:[%s1539 + $0x38] sm:$0xff] %v1554
                %v1556 = vld [vmem:[%s1538 + $0x40] sm:$0xff]
                %1557 = vst [vmem:[%s1539 + $0x40] sm:$0xff] %v1556
                %v1558 = vld [vmem:[%s1538 + $0x48] sm:$0xff]
                %1559 = vst [vmem:[%s1539 + $0x90] sm:$0xff] %v1558
                %v1560 = vld [vmem:[%s1538 + $0x50] sm:$0xff]
                %1561 = vst [vmem:[%s1539 + $0x98] sm:$0xff] %v1560
                %v1562 = vld [vmem:[%s1538 + $0x58] sm:$0xff]
                %1563 = vst [vmem:[%s1539 + $0xa0] sm:$0xff] %v1562
                %v1564 = vld [vmem:[%s1538 + $0x60] sm:$0xff]
                %1565 = vst [vmem:[%s1539 + $0xa8] sm:$0xff] %v1564
                %v1566 = vld [vmem:[%s1538 + $0x68] sm:$0xff]
                %1567 = vst [vmem:[%s1539 + $0xb0] sm:$0xff] %v1566
                %v1568 = vld [vmem:[%s1538 + $0x70] sm:$0xff]
                %1569 = vst [vmem:[%s1539 + $0xb8] sm:$0xff] %v1568
                %v1570 = vld [vmem:[%s1538 + $0x78] sm:$0xff]
                %1571 = vst [vmem:[%s1539 + $0xc0] sm:$0xff] %v1570
                %v1572 = vld [vmem:[%s1538 + $0x80] sm:$0xff]
                %1573 = vst [vmem:[%s1539 + $0xc8] sm:$0xff] %v1572
                %v1574 = vld [vmem:[%s1538 + $0x88] sm:$0xff]
                %1575 = vst [vmem:[%s1539 + $0xd0] sm:$0xff] %v1574
              $region75: #{net_without_last.2} parent=69 // loop_footer
                %s1537 = sadd.s32 1, %s1533
              $region76: #{net_without_last.2} parent=69 // loop_footer_branch
                %1532 = sbr.rel target = $region72
              $region77: #{net_without_last.2} parent=69 // loop_exit
                _
            $region70: #{net_without_last.2} parent=65 // pred_fallthru
              _
            // Predicated region
            $region78: #{net_without_last.2} parent=65 // pred_check
              _
            $region79: #{net_without_last.2} parent=65 // pred_check_branch
              %1577 = sbr.rel target = $region81
            $region80: #{net_without_last.2} parent=65 // pred_region
              _
            $region81: #{net_without_last.2} parent=65 // pred_fallthru
              _
          $region66: #{net_without_last.2} parent=61 // pred_fallthru
            _
          %1578 = vnop
        $region62: #{net_without_last.2} parent=53 // pred_fallthru
          _
      $region54: #{net_without_last.2} parent=5 // pred_fallthru
        _
      %p1579 = scmp.le.s32.totalorder 2, %s9
      // Predicated region
      $region82: #{net_without_last.2} parent=5 // pred_check
        %p1580 = pneg %p1579
      $region83: #{net_without_last.2} parent=5 // pred_check_branch
        %1582 = sbr.rel (%p1580) target = $region85
      $region84: #{net_without_last.2} parent=5 // pred_region
        %s1583 = ssub.s32 %s9, 2
        // Predicated region
        $region86: #{net_without_last.2} parent=84 // pred_check
          %p1584 = pneg %p106
        $region87: #{net_without_last.2} parent=84 // pred_check_branch
          %1586 = sbr.rel (%p1584) target = $region89
        $region88: #{net_without_last.2} parent=84 // pred_region
          %s1587 = sand.u32 %s91, 1
          %s1588 = sand.u32 %s91, 1
          %s1589 = smul.addr %s1588, 144
          %s1590 = scalar_lea.vmem [#allocation3], %s1589
        $region89: #{net_without_last.2} parent=84 // pred_fallthru
          _
      $region85: #{net_without_last.2} parent=5 // pred_fallthru
        _
    $region6: #{net_without_last.2} parent=1 // loop_footer
      %s13 = sadd.s32 1, %s9
    $region7: #{net_without_last.2} parent=1 // loop_footer_branch
      %8 = sbr.rel target = $region3
    $region8: #{net_without_last.2} parent=1 // loop_exit
      _

// kernel: net_without_last.3
$region0: #{net_without_last.3}
  #allocation0 [shape = 'u32[]', space=smem, size = 0x4, offset = 0x4, fixed_abs, tag = 'smem constant byte address 0x4 - core index']
  #allocation1 [shape = 'u32[72,128]{1,0:T(1,128)}', space=vmem, size = 0x9000, scoped, tag = 'internal scratch']
  %s0 = inlined_call_operand.vmem [shape: bf16[4,256,250], index: 0, kind: input, shape index: {}]
  %s1 = inlined_call_operand.vmem [shape: bf16[250,20], index: 1, kind: input, shape index: {}]
  %s2 = inlined_call_operand.vmem [shape: f32[1,20], index: 2, kind: input, shape index: {}]
  %s3 = inlined_call_operand.vmem [shape: bf16[16,20,50], index: 3, kind: input, shape index: {}]
  %s4 = inlined_call_operand.vmem [shape: f32[1,50], index: 4, kind: input, shape index: {}]
  %s5 = inlined_call_operand.hbm [shape: f32[16,50], index: 5, kind: output, shape index: {}]
  %s6 = sld [smem:[#allocation0]]
  $region91: #{net_without_last.3} parent=0
    _
  %s8 = ssub.s32 1, %s6
  %s9 = scalar_select 0, %s8, %s6
  $region1: #{net_without_last.3} parent=0
    #allocation2 [shape = 'u8[524288]{0}', space=vmem, size = 0x80000, scoped, tag = 'input window, operand 0']
    #allocation3 [shape = 'u8[8192]{0}', space=vmem, size = 0x2000, scoped, tag = 'output window, operand 0']
    #allocation4 [shape = 's32[2]{0}', space=sflag, size = 0x8, scoped, tag = 'scoped memory for net_without_last.3']
    %10 = vsyncpa [#allocation4], 0
    %s11 = scalar_lea.sflag [#allocation4], 1
    %12 = vsyncpa %s11, 0
    loop: start=0, step=1, limit=4
    $region2: #{net_without_last.3} parent=1 // loop_pre_header
      _
    $region3: #{net_without_last.3} parent=1 // loop_header
      %s14 = sphi 0, %s18
      %p15 = scmp.ge.s32.totalorder %s14, 4
      %s24 = sphi 0, %s26
      %s27 = sphi 0, %s24
      %s28 = sphi 0, %s27
      %s44 = sphi 0, %s28
      %s48 = sphi 0, %s48
      %s50 = sphi 0, %s48
      %s51 = sphi 0, %s50
      %s65 = sphi 0, %s51
      %s69 = sphi 0, %s69
      %s71 = sphi 0, %s69
      %s72 = sphi 0, %s71
      %s86 = sphi 0, %s72
      %s90 = sphi 0, %s90
      %s92 = sphi 0, %s90
      %s93 = sphi 0, %s92
      %s107 = sphi 0, %s93
      %s111 = sphi 0, %s111
      %s113 = sphi 0, %s111
      %s114 = sphi 0, %s113
      %s128 = sphi 0, %s114
      %s134 = sphi 0, %s136
      %s137 = sphi 0, %s134
      %s138 = sphi 0, %s137
      %s154 = sphi 0, %s138
    $region4: #{net_without_last.3} parent=1 // loop_header_branch
      %17 = sbr.rel (%p15) target = $region8
    $region5: #{net_without_last.3} parent=1 // loop_body
      %s19 = ssub.s32 %s14, 1
      %s20 = ssub.s32 %s14, 2
      %s21 = sadd.s32 %s14, 1
      %s22 = ssub.s32 %s14, %s21
      %p23 = scmp.eq.s32.totalorder %s22, 0
      %s25 = sadd.s32 %s24, 1
      %s26 = scalar_select %p23, %s24, %s25
      %p29 = pneg %p23
      %p30 = scmp.eq.s32.totalorder %s14, 1
      %p31 = por %p29, %p30
      %p32 = scmp.ne.s32.totalorder %s24, %s27
      %p33 = scmp.eq.s32.totalorder %s14, 0
      %p34 = por %p32, %p33
      %p35 = scmp.ne.s32.totalorder %s24, %s27
      %p36 = scmp.eq.s32.totalorder %s19, 1
      %p37 = por %p35, %p36
      %p38 = scmp.ne.s32.totalorder %s27, %s28
      %p39 = scmp.eq.s32.totalorder %s19, 0
      %p40 = por %p38, %p39
      %p41 = scmp.ne.s32.totalorder %s27, %s28
      %p42 = scmp.eq.s32.totalorder %s20, 1
      %p43 = por %p41, %p42
      %p45 = scmp.ne.s32.totalorder %s28, %s44
      %p46 = scmp.eq.s32.totalorder %s20, 0
      %p47 = por %p45, %p46
      %s49 = sadd.s32 %s48, 1
      %p52 = scmp.eq.s32.totalorder %s14, 1
      %p53 = scmp.ne.s32.totalorder %s48, %s50
      %p54 = scmp.eq.s32.totalorder %s14, 0
      %p55 = por %p53, %p54
      %p56 = scmp.ne.s32.totalorder %s48, %s50
      %p57 = scmp.eq.s32.totalorder %s19, 1
      %p58 = por %p56, %p57
      %p59 = scmp.ne.s32.totalorder %s50, %s51
      %p60 = scmp.eq.s32.totalorder %s19, 0
      %p61 = por %p59, %p60
      %p62 = scmp.ne.s32.totalorder %s50, %s51
      %p63 = scmp.eq.s32.totalorder %s20, 1
      %p64 = por %p62, %p63
      %p66 = scmp.ne.s32.totalorder %s51, %s65
      %p67 = scmp.eq.s32.totalorder %s20, 0
      %p68 = por %p66, %p67
      %s70 = sadd.s32 %s69, 1
      %p73 = scmp.eq.s32.totalorder %s14, 1
      %p74 = scmp.ne.s32.totalorder %s69, %s71
      %p75 = scmp.eq.s32.totalorder %s14, 0
      %p76 = por %p74, %p75
      %p77 = scmp.ne.s32.totalorder %s69, %s71
      %p78 = scmp.eq.s32.totalorder %s19, 1
      %p79 = por %p77, %p78
      %p80 = scmp.ne.s32.totalorder %s71, %s72
      %p81 = scmp.eq.s32.totalorder %s19, 0
      %p82 = por %p80, %p81
      %p83 = scmp.ne.s32.totalorder %s71, %s72
      %p84 = scmp.eq.s32.totalorder %s20, 1
      %p85 = por %p83, %p84
      %p87 = scmp.ne.s32.totalorder %s72, %s86
      %p88 = scmp.eq.s32.totalorder %s20, 0
      %p89 = por %p87, %p88
      %s91 = sadd.s32 %s90, 1
      %p94 = scmp.eq.s32.totalorder %s14, 1
      %p95 = scmp.ne.s32.totalorder %s90, %s92
      %p96 = scmp.eq.s32.totalorder %s14, 0
      %p97 = por %p95, %p96
      %p98 = scmp.ne.s32.totalorder %s90, %s92
      %p99 = scmp.eq.s32.totalorder %s19, 1
      %p100 = por %p98, %p99
      %p101 = scmp.ne.s32.totalorder %s92, %s93
      %p102 = scmp.eq.s32.totalorder %s19, 0
      %p103 = por %p101, %p102
      %p104 = scmp.ne.s32.totalorder %s92, %s93
      %p105 = scmp.eq.s32.totalorder %s20, 1
      %p106 = por %p104, %p105
      %p108 = scmp.ne.s32.totalorder %s93, %s107
      %p109 = scmp.eq.s32.totalorder %s20, 0
      %p110 = por %p108, %p109
      %s112 = sadd.s32 %s111, 1
      %p115 = scmp.eq.s32.totalorder %s14, 1
      %p116 = scmp.ne.s32.totalorder %s111, %s113
      %p117 = scmp.eq.s32.totalorder %s14, 0
      %p118 = por %p116, %p117
      %p119 = scmp.ne.s32.totalorder %s111, %s113
      %p120 = scmp.eq.s32.totalorder %s19, 1
      %p121 = por %p119, %p120
      %p122 = scmp.ne.s32.totalorder %s113, %s114
      %p123 = scmp.eq.s32.totalorder %s19, 0
      %p124 = por %p122, %p123
      %p125 = scmp.ne.s32.totalorder %s113, %s114
      %p126 = scmp.eq.s32.totalorder %s20, 1
      %p127 = por %p125, %p126
      %p129 = scmp.ne.s32.totalorder %s114, %s128
      %p130 = scmp.eq.s32.totalorder %s20, 0
      %p131 = por %p129, %p130
      %s132 = ssub.s32 %s14, %s21
      %p133 = scmp.eq.s32.totalorder %s132, 0
      %s135 = sadd.s32 %s134, 1
      %s136 = scalar_select %p133, %s134, %s135
      %p139 = pneg %p133
      %p140 = scmp.eq.s32.totalorder %s14, 1
      %p141 = por %p139, %p140
      %p142 = scmp.ne.s32.totalorder %s134, %s137
      %p143 = scmp.eq.s32.totalorder %s14, 0
      %p144 = por %p142, %p143
      %p145 = scmp.ne.s32.totalorder %s134, %s137
      %p146 = scmp.eq.s32.totalorder %s19, 1
      %p147 = por %p145, %p146
      %p148 = scmp.ne.s32.totalorder %s137, %s138
      %p149 = scmp.eq.s32.totalorder %s19, 0
      %p150 = por %p148, %p149
      %p151 = scmp.ne.s32.totalorder %s137, %s138
      %p152 = scmp.eq.s32.totalorder %s20, 1
      %p153 = por %p151, %p152
      %p155 = scmp.ne.s32.totalorder %s138, %s154
      %p156 = scmp.eq.s32.totalorder %s20, 0
      %p157 = por %p155, %p156
      %p158 = scmp.le.s32.totalorder 1, %s14
      %p159 = scmp.lt.s32.totalorder %s14, 3
      %p160 = pnand %p158, %p159
      %p161 = pneg %p160
      // Predicated region
      $region9: #{net_without_last.3} parent=5 // pred_check
        _
      $region10: #{net_without_last.3} parent=5 // pred_check_branch
        %163 = sbr.rel (%p160) target = $region12
      $region11: #{net_without_last.3} parent=5 // pred_region
        %s164 = ssub.s32 %s14, 1
        // Predicated region
        $region13: #{net_without_last.3} parent=11 // pred_check
          %p165 = pneg %p61
        $region14: #{net_without_last.3} parent=11 // pred_check_branch
          %167 = sbr.rel (%p165) target = $region16
        $region15: #{net_without_last.3} parent=11 // pred_region
          _
        $region16: #{net_without_last.3} parent=11 // pred_fallthru
          _
        // Predicated region
        $region17: #{net_without_last.3} parent=11 // pred_check
          %p168 = pneg %p82
        $region18: #{net_without_last.3} parent=11 // pred_check_branch
          %170 = sbr.rel (%p168) target = $region20
        $region19: #{net_without_last.3} parent=11 // pred_region
          _
        $region20: #{net_without_last.3} parent=11 // pred_fallthru
          _
        // Predicated region
        $region21: #{net_without_last.3} parent=11 // pred_check
          %p171 = pneg %p103
        $region22: #{net_without_last.3} parent=11 // pred_check_branch
          %173 = sbr.rel (%p171) target = $region24
        $region23: #{net_without_last.3} parent=11 // pred_region
          _
        $region24: #{net_without_last.3} parent=11 // pred_fallthru
          _
        // Predicated region
        $region25: #{net_without_last.3} parent=11 // pred_check
          %p174 = pneg %p124
        $region26: #{net_without_last.3} parent=11 // pred_check_branch
          %176 = sbr.rel (%p174) target = $region28
        $region27: #{net_without_last.3} parent=11 // pred_region
          _
        $region28: #{net_without_last.3} parent=11 // pred_fallthru
          _
      $region12: #{net_without_last.3} parent=5 // pred_fallthru
        _
      %p177 = scmp.lt.s32.totalorder %s14, 2
      // Predicated region
      $region29: #{net_without_last.3} parent=5 // pred_check
        %p178 = pneg %p177
      $region30: #{net_without_last.3} parent=5 // pred_check_branch
        %180 = sbr.rel (%p178) target = $region32
      $region31: #{net_without_last.3} parent=5 // pred_region
        // Predicated region
        $region33: #{net_without_last.3} parent=31 // pred_check
          %p181 = pneg %p34
        $region34: #{net_without_last.3} parent=31 // pred_check_branch
          %183 = sbr.rel (%p181) target = $region36
        $region35: #{net_without_last.3} parent=31 // pred_region
          %s184 = sand.u32 %s24, 1
          %s185 = sand.u32 %s24, 1
          %s186 = smul.addr %s185, 512
          %s187 = scalar_lea.vmem [#allocation2], %s186
          %s188 = smul.u32 16, %s14
          %s189 = smul.addr %s188, 2
          %s190 = smul.addr %s189, 4
          %s191 = scalar_lea.vmem %s0, %s190
          // Predicated region
          $region37: #{net_without_last.3} parent=35 // pred_check
            _
          $region38: #{net_without_last.3} parent=35 // pred_check_branch
            %193 = sbr.rel (0) target = $region40
          $region39: #{net_without_last.3} parent=35 // pred_region
            // Predicated region
            $region41: #{net_without_last.3} parent=39 // pred_check
              _
            $region42: #{net_without_last.3} parent=39 // pred_check_branch
              %195 = sbr.rel (0) target = $region44
            $region43: #{net_without_last.3} parent=39 // pred_region
              // Predicated region
              $region56: #{net_without_last.3} parent=43 // pred_check
                _
              $region57: #{net_without_last.3} parent=43 // pred_check_branch
                %337 = sbr.rel (0) target = $region59
              $region58: #{net_without_last.3} parent=43 // pred_region
                loop: start=0, step=1, limit=1
                $region60: #{net_without_last.3} parent=58 // loop_pre_header
                  _
                $region61: #{net_without_last.3} parent=58 // loop_header
                  %s339 = sphi 0, %s343
                  %p340 = scmp.ge.s32.totalorder %s339, 1
                  %s344 = sphi %s191, %s191
                  %s345 = sphi %s187, %s187
                $region62: #{net_without_last.3} parent=58 // loop_header_branch
                  %342 = sbr.rel (%p340) target = $region66
                $region63: #{net_without_last.3} parent=58 // loop_body
                  %v346 = vld [vmem:[%s344] sm:$0xff]
                  %347 = vst [vmem:[%s345] sm:$0xff] %v346
                  %v348 = vld [vmem:[%s344 + $0x8] sm:$0xff]
                  %349 = vst [vmem:[%s345 + $0x8] sm:$0xff] %v348
                  %v350 = vld [vmem:[%s344 + $0x10] sm:$0xff]
                  %351 = vst [vmem:[%s345 + $0x10] sm:$0xff] %v350
                  %v352 = vld [vmem:[%s344 + $0x18] sm:$0xff]
                  %353 = vst [vmem:[%s345 + $0x18] sm:$0xff] %v352
                  %v354 = vld [vmem:[%s344 + $0x20] sm:$0xff]
                  %355 = vst [vmem:[%s345 + $0x20] sm:$0xff] %v354
                  %v356 = vld [vmem:[%s344 + $0x28] sm:$0xff]
                  %357 = vst [vmem:[%s345 + $0x28] sm:$0xff] %v356
                  %v358 = vld [vmem:[%s344 + $0x30] sm:$0xff]
                  %359 = vst [vmem:[%s345 + $0x30] sm:$0xff] %v358
                  %v360 = vld [vmem:[%s344 + $0x38] sm:$0xff]
                  %361 = vst [vmem:[%s345 + $0x38] sm:$0xff] %v360
                  %v362 = vld [vmem:[%s344 + $0x40] sm:$0xff]
                  %363 = vst [vmem:[%s345 + $0x40] sm:$0xff] %v362
                  %v364 = vld [vmem:[%s344 + $0x48] sm:$0xff]
                  %365 = vst [vmem:[%s345 + $0x48] sm:$0xff] %v364
                  %v366 = vld [vmem:[%s344 + $0x50] sm:$0xff]
                  %367 = vst [vmem:[%s345 + $0x50] sm:$0xff] %v366
                  %v368 = vld [vmem:[%s344 + $0x58] sm:$0xff]
                  %369 = vst [vmem:[%s345 + $0x58] sm:$0xff] %v368
                  %v370 = vld [vmem:[%s344 + $0x60] sm:$0xff]
                  %371 = vst [vmem:[%s345 + $0x60] sm:$0xff] %v370
                  %v372 = vld [vmem:[%s344 + $0x68] sm:$0xff]
                  %373 = vst [vmem:[%s345 + $0x68] sm:$0xff] %v372
                  %v374 = vld [vmem:[%s344 + $0x70] sm:$0xff]
                  %375 = vst [vmem:[%s345 + $0x70] sm:$0xff] %v374
                  %v376 = vld [vmem:[%s344 + $0x78] sm:$0xff]
                  %377 = vst [vmem:[%s345 + $0x78] sm:$0xff] %v376
                  %v378 = vld [vmem:[%s344 + $0x100] sm:$0xff]
                  %379 = vst [vmem:[%s345 + $0x80] sm:$0xff] %v378
                  %v380 = vld [vmem:[%s344 + $0x108] sm:$0xff]
                  %381 = vst [vmem:[%s345 + $0x88] sm:$0xff] %v380
                  %v382 = vld [vmem:[%s344 + $0x110] sm:$0xff]
                  %383 = vst [vmem:[%s345 + $0x90] sm:$0xff] %v382
                  %v384 = vld [vmem:[%s344 + $0x118] sm:$0xff]
                  %385 = vst [vmem:[%s345 + $0x98] sm:$0xff] %v384
                  %v386 = vld [vmem:[%s344 + $0x120] sm:$0xff]
                  %387 = vst [vmem:[%s345 + $0xa0] sm:$0xff] %v386
                  %v388 = vld [vmem:[%s344 + $0x128] sm:$0xff]
                  %389 = vst [vmem:[%s345 + $0xa8] sm:$0xff] %v388
                  %v390 = vld [vmem:[%s344 + $0x130] sm:$0xff]
                  %391 = vst [vmem:[%s345 + $0xb0] sm:$0xff] %v390
                  %v392 = vld [vmem:[%s344 + $0x138] sm:$0xff]
                  %393 = vst [vmem:[%s345 + $0xb8] sm:$0xff] %v392
                  %v394 = vld [vmem:[%s344 + $0x140] sm:$0xff]
                  %395 = vst [vmem:[%s345 + $0xc0] sm:$0xff] %v394
                  %v396 = vld [vmem:[%s344 + $0x148] sm:$0xff]
                  %397 = vst [vmem:[%s345 + $0xc8] sm:$0xff] %v396
                  %v398 = vld [vmem:[%s344 + $0x150] sm:$0xff]
                  %399 = vst [vmem:[%s345 + $0xd0] sm:$0xff] %v398
                  %v400 = vld [vmem:[%s344 + $0x158] sm:$0xff]
                  %401 = vst [vmem:[%s345 + $0xd8] sm:$0xff] %v400
                  %v402 = vld [vmem:[%s344 + $0x160] sm:$0xff]
                  %403 = vst [vmem:[%s345 + $0xe0] sm:$0xff] %v402
                  %v404 = vld [vmem:[%s344 + $0x168] sm:$0xff]
                  %405 = vst [vmem:[%s345 + $0xe8] sm:$0xff] %v404
                  %v406 = vld [vmem:[%s344 + $0x170] sm:$0xff]
                  %407 = vst [vmem:[%s345 + $0xf0] sm:$0xff] %v406
                  %v408 = vld [vmem:[%s344 + $0x178] sm:$0xff]
                  %409 = vst [vmem:[%s345 + $0xf8] sm:$0xff] %v408
                  %v410 = vld [vmem:[%s344 + $0x200] sm:$0xff]
                  %411 = vst [vmem:[%s345 + $0x100] sm:$0xff] %v410
                  %v412 = vld [vmem:[%s344 + $0x208] sm:$0xff]
                  %413 = vst [vmem:[%s345 + $0x108] sm:$0xff] %v412
                  %v414 = vld [vmem:[%s344 + $0x210] sm:$0xff]
                  %415 = vst [vmem:[%s345 + $0x110] sm:$0xff] %v414
                  %v416 = vld [vmem:[%s344 + $0x218] sm:$0xff]
                  %417 = vst [vmem:[%s345 + $0x118] sm:$0xff] %v416
                  %v418 = vld [vmem:[%s344 + $0x220] sm:$0xff]
                  %419 = vst [vmem:[%s345 + $0x120] sm:$0xff] %v418
                  %v420 = vld [vmem:[%s344 + $0x228] sm:$0xff]
                  %421 = vst [vmem:[%s345 + $0x128] sm:$0xff] %v420
                  %v422 = vld [vmem:[%s344 + $0x230] sm:$0xff]
                  %423 = vst [vmem:[%s345 + $0x130] sm:$0xff] %v422
                  %v424 = vld [vmem:[%s344 + $0x238] sm:$0xff]
                  %425 = vst [vmem:[%s345 + $0x138] sm:$0xff] %v424
                  %v426 = vld [vmem:[%s344 + $0x240] sm:$0xff]
                  %427 = vst [vmem:[%s345 + $0x140] sm:$0xff] %v426
                  %v428 = vld [vmem:[%s344 + $0x248] sm:$0xff]
                  %429 = vst [vmem:[%s345 + $0x148] sm:$0xff] %v428
                  %v430 = vld [vmem:[%s344 + $0x250] sm:$0xff]
                  %431 = vst [vmem:[%s345 + $0x150] sm:$0xff] %v430
                  %v432 = vld [vmem:[%s344 + $0x258] sm:$0xff]
                  %433 = vst [vmem:[%s345 + $0x158] sm:$0xff] %v432
                  %v434 = vld [vmem:[%s344 + $0x260] sm:$0xff]
                  %435 = vst [vmem:[%s345 + $0x160] sm:$0xff] %v434
                  %v436 = vld [vmem:[%s344 + $0x268] sm:$0xff]
                  %437 = vst [vmem:[%s345 + $0x168] sm:$0xff] %v436
                  %v438 = vld [vmem:[%s344 + $0x270] sm:$0xff]
                  %439 = vst [vmem:[%s345 + $0x170] sm:$0xff] %v438
                  %v440 = vld [vmem:[%s344 + $0x278] sm:$0xff]
                  %441 = vst [vmem:[%s345 + $0x178] sm:$0xff] %v440
                  %v442 = vld [vmem:[%s344 + $0x300] sm:$0xff]
                  %443 = vst [vmem:[%s345 + $0x180] sm:$0xff] %v442
                  %v444 = vld [vmem:[%s344 + $0x308] sm:$0xff]
                  %445 = vst [vmem:[%s345 + $0x188] sm:$0xff] %v444
                  %v446 = vld [vmem:[%s344 + $0x310] sm:$0xff]
                  %447 = vst [vmem:[%s345 + $0x190] sm:$0xff] %v446
                  %v448 = vld [vmem:[%s344 + $0x318] sm:$0xff]
                  %449 = vst [vmem:[%s345 + $0x198] sm:$0xff] %v448
                  %v450 = vld [vmem:[%s344 + $0x320] sm:$0xff]
                  %451 = vst [vmem:[%s345 + $0x1a0] sm:$0xff] %v450
                  %v452 = vld [vmem:[%s344 + $0x328] sm:$0xff]
                  %453 = vst [vmem:[%s345 + $0x1a8] sm:$0xff] %v452
                  %v454 = vld [vmem:[%s344 + $0x330] sm:$0xff]
                  %455 = vst [vmem:[%s345 + $0x1b0] sm:$0xff] %v454
                  %v456 = vld [vmem:[%s344 + $0x338] sm:$0xff]
                  %457 = vst [vmem:[%s345 + $0x1b8] sm:$0xff] %v456
                  %v458 = vld [vmem:[%s344 + $0x340] sm:$0xff]
                  %459 = vst [vmem:[%s345 + $0x1c0] sm:$0xff] %v458
                  %v460 = vld [vmem:[%s344 + $0x348] sm:$0xff]
                  %461 = vst [vmem:[%s345 + $0x1c8] sm:$0xff] %v460
                  %v462 = vld [vmem:[%s344 + $0x350] sm:$0xff]
                  %463 = vst [vmem:[%s345 + $0x1d0] sm:$0xff] %v462
                  %v464 = vld [vmem:[%s344 + $0x358] sm:$0xff]
                  %465 = vst [vmem:[%s345 + $0x1d8] sm:$0xff] %v464
                  %v466 = vld [vmem:[%s344 + $0x360] sm:$0xff]
                  %467 = vst [vmem:[%s345 + $0x1e0] sm:$0xff] %v466
                  %v468 = vld [vmem:[%s344 + $0x368] sm:$0xff]
                  %469 = vst [vmem:[%s345 + $0x1e8] sm:$0xff] %v468
                  %v470 = vld [vmem:[%s344 + $0x370] sm:$0xff]
                  %471 = vst [vmem:[%s345 + $0x1f0] sm:$0xff] %v470
                  %v472 = vld [vmem:[%s344 + $0x378] sm:$0xff]
                  %473 = vst [vmem:[%s345 + $0x1f8] sm:$0xff] %v472
                $region64: #{net_without_last.3} parent=58 // loop_footer
                  %s343 = sadd.s32 1, %s339
                $region65: #{net_without_last.3} parent=58 // loop_footer_branch
                  %338 = sbr.rel target = $region61
                $region66: #{net_without_last.3} parent=58 // loop_exit
                  _
              $region59: #{net_without_last.3} parent=43 // pred_fallthru
                _
              // Predicated region
              $region67: #{net_without_last.3} parent=43 // pred_check
                _
              $region68: #{net_without_last.3} parent=43 // pred_check_branch
                %475 = sbr.rel target = $region70
              $region69: #{net_without_last.3} parent=43 // pred_region
                _
              $region70: #{net_without_last.3} parent=43 // pred_fallthru
                _
            $region44: #{net_without_last.3} parent=39 // pred_fallthru
              _
            // Predicated region
            $region45: #{net_without_last.3} parent=39 // pred_check
              _
            $region46: #{net_without_last.3} parent=39 // pred_check_branch
              %197 = sbr.rel target = $region48
            $region47: #{net_without_last.3} parent=39 // pred_region
              %s199 = ssub.s32 256, 1
              loop: start=0, step=1, limit=1
              $region49: #{net_without_last.3} parent=47 // loop_pre_header
                _
              $region50: #{net_without_last.3} parent=47 // loop_header
                %s201 = sphi 0, %s205
                %p202 = scmp.ge.s32.totalorder %s201, 1
                %s206 = sphi %s191, %s191
                %s207 = sphi %s187, %s187
              $region51: #{net_without_last.3} parent=47 // loop_header_branch
                %204 = sbr.rel (%p202) target = $region55
              $region52: #{net_without_last.3} parent=47 // loop_body
                %v208 = vld [vmem:[%s206] sm:%s199]
                %209 = vst [vmem:[%s207] sm:%s199] %v208
                %v210 = vld [vmem:[%s206 + $0x8] sm:%s199]
                %211 = vst [vmem:[%s207 + $0x8] sm:%s199] %v210
                %v212 = vld [vmem:[%s206 + $0x10] sm:%s199]
                %213 = vst [vmem:[%s207 + $0x10] sm:%s199] %v212
                %v214 = vld [vmem:[%s206 + $0x18] sm:%s199]
                %215 = vst [vmem:[%s207 + $0x18] sm:%s199] %v214
                %v216 = vld [vmem:[%s206 + $0x20] sm:%s199]
                %217 = vst [vmem:[%s207 + $0x20] sm:%s199] %v216
                %v218 = vld [vmem:[%s206 + $0x28] sm:%s199]
                %219 = vst [vmem:[%s207 + $0x28] sm:%s199] %v218
                %v220 = vld [vmem:[%s206 + $0x30] sm:%s199]
                %221 = vst [vmem:[%s207 + $0x30] sm:%s199] %v220
                %v222 = vld [vmem:[%s206 + $0x38] sm:%s199]
                %223 = vst [vmem:[%s207 + $0x38] sm:%s199] %v222
                %v224 = vld [vmem:[%s206 + $0x40] sm:%s199]
                %225 = vst [vmem:[%s207 + $0x40] sm:%s199] %v224
                %v226 = vld [vmem:[%s206 + $0x48] sm:%s199]
                %227 = vst [vmem:[%s207 + $0x48] sm:%s199] %v226
                %v228 = vld [vmem:[%s206 + $0x50] sm:%s199]
                %229 = vst [vmem:[%s207 + $0x50] sm:%s199] %v228
                %v230 = vld [vmem:[%s206 + $0x58] sm:%s199]
                %231 = vst [vmem:[%s207 + $0x58] sm:%s199] %v230
                %v232 = vld [vmem:[%s206 + $0x60] sm:%s199]
                %233 = vst [vmem:[%s207 + $0x60] sm:%s199] %v232
                %v234 = vld [vmem:[%s206 + $0x68] sm:%s199]
                %235 = vst [vmem:[%s207 + $0x68] sm:%s199] %v234
                %v236 = vld [vmem:[%s206 + $0x70] sm:%s199]
                %237 = vst [vmem:[%s207 + $0x70] sm:%s199] %v236
                %v238 = vld [vmem:[%s206 + $0x78] sm:%s199]
                %239 = vst [vmem:[%s207 + $0x78] sm:%s199] %v238
                %v240 = vld [vmem:[%s206 + $0x100] sm:%s199]
                %241 = vst [vmem:[%s207 + $0x80] sm:%s199] %v240
                %v242 = vld [vmem:[%s206 + $0x108] sm:%s199]
                %243 = vst [vmem:[%s207 + $0x88] sm:%s199] %v242
                %v244 = vld [vmem:[%s206 + $0x110] sm:%s199]
                %245 = vst [vmem:[%s207 + $0x90] sm:%s199] %v244
                %v246 = vld [vmem:[%s206 + $0x118] sm:%s199]
                %247 = vst [vmem:[%s207 + $0x98] sm:%s199] %v246
                %v248 = vld [vmem:[%s206 + $0x120] sm:%s199]
                %249 = vst [vmem:[%s207 + $0xa0] sm:%s199] %v248
                %v250 = vld [vmem:[%s206 + $0x128] sm:%s199]
                %251 = vst [vmem:[%s207 + $0xa8] sm:%s199] %v250
                %v252 = vld [vmem:[%s206 + $0x130] sm:%s199]
                %253 = vst [vmem:[%s207 + $0xb0] sm:%s199] %v252
                %v254 = vld [vmem:[%s206 + $0x138] sm:%s199]
                %255 = vst [vmem:[%s207 + $0xb8] sm:%s199] %v254
                %v256 = vld [vmem:[%s206 + $0x140] sm:%s199]
                %257 = vst [vmem:[%s207 + $0xc0] sm:%s199] %v256
                %v258 = vld [vmem:[%s206 + $0x148] sm:%s199]
                %259 = vst [vmem:[%s207 + $0xc8] sm:%s199] %v258
                %v260 = vld [vmem:[%s206 + $0x150] sm:%s199]
                %261 = vst [vmem:[%s207 + $0xd0] sm:%s199] %v260
                %v262 = vld [vmem:[%s206 + $0x158] sm:%s199]
                %263 = vst [vmem:[%s207 + $0xd8] sm:%s199] %v262
                %v264 = vld [vmem:[%s206 + $0x160] sm:%s199]
                %265 = vst [vmem:[%s207 + $0xe0] sm:%s199] %v264
                %v266 = vld [vmem:[%s206 + $0x168] sm:%s199]
                %267 = vst [vmem:[%s207 + $0xe8] sm:%s199] %v266
                %v268 = vld [vmem:[%s206 + $0x170] sm:%s199]
                %269 = vst [vmem:[%s207 + $0xf0] sm:%s199] %v268
                %v270 = vld [vmem:[%s206 + $0x178] sm:%s199]
                %271 = vst [vmem:[%s207 + $0xf8] sm:%s199] %v270
                %v272 = vld [vmem:[%s206 + $0x200] sm:%s199]
                %273 = vst [vmem:[%s207 + $0x100] sm:%s199] %v272
                %v274 = vld [vmem:[%s206 + $0x208] sm:%s199]
                %275 = vst [vmem:[%s207 + $0x108] sm:%s199] %v274
                %v276 = vld [vmem:[%s206 + $0x210] sm:%s199]
                %277 = vst [vmem:[%s207 + $0x110] sm:%s199] %v276
                %v278 = vld [vmem:[%s206 + $0x218] sm:%s199]
                %279 = vst [vmem:[%s207 + $0x118] sm:%s199] %v278
                %v280 = vld [vmem:[%s206 + $0x220] sm:%s199]
                %281 = vst [vmem:[%s207 + $0x120] sm:%s199] %v280
                %v282 = vld [vmem:[%s206 + $0x228] sm:%s199]
                %283 = vst [vmem:[%s207 + $0x128] sm:%s199] %v282
                %v284 = vld [vmem:[%s206 + $0x230] sm:%s199]
                %285 = vst [vmem:[%s207 + $0x130] sm:%s199] %v284
                %v286 = vld [vmem:[%s206 + $0x238] sm:%s199]
                %287 = vst [vmem:[%s207 + $0x138] sm:%s199] %v286
                %v288 = vld [vmem:[%s206 + $0x240] sm:%s199]
                %289 = vst [vmem:[%s207 + $0x140] sm:%s199] %v288
                %v290 = vld [vmem:[%s206 + $0x248] sm:%s199]
                %291 = vst [vmem:[%s207 + $0x148] sm:%s199] %v290
                %v292 = vld [vmem:[%s206 + $0x250] sm:%s199]
                %293 = vst [vmem:[%s207 + $0x150] sm:%s199] %v292
                %v294 = vld [vmem:[%s206 + $0x258] sm:%s199]
                %295 = vst [vmem:[%s207 + $0x158] sm:%s199] %v294
                %v296 = vld [vmem:[%s206 + $0x260] sm:%s199]
                %297 = vst [vmem:[%s207 + $0x160] sm:%s199] %v296
                %v298 = vld [vmem:[%s206 + $0x268] sm:%s199]
                %299 = vst [vmem:[%s207 + $0x168] sm:%s199] %v298
                %v300 = vld [vmem:[%s206 + $0x270] sm:%s199]
                %301 = vst [vmem:[%s207 + $0x170] sm:%s199] %v300
                %v302 = vld [vmem:[%s206 + $0x278] sm:%s199]
                %303 = vst [vmem:[%s207 + $0x178] sm:%s199] %v302
                %v304 = vld [vmem:[%s206 + $0x300] sm:%s199]
                %305 = vst [vmem:[%s207 + $0x180] sm:%s199] %v304
                %v306 = vld [vmem:[%s206 + $0x308] sm:%s199]
                %307 = vst [vmem:[%s207 + $0x188] sm:%s199] %v306
                %v308 = vld [vmem:[%s206 + $0x310] sm:%s199]
                %309 = vst [vmem:[%s207 + $0x190] sm:%s199] %v308
                %v310 = vld [vmem:[%s206 + $0x318] sm:%s199]
                %311 = vst [vmem:[%s207 + $0x198] sm:%s199] %v310
                %v312 = vld [vmem:[%s206 + $0x320] sm:%s199]
                %313 = vst [vmem:[%s207 + $0x1a0] sm:%s199] %v312
                %v314 = vld [vmem:[%s206 + $0x328] sm:%s199]
                %315 = vst [vmem:[%s207 + $0x1a8] sm:%s199] %v314
                %v316 = vld [vmem:[%s206 + $0x330] sm:%s199]
                %317 = vst [vmem:[%s207 + $0x1b0] sm:%s199] %v316
                %v318 = vld [vmem:[%s206 + $0x338] sm:%s199]
                %319 = vst [vmem:[%s207 + $0x1b8] sm:%s199] %v318
                %v320 = vld [vmem:[%s206 + $0x340] sm:%s199]
                %321 = vst [vmem:[%s207 + $0x1c0] sm:%s199] %v320
                %v322 = vld [vmem:[%s206 + $0x348] sm:%s199]
                %323 = vst [vmem:[%s207 + $0x1c8] sm:%s199] %v322
                %v324 = vld [vmem:[%s206 + $0x350] sm:%s199]
                %325 = vst [vmem:[%s207 + $0x1d0] sm:%s199] %v324
                %v326 = vld [vmem:[%s206 + $0x358] sm:%s199]
                %327 = vst [vmem:[%s207 + $0x1d8] sm:%s199] %v326
                %v328 = vld [vmem:[%s206 + $0x360] sm:%s199]
                %329 = vst [vmem:[%s207 + $0x1e0] sm:%s199] %v328
                %v330 = vld [vmem:[%s206 + $0x368] sm:%s199]
                %331 = vst [vmem:[%s207 + $0x1e8] sm:%s199] %v330
                %v332 = vld [vmem:[%s206 + $0x370] sm:%s199]
                %333 = vst [vmem:[%s207 + $0x1f0] sm:%s199] %v332
                %v334 = vld [vmem:[%s206 + $0x378] sm:%s199]
                %335 = vst [vmem:[%s207 + $0x1f8] sm:%s199] %v334
              $region53: #{net_without_last.3} parent=47 // loop_footer
                %s205 = sadd.s32 1, %s201
              $region54: #{net_without_last.3} parent=47 // loop_footer_branch
                %200 = sbr.rel target = $region50
              $region55: #{net_without_last.3} parent=47 // loop_exit
                _
            $region48: #{net_without_last.3} parent=39 // pred_fallthru
              _
          $region40: #{net_without_last.3} parent=35 // pred_fallthru
            _
          %476 = vnop
        $region36: #{net_without_last.3} parent=31 // pred_fallthru
          _
      $region32: #{net_without_last.3} parent=5 // pred_fallthru
        _
      %p477 = scmp.le.s32.totalorder 1, %s14
      %p478 = scmp.lt.s32.totalorder %s14, 3
      %p479 = pnand %p477, %p478
      %p480 = pneg %p479
      // Predicated region
      $region71: #{net_without_last.3} parent=5 // pred_check
        _
      $region72: #{net_without_last.3} parent=5 // pred_check_branch
        %482 = sbr.rel (%p479) target = $region74
      $region73: #{net_without_last.3} parent=5 // pred_region
        %s483 = ssub.s32 %s14, 1
        %s484 = sand.u32 %s27, 1
        %s485 = sand.u32 %s27, 1
        %s486 = smul.addr %s485, 512
        %s487 = scalar_lea.vmem [#allocation2], %s486
        // Predicated region
        $region75: #{net_without_last.3} parent=73 // pred_check
          %p488 = pneg %p40
        $region76: #{net_without_last.3} parent=73 // pred_check_branch
          %490 = sbr.rel (%p488) target = $region78
        $region77: #{net_without_last.3} parent=73 // pred_region
          _
        $region78: #{net_without_last.3} parent=73 // pred_fallthru
          _
        %s491 = sand.u32 %s27, 1
        %s492 = sand.u32 %s27, 1
        %s493 = smul.addr %s492, 512
        %s494 = scalar_lea.vmem [#allocation2], %s493
        %p495 = pneg %p40
        %p496 = pneg %p37
        %p497 = pneg %p61
        %p498 = pneg %p58
        %p499 = pneg %p82
        %p500 = pneg %p79
        %p501 = pneg %p103
        %p502 = pneg %p100
        %p503 = pneg %p124
        %p504 = pneg %p121
        %p505 = pneg %p150
        %p506 = pneg %p147
        %s507 = sand.u32 %s137, 1
        %s508 = scalar_lea.sflag [#allocation4], %s507
        %s509 = sand.u32 %s137, 1
        %s510 = smul.addr %s509, 8
        %s511 = scalar_lea.vmem [#allocation3], %s510
        %s512 = smul.u32 16, %s19
        %v514 = vld [vmem:[%s1] sm:$0xf]
        %v515 = vld [vmem:[%s1 + $0x4] sm:$0xf]
        %v516 = vld [vmem:[%s1 + $0x8] sm:$0xf]
        %v517 = vld [vmem:[%s1 + $0xc] sm:$0xf]
        %v518 = vld [vmem:[%s1 + $0x10] sm:$0xf]
        %v519 = vld [vmem:[%s1 + $0x14] sm:$0xf]
        %v520 = vld [vmem:[%s1 + $0x18] sm:$0xf]
        %v521 = vld [vmem:[%s1 + $0x1c] sm:$0xf]
        %v522 = vld [vmem:[%s1 + $0x20] sm:$0xf]
        %v523 = vld [vmem:[%s1 + $0x24] sm:$0xf]
        %v524 = vld [vmem:[%s1 + $0x28] sm:$0xf]
        %v525 = vld [vmem:[%s1 + $0x2c] sm:$0xf]
        %v526 = vld [vmem:[%s1 + $0x30] sm:$0xf]
        %v527 = vld [vmem:[%s1 + $0x34] sm:$0xf]
        %v528 = vld [vmem:[%s1 + $0x38] sm:$0xf]
        %v529 = vld [vmem:[%s1 + $0x3c] sm:$0xf]
        %v530 = vld [vmem:[%s1 + $0x40] sm:$0xf]
        %v531 = vld [vmem:[%s1 + $0x44] sm:$0xf]
        %v532 = vld [vmem:[%s1 + $0x48] sm:$0xf]
        %v533 = vld [vmem:[%s1 + $0x4c] sm:$0xf]
        %v534 = vld [vmem:[%s1 + $0x50] sm:$0xf]
        %v535 = vld [vmem:[%s1 + $0x54] sm:$0xf]
        %v536 = vld [vmem:[%s1 + $0x58] sm:$0xf]
        %v537 = vld [vmem:[%s1 + $0x5c] sm:$0xf]
        %v538 = vld [vmem:[%s1 + $0x60] sm:$0xf]
        %v539 = vld [vmem:[%s1 + $0x64] sm:$0xf]
        %v540 = vld [vmem:[%s1 + $0x68] sm:$0xf]
        %v541 = vld [vmem:[%s1 + $0x6c] sm:$0xf]
        %v542 = vld [vmem:[%s1 + $0x70] sm:$0xf]
        %v543 = vld [vmem:[%s1 + $0x74] sm:$0xf]
        %v544 = vld [vmem:[%s1 + $0x78] sm:$0xf]
        %v545 = vld [vmem:[%s1 + $0x7c] sm:$0x1]
        %v546 = vld [vmem:[%s487] sm:$0xff]
        %v547 = vld [vmem:[%s487 + $0x8] sm:$0xff]
        %v548 = vld [vmem:[%s487 + $0x10] sm:$0xff]
        %v549 = vld [vmem:[%s487 + $0x18] sm:$0xff]
        %v550 = vld [vmem:[%s487 + $0x20] sm:$0xff]
        %v551 = vld [vmem:[%s487 + $0x28] sm:$0xff]
        %v552 = vld [vmem:[%s487 + $0x30] sm:$0xff]
        %v553 = vld [vmem:[%s487 + $0x38] sm:$0xff]
        %v554 = vld [vmem:[%s487 + $0x40] sm:$0xff]
        %v555 = vld [vmem:[%s487 + $0x48] sm:$0xff]
        %v556 = vld [vmem:[%s487 + $0x50] sm:$0xff]
        %v557 = vld [vmem:[%s487 + $0x58] sm:$0xff]
        %v558 = vld [vmem:[%s487 + $0x60] sm:$0xff]
        %v559 = vld [vmem:[%s487 + $0x68] sm:$0xff]
        %v560 = vld [vmem:[%s487 + $0x70] sm:$0xff]
        %v561 = vld [vmem:[%s487 + $0x78] sm:$0xff]
        %v578 = vunpack.c.l.b16 %v546
        %v579 = vunpack.c.h.b16 %v546
        %v580 = vunpack.c.l.b16 %v547
        %v581 = vunpack.c.h.b16 %v547
        %v582 = vunpack.c.l.b16 %v548
        %v583 = vunpack.c.h.b16 %v548
        %v584 = vunpack.c.l.b16 %v549
        %v585 = vunpack.c.h.b16 %v549
        %v586 = vunpack.c.l.b16 %v550
        %v587 = vunpack.c.h.b16 %v550
        %v588 = vunpack.c.l.b16 %v551
        %v589 = vunpack.c.h.b16 %v551
        %v590 = vunpack.c.l.b16 %v552
        %v591 = vunpack.c.h.b16 %v552
        %v592 = vunpack.c.l.b16 %v553
        %v593 = vunpack.c.h.b16 %v553
        %v594 = vunpack.c.l.b16 %v554
        %v595 = vunpack.c.h.b16 %v554
        %v596 = vunpack.c.l.b16 %v555
        %v597 = vunpack.c.h.b16 %v555
        %v598 = vunpack.c.l.b16 %v556
        %v599 = vunpack.c.h.b16 %v556
        %v600 = vunpack.c.l.b16 %v557
        %v601 = vunpack.c.h.b16 %v557
        %v602 = vunpack.c.l.b16 %v558
        %v603 = vunpack.c.h.b16 %v558
        %v604 = vunpack.c.l.b16 %v559
        %v605 = vunpack.c.h.b16 %v559
        %v606 = vunpack.c.l.b16 %v560
        %v607 = vunpack.c.h.b16 %v560
        %v608 = vunpack.c.l.b16 %v561
        %v609 = vunpack.c.h.b16 %v561
        %v610 = vpack.c.b16 %v580, %v578
        %v611 = vpack.c.b16 %v581, %v579
        %v612 = vpack.c.b16 %v584, %v582
        %v613 = vpack.c.b16 %v585, %v583
        %v614 = vpack.c.b16 %v588, %v586
        %v615 = vpack.c.b16 %v589, %v587
        %v616 = vpack.c.b16 %v592, %v590
        %v617 = vpack.c.b16 %v593, %v591
        %v618 = vpack.c.b16 %v596, %v594
        %v619 = vpack.c.b16 %v597, %v595
        %v620 = vpack.c.b16 %v600, %v598
        %v621 = vpack.c.b16 %v601, %v599
        %v622 = vpack.c.b16 %v604, %v602
        %v623 = vpack.c.b16 %v605, %v603
        %v624 = vpack.c.b16 %v608, %v606
        %v625 = vpack.c.b16 %v609, %v607
        %v666 = vunpack.c.l.b16 %v514
        %v667 = vunpack.c.l.b16 %v515
        %v668 = vunpack.c.l.b16 %v516
        %v669 = vunpack.c.l.b16 %v517
        %v670 = vunpack.c.l.b16 %v518
        %v671 = vunpack.c.l.b16 %v519
        %v672 = vunpack.c.l.b16 %v520
        %v673 = vunpack.c.l.b16 %v521
        %v674 = vunpack.c.l.b16 %v522
        %v675 = vunpack.c.l.b16 %v523
        %v676 = vunpack.c.l.b16 %v524
        %v677 = vunpack.c.l.b16 %v525
        %v678 = vunpack.c.l.b16 %v526
        %v679 = vunpack.c.l.b16 %v527
        %v680 = vunpack.c.l.b16 %v528
        %v681 = vunpack.c.l.b16 %v529
        %v682 = vunpack.c.l.b16 %v530
        %v683 = vunpack.c.l.b16 %v531
        %v684 = vunpack.c.l.b16 %v532
        %v685 = vunpack.c.l.b16 %v533
        %v686 = vunpack.c.l.b16 %v534
        %v687 = vunpack.c.l.b16 %v535
        %v688 = vunpack.c.l.b16 %v536
        %v689 = vunpack.c.l.b16 %v537
        %v690 = vunpack.c.l.b16 %v538
        %v691 = vunpack.c.l.b16 %v539
        %v692 = vunpack.c.l.b16 %v540
        %v693 = vunpack.c.l.b16 %v541
        %v694 = vunpack.c.l.b16 %v542
        %v695 = vunpack.c.l.b16 %v543
        %v696 = vunpack.c.l.b16 %v544
        %v697 = vunpack.c.l.b16 %v545
        %v698 = vpack.c.b16 %v667, %v666
        %v699 = vpack.c.b16 %v669, %v668
        %v700 = vpack.c.b16 %v671, %v670
        %v701 = vpack.c.b16 %v673, %v672
        %v702 = vpack.c.b16 %v675, %v674
        %v703 = vpack.c.b16 %v677, %v676
        %v704 = vpack.c.b16 %v679, %v678
        %v705 = vpack.c.b16 %v681, %v680
        %v706 = vpack.c.b16 %v683, %v682
        %v707 = vpack.c.b16 %v685, %v684
        %v708 = vpack.c.b16 %v687, %v686
        %v709 = vpack.c.b16 %v689, %v688
        %v710 = vpack.c.b16 %v691, %v690
        %v711 = vpack.c.b16 %v693, %v692
        %v712 = vpack.c.b16 %v695, %v694
        %v713 = vpack.c.b16 %v697, %v696
        %vm729 = vcmask 998400
        %v731 = vsel %vm729, %v611, 0
        %v734 = vsel %vm729, %v613, 0
        %v737 = vsel %vm729, %v615, 0
        %v740 = vsel %vm729, %v617, 0
        %v743 = vsel %vm729, %v619, 0
        %v746 = vsel %vm729, %v621, 0
        %v749 = vsel %vm729, %v623, 0
        %v752 = vsel %vm729, %v625, 0
        %vm754 = vcmask 1044480
        %v756 = vsel %vm754, %v713, 0
        %758 = vmatpush.bf16.msra.mxu0 %v705
        %759 = vmatpush.bf16.msra.mxu0 %v704
        %760 = vmatpush.bf16.msra.mxu0 %v703
        %761 = vmatpush.bf16.msra.mxu0 %v702
        %762 = vmatpush.bf16.msra.mxu0 %v701
        %763 = vmatpush.bf16.msra.mxu0 %v700
        %764 = vmatpush.bf16.msra.mxu0 %v699
        %765 = vmatpush.bf16.msra.mxu0 %v698
        %766 = vmatmul.bf16.gmra.mxu0 %v610
        %v767 = vpop.f32.mrf.mxu0
        %v768 = vadd.f32 0.0, %v767
        %v769 = vpop.f32.mrf.mxu0
        %v770 = vadd.f32 0.0, %v769
        %771 = vmatmul.bf16.gmra.mxu0 %v612
        %v772 = vpop.f32.mrf.mxu0
        %v773 = vadd.f32 0.0, %v772
        %v774 = vpop.f32.mrf.mxu0
        %v775 = vadd.f32 0.0, %v774
        %776 = vmatmul.bf16.gmra.mxu0 %v614
        %v777 = vpop.f32.mrf.mxu0
        %v778 = vadd.f32 0.0, %v777
        %v779 = vpop.f32.mrf.mxu0
        %v780 = vadd.f32 0.0, %v779
        %781 = vmatmul.bf16.gmra.mxu0 %v616
        %v782 = vpop.f32.mrf.mxu0
        %v783 = vadd.f32 0.0, %v782
        %v784 = vpop.f32.mrf.mxu0
        %v785 = vadd.f32 0.0, %v784
        %786 = vmatmul.bf16.gmra.mxu0 %v618
        %v787 = vpop.f32.mrf.mxu0
        %v788 = vadd.f32 0.0, %v787
        %v789 = vpop.f32.mrf.mxu0
        %v790 = vadd.f32 0.0, %v789
        %791 = vmatmul.bf16.gmra.mxu0 %v620
        %v792 = vpop.f32.mrf.mxu0
        %v793 = vadd.f32 0.0, %v792
        %v794 = vpop.f32.mrf.mxu0
        %v795 = vadd.f32 0.0, %v794
        %796 = vmatmul.bf16.gmra.mxu0 %v622
        %v797 = vpop.f32.mrf.mxu0
        %v798 = vadd.f32 0.0, %v797
        %v799 = vpop.f32.mrf.mxu0
        %v800 = vadd.f32 0.0, %v799
        %801 = vmatmul.bf16.gmra.mxu0 %v624
        %v802 = vpop.f32.mrf.mxu0
        %v803 = vadd.f32 0.0, %v802
        %v804 = vpop.f32.mrf.mxu0
        %v805 = vadd.f32 0.0, %v804
        %806 = vdwg.mxu0
        %807 = vmatpush.bf16.msra.mxu0 %v756
        %808 = vmatpush.bf16.msra.mxu0 %v712
        %809 = vmatpush.bf16.msra.mxu0 %v711
        %810 = vmatpush.bf16.msra.mxu0 %v710
        %811 = vmatpush.bf16.msra.mxu0 %v709
        %812 = vmatpush.bf16.msra.mxu0 %v708
        %813 = vmatpush.bf16.msra.mxu0 %v707
        %814 = vmatpush.bf16.msra.mxu0 %v706
        %815 = vmatmul.bf16.gmra.mxu0 %v731
        %v816 = vpop.f32.mrf.mxu0
        %v817 = vadd.f32 %v768, %v816
        %v818 = vpop.f32.mrf.mxu0
        %v819 = vadd.f32 %v770, %v818
        %820 = vmatmul.bf16.gmra.mxu0 %v734
        %v821 = vpop.f32.mrf.mxu0
        %v822 = vadd.f32 %v773, %v821
        %v823 = vpop.f32.mrf.mxu0
        %v824 = vadd.f32 %v775, %v823
        %825 = vmatmul.bf16.gmra.mxu0 %v737
        %v826 = vpop.f32.mrf.mxu0
        %v827 = vadd.f32 %v778, %v826
        %v828 = vpop.f32.mrf.mxu0
        %v829 = vadd.f32 %v780, %v828
        %830 = vmatmul.bf16.gmra.mxu0 %v740
        %v831 = vpop.f32.mrf.mxu0
        %v832 = vadd.f32 %v783, %v831
        %v833 = vpop.f32.mrf.mxu0
        %v834 = vadd.f32 %v785, %v833
        %835 = vmatmul.bf16.gmra.mxu0 %v743
        %v836 = vpop.f32.mrf.mxu0
        %v837 = vadd.f32 %v788, %v836
        %v838 = vpop.f32.mrf.mxu0
        %v839 = vadd.f32 %v790, %v838
        %840 = vmatmul.bf16.gmra.mxu0 %v746
        %v841 = vpop.f32.mrf.mxu0
        %v842 = vadd.f32 %v793, %v841
        %v843 = vpop.f32.mrf.mxu0
        %v844 = vadd.f32 %v795, %v843
        %845 = vmatmul.bf16.gmra.mxu0 %v749
        %v846 = vpop.f32.mrf.mxu0
        %v847 = vadd.f32 %v798, %v846
        %v848 = vpop.f32.mrf.mxu0
        %v849 = vadd.f32 %v800, %v848
        %850 = vmatmul.bf16.gmra.mxu0 %v752
        %v851 = vpop.f32.mrf.mxu0
        %v852 = vadd.f32 %v803, %v851
        %v853 = vpop.f32.mrf.mxu0
        %v854 = vadd.f32 %v805, %v853
        %855 = vdwg.mxu0
        %s856 = scalar_lea.vmem %s487, 128 [#allocation2]
        %v857 = vld [vmem:[%s856] sm:$0xff]
        %v858 = vld [vmem:[%s856 + $0x8] sm:$0xff]
        %v859 = vld [vmem:[%s856 + $0x10] sm:$0xff]
        %v860 = vld [vmem:[%s856 + $0x18] sm:$0xff]
        %v861 = vld [vmem:[%s856 + $0x20] sm:$0xff]
        %v862 = vld [vmem:[%s856 + $0x28] sm:$0xff]
        %v863 = vld [vmem:[%s856 + $0x30] sm:$0xff]
        %v864 = vld [vmem:[%s856 + $0x38] sm:$0xff]
        %v865 = vld [vmem:[%s856 + $0x40] sm:$0xff]
        %v866 = vld [vmem:[%s856 + $0x48] sm:$0xff]
        %v867 = vld [vmem:[%s856 + $0x50] sm:$0xff]
        %v868 = vld [vmem:[%s856 + $0x58] sm:$0xff]
        %v869 = vld [vmem:[%s856 + $0x60] sm:$0xff]
        %v870 = vld [vmem:[%s856 + $0x68] sm:$0xff]
        %v871 = vld [vmem:[%s856 + $0x70] sm:$0xff]
        %v872 = vld [vmem:[%s856 + $0x78] sm:$0xff]
        %v889 = vunpack.c.l.b16 %v857
        %v890 = vunpack.c.h.b16 %v857
        %v891 = vunpack.c.l.b16 %v858
        %v892 = vunpack.c.h.b16 %v858
        %v893 = vunpack.c.l.b16 %v859
        %v894 = vunpack.c.h.b16 %v859
        %v895 = vunpack.c.l.b16 %v860
        %v896 = vunpack.c.h.b16 %v860
        %v897 = vunpack.c.l.b16 %v861
        %v898 = vunpack.c.h.b16 %v861
        %v899 = vunpack.c.l.b16 %v862
        %v900 = vunpack.c.h.b16 %v862
        %v901 = vunpack.c.l.b16 %v863
        %v902 = vunpack.c.h.b16 %v863
        %v903 = vunpack.c.l.b16 %v864
        %v904 = vunpack.c.h.b16 %v864
        %v905 = vunpack.c.l.b16 %v865
        %v906 = vunpack.c.h.b16 %v865
        %v907 = vunpack.c.l.b16 %v866
        %v908 = vunpack.c.h.b16 %v866
        %v909 = vunpack.c.l.b16 %v867
        %v910 = vunpack.c.h.b16 %v867
        %v911 = vunpack.c.l.b16 %v868
        %v912 = vunpack.c.h.b16 %v868
        %v913 = vunpack.c.l.b16 %v869
        %v914 = vunpack.c.h.b16 %v869
        %v915 = vunpack.c.l.b16 %v870
        %v916 = vunpack.c.h.b16 %v870
        %v917 = vunpack.c.l.b16 %v871
        %v918 = vunpack.c.h.b16 %v871
        %v919 = vunpack.c.l.b16 %v872
        %v920 = vunpack.c.h.b16 %v872
        %v921 = vpack.c.b16 %v891, %v889
        %v922 = vpack.c.b16 %v892, %v890
        %v923 = vpack.c.b16 %v895, %v893
        %v924 = vpack.c.b16 %v896, %v894
        %v925 = vpack.c.b16 %v899, %v897
        %v926 = vpack.c.b16 %v900, %v898
        %v927 = vpack.c.b16 %v903, %v901
        %v928 = vpack.c.b16 %v904, %v902
        %v929 = vpack.c.b16 %v907, %v905
        %v930 = vpack.c.b16 %v908, %v906
        %v931 = vpack.c.b16 %v911, %v909
        %v932 = vpack.c.b16 %v912, %v910
        %v933 = vpack.c.b16 %v915, %v913
        %v934 = vpack.c.b16 %v916, %v914
        %v935 = vpack.c.b16 %v919, %v917
        %v936 = vpack.c.b16 %v920, %v918
        %v946 = vsel %vm729, %v922, 0
        %v949 = vsel %vm729, %v924, 0
        %v952 = vsel %vm729, %v926, 0
        %v955 = vsel %vm729, %v928, 0
        %v958 = vsel %vm729, %v930, 0
        %v961 = vsel %vm729, %v932, 0
        %v964 = vsel %vm729, %v934, 0
        %v967 = vsel %vm729, %v936, 0
        %969 = vmatpush.bf16.msra.mxu0 %v705
        %970 = vmatpush.bf16.msra.mxu0 %v704
        %971 = vmatpush.bf16.msra.mxu0 %v703
        %972 = vmatpush.bf16.msra.mxu0 %v702
        %973 = vmatpush.bf16.msra.mxu0 %v701
        %974 = vmatpush.bf16.msra.mxu0 %v700
        %975 = vmatpush.bf16.msra.mxu0 %v699
        %976 = vmatpush.bf16.msra.mxu0 %v698
        %977 = vmatmul.bf16.gmra.mxu0 %v921
        %v978 = vpop.f32.mrf.mxu0
        %v979 = vadd.f32 0.0, %v978
        %v980 = vpop.f32.mrf.mxu0
        %v981 = vadd.f32 0.0, %v980
        %982 = vmatmul.bf16.gmra.mxu0 %v923
        %v983 = vpop.f32.mrf.mxu0
        %v984 = vadd.f32 0.0, %v983
        %v985 = vpop.f32.mrf.mxu0
        %v986 = vadd.f32 0.0, %v985
        %987 = vmatmul.bf16.gmra.mxu0 %v925
        %v988 = vpop.f32.mrf.mxu0
        %v989 = vadd.f32 0.0, %v988
        %v990 = vpop.f32.mrf.mxu0
        %v991 = vadd.f32 0.0, %v990
        %992 = vmatmul.bf16.gmra.mxu0 %v927
        %v993 = vpop.f32.mrf.mxu0
        %v994 = vadd.f32 0.0, %v993
        %v995 = vpop.f32.mrf.mxu0
        %v996 = vadd.f32 0.0, %v995
        %997 = vmatmul.bf16.gmra.mxu0 %v929
        %v998 = vpop.f32.mrf.mxu0
        %v999 = vadd.f32 0.0, %v998
        %v1000 = vpop.f32.mrf.mxu0
        %v1001 = vadd.f32 0.0, %v1000
        %1002 = vmatmul.bf16.gmra.mxu0 %v931
        %v1003 = vpop.f32.mrf.mxu0
        %v1004 = vadd.f32 0.0, %v1003
        %v1005 = vpop.f32.mrf.mxu0
        %v1006 = vadd.f32 0.0, %v1005
        %1007 = vmatmul.bf16.gmra.mxu0 %v933
        %v1008 = vpop.f32.mrf.mxu0
        %v1009 = vadd.f32 0.0, %v1008
        %v1010 = vpop.f32.mrf.mxu0
        %v1011 = vadd.f32 0.0, %v1010
        %1012 = vmatmul.bf16.gmra.mxu0 %v935
        %v1013 = vpop.f32.mrf.mxu0
        %v1014 = vadd.f32 0.0, %v1013
        %v1015 = vpop.f32.mrf.mxu0
        %v1016 = vadd.f32 0.0, %v1015
        %1017 = vdwg.mxu0
        %1018 = vmatpush.bf16.msra.mxu0 %v756
        %1019 = vmatpush.bf16.msra.mxu0 %v712
        %1020 = vmatpush.bf16.msra.mxu0 %v711
        %1021 = vmatpush.bf16.msra.mxu0 %v710
        %1022 = vmatpush.bf16.msra.mxu0 %v709
        %1023 = vmatpush.bf16.msra.mxu0 %v708
        %1024 = vmatpush.bf16.msra.mxu0 %v707
        %1025 = vmatpush.bf16.msra.mxu0 %v706
        %1026 = vmatmul.bf16.gmra.mxu0 %v946
        %v1027 = vpop.f32.mrf.mxu0
        %v1028 = vadd.f32 %v979, %v1027
        %v1029 = vpop.f32.mrf.mxu0
        %v1030 = vadd.f32 %v981, %v1029
        %1031 = vmatmul.bf16.gmra.mxu0 %v949
        %v1032 = vpop.f32.mrf.mxu0
        %v1033 = vadd.f32 %v984, %v1032
        %v1034 = vpop.f32.mrf.mxu0
        %v1035 = vadd.f32 %v986, %v1034
        %1036 = vmatmul.bf16.gmra.mxu0 %v952
        %v1037 = vpop.f32.mrf.mxu0
        %v1038 = vadd.f32 %v989, %v1037
        %v1039 = vpop.f32.mrf.mxu0
        %v1040 = vadd.f32 %v991, %v1039
        %1041 = vmatmul.bf16.gmra.mxu0 %v955
        %v1042 = vpop.f32.mrf.mxu0
        %v1043 = vadd.f32 %v994, %v1042
        %v1044 = vpop.f32.mrf.mxu0
        %v1045 = vadd.f32 %v996, %v1044
        %1046 = vmatmul.bf16.gmra.mxu0 %v958
        %v1047 = vpop.f32.mrf.mxu0
        %v1048 = vadd.f32 %v999, %v1047
        %v1049 = vpop.f32.mrf.mxu0
        %v1050 = vadd.f32 %v1001, %v1049
        %1051 = vmatmul.bf16.gmra.mxu0 %v961
        %v1052 = vpop.f32.mrf.mxu0
        %v1053 = vadd.f32 %v1004, %v1052
        %v1054 = vpop.f32.mrf.mxu0
        %v1055 = vadd.f32 %v1006, %v1054
        %1056 = vmatmul.bf16.gmra.mxu0 %v964
        %v1057 = vpop.f32.mrf.mxu0
        %v1058 = vadd.f32 %v1009, %v1057
        %v1059 = vpop.f32.mrf.mxu0
        %v1060 = vadd.f32 %v1011, %v1059
        %1061 = vmatmul.bf16.gmra.mxu0 %v967
        %v1062 = vpop.f32.mrf.mxu0
        %v1063 = vadd.f32 %v1014, %v1062
        %v1064 = vpop.f32.mrf.mxu0
        %v1065 = vadd.f32 %v1016, %v1064
        %1066 = vdwg.mxu0
        %v1067 = vmax.f32 %v817, %v1028
        %v1068 = vmax.f32 %v819, %v1030
        %v1069 = vmax.f32 %v822, %v1033
        %v1070 = vmax.f32 %v824, %v1035
        %v1071 = vmax.f32 %v827, %v1038
        %v1072 = vmax.f32 %v829, %v1040
        %v1073 = vmax.f32 %v832, %v1043
        %v1074 = vmax.f32 %v834, %v1045
        %v1075 = vmax.f32 %v837, %v1048
        %v1076 = vmax.f32 %v839, %v1050
        %v1077 = vmax.f32 %v842, %v1053
        %v1078 = vmax.f32 %v844, %v1055
        %v1079 = vmax.f32 %v847, %v1058
        %v1080 = vmax.f32 %v849, %v1060
        %v1081 = vmax.f32 %v852, %v1063
        %v1082 = vmax.f32 %v854, %v1065
        %s1083 = scalar_lea.vmem %s487, 256 [#allocation2]
        %v1084 = vld [vmem:[%s1083] sm:$0xff]
        %v1085 = vld [vmem:[%s1083 + $0x8] sm:$0xff]
        %v1086 = vld [vmem:[%s1083 + $0x10] sm:$0xff]
        %v1087 = vld [vmem:[%s1083 + $0x18] sm:$0xff]
        %v1088 = vld [vmem:[%s1083 + $0x20] sm:$0xff]
        %v1089 = vld [vmem:[%s1083 + $0x28] sm:$0xff]
        %v1090 = vld [vmem:[%s1083 + $0x30] sm:$0xff]
        %v1091 = vld [vmem:[%s1083 + $0x38] sm:$0xff]
        %v1092 = vld [vmem:[%s1083 + $0x40] sm:$0xff]
        %v1093 = vld [vmem:[%s1083 + $0x48] sm:$0xff]
        %v1094 = vld [vmem:[%s1083 + $0x50] sm:$0xff]
        %v1095 = vld [vmem:[%s1083 + $0x58] sm:$0xff]
        %v1096 = vld [vmem:[%s1083 + $0x60] sm:$0xff]
        %v1097 = vld [vmem:[%s1083 + $0x68] sm:$0xff]
        %v1098 = vld [vmem:[%s1083 + $0x70] sm:$0xff]
        %v1099 = vld [vmem:[%s1083 + $0x78] sm:$0xff]
        %v1116 = vunpack.c.l.b16 %v1084
        %v1117 = vunpack.c.h.b16 %v1084
        %v1118 = vunpack.c.l.b16 %v1085
        %v1119 = vunpack.c.h.b16 %v1085
        %v1120 = vunpack.c.l.b16 %v1086
        %v1121 = vunpack.c.h.b16 %v1086
        %v1122 = vunpack.c.l.b16 %v1087
        %v1123 = vunpack.c.h.b16 %v1087
        %v1124 = vunpack.c.l.b16 %v1088
        %v1125 = vunpack.c.h.b16 %v1088
        %v1126 = vunpack.c.l.b16 %v1089
        %v1127 = vunpack.c.h.b16 %v1089
        %v1128 = vunpack.c.l.b16 %v1090
        %v1129 = vunpack.c.h.b16 %v1090
        %v1130 = vunpack.c.l.b16 %v1091
        %v1131 = vunpack.c.h.b16 %v1091
        %v1132 = vunpack.c.l.b16 %v1092
        %v1133 = vunpack.c.h.b16 %v1092
        %v1134 = vunpack.c.l.b16 %v1093
        %v1135 = vunpack.c.h.b16 %v1093
        %v1136 = vunpack.c.l.b16 %v1094
        %v1137 = vunpack.c.h.b16 %v1094
        %v1138 = vunpack.c.l.b16 %v1095
        %v1139 = vunpack.c.h.b16 %v1095
        %v1140 = vunpack.c.l.b16 %v1096
        %v1141 = vunpack.c.h.b16 %v1096
        %v1142 = vunpack.c.l.b16 %v1097
        %v1143 = vunpack.c.h.b16 %v1097
        %v1144 = vunpack.c.l.b16 %v1098
        %v1145 = vunpack.c.h.b16 %v1098
        %v1146 = vunpack.c.l.b16 %v1099
        %v1147 = vunpack.c.h.b16 %v1099
        %v1148 = vpack.c.b16 %v1118, %v1116
        %v1149 = vpack.c.b16 %v1119, %v1117
        %v1150 = vpack.c.b16 %v1122, %v1120
        %v1151 = vpack.c.b16 %v1123, %v1121
        %v1152 = vpack.c.b16 %v1126, %v1124
        %v1153 = vpack.c.b16 %v1127, %v1125
        %v1154 = vpack.c.b16 %v1130, %v1128
        %v1155 = vpack.c.b16 %v1131, %v1129
        %v1156 = vpack.c.b16 %v1134, %v1132
        %v1157 = vpack.c.b16 %v1135, %v1133
        %v1158 = vpack.c.b16 %v1138, %v1136
        %v1159 = vpack.c.b16 %v1139, %v1137
        %v1160 = vpack.c.b16 %v1142, %v1140
        %v1161 = vpack.c.b16 %v1143, %v1141
        %v1162 = vpack.c.b16 %v1146, %v1144
        %v1163 = vpack.c.b16 %v1147, %v1145
        %v1173 = vsel %vm729, %v1149, 0
        %v1176 = vsel %vm729, %v1151, 0
        %v1179 = vsel %vm729, %v1153, 0
        %v1182 = vsel %vm729, %v1155, 0
        %v1185 = vsel %vm729, %v1157, 0
        %v1188 = vsel %vm729, %v1159, 0
        %v1191 = vsel %vm729, %v1161, 0
        %v1194 = vsel %vm729, %v1163, 0
        %1196 = vmatpush.bf16.msra.mxu0 %v705
        %1197 = vmatpush.bf16.msra.mxu0 %v704
        %1198 = vmatpush.bf16.msra.mxu0 %v703
        %1199 = vmatpush.bf16.msra.mxu0 %v702
        %1200 = vmatpush.bf16.msra.mxu0 %v701
        %1201 = vmatpush.bf16.msra.mxu0 %v700
        %1202 = vmatpush.bf16.msra.mxu0 %v699
        %1203 = vmatpush.bf16.msra.mxu0 %v698
        %1204 = vmatmul.bf16.gmra.mxu0 %v1148
        %v1205 = vpop.f32.mrf.mxu0
        %v1206 = vadd.f32 0.0, %v1205
        %v1207 = vpop.f32.mrf.mxu0
        %v1208 = vadd.f32 0.0, %v1207
        %1209 = vmatmul.bf16.gmra.mxu0 %v1150
        %v1210 = vpop.f32.mrf.mxu0
        %v1211 = vadd.f32 0.0, %v1210
        %v1212 = vpop.f32.mrf.mxu0
        %v1213 = vadd.f32 0.0, %v1212
        %1214 = vmatmul.bf16.gmra.mxu0 %v1152
        %v1215 = vpop.f32.mrf.mxu0
        %v1216 = vadd.f32 0.0, %v1215
        %v1217 = vpop.f32.mrf.mxu0
        %v1218 = vadd.f32 0.0, %v1217
        %1219 = vmatmul.bf16.gmra.mxu0 %v1154
        %v1220 = vpop.f32.mrf.mxu0
        %v1221 = vadd.f32 0.0, %v1220
        %v1222 = vpop.f32.mrf.mxu0
        %v1223 = vadd.f32 0.0, %v1222
        %1224 = vmatmul.bf16.gmra.mxu0 %v1156
        %v1225 = vpop.f32.mrf.mxu0
        %v1226 = vadd.f32 0.0, %v1225
        %v1227 = vpop.f32.mrf.mxu0
        %v1228 = vadd.f32 0.0, %v1227
        %1229 = vmatmul.bf16.gmra.mxu0 %v1158
        %v1230 = vpop.f32.mrf.mxu0
        %v1231 = vadd.f32 0.0, %v1230
        %v1232 = vpop.f32.mrf.mxu0
        %v1233 = vadd.f32 0.0, %v1232
        %1234 = vmatmul.bf16.gmra.mxu0 %v1160
        %v1235 = vpop.f32.mrf.mxu0
        %v1236 = vadd.f32 0.0, %v1235
        %v1237 = vpop.f32.mrf.mxu0
        %v1238 = vadd.f32 0.0, %v1237
        %1239 = vmatmul.bf16.gmra.mxu0 %v1162
        %v1240 = vpop.f32.mrf.mxu0
        %v1241 = vadd.f32 0.0, %v1240
        %v1242 = vpop.f32.mrf.mxu0
        %v1243 = vadd.f32 0.0, %v1242
        %1244 = vdwg.mxu0
        %1245 = vmatpush.bf16.msra.mxu0 %v756
        %1246 = vmatpush.bf16.msra.mxu0 %v712
        %1247 = vmatpush.bf16.msra.mxu0 %v711
        %1248 = vmatpush.bf16.msra.mxu0 %v710
        %1249 = vmatpush.bf16.msra.mxu0 %v709
        %1250 = vmatpush.bf16.msra.mxu0 %v708
        %1251 = vmatpush.bf16.msra.mxu0 %v707
        %1252 = vmatpush.bf16.msra.mxu0 %v706
        %1253 = vmatmul.bf16.gmra.mxu0 %v1173
        %v1254 = vpop.f32.mrf.mxu0
        %v1255 = vadd.f32 %v1206, %v1254
        %v1256 = vpop.f32.mrf.mxu0
        %v1257 = vadd.f32 %v1208, %v1256
        %1258 = vmatmul.bf16.gmra.mxu0 %v1176
        %v1259 = vpop.f32.mrf.mxu0
        %v1260 = vadd.f32 %v1211, %v1259
        %v1261 = vpop.f32.mrf.mxu0
        %v1262 = vadd.f32 %v1213, %v1261
        %1263 = vmatmul.bf16.gmra.mxu0 %v1179
        %v1264 = vpop.f32.mrf.mxu0
        %v1265 = vadd.f32 %v1216, %v1264
        %v1266 = vpop.f32.mrf.mxu0
        %v1267 = vadd.f32 %v1218, %v1266
        %1268 = vmatmul.bf16.gmra.mxu0 %v1182
        %v1269 = vpop.f32.mrf.mxu0
        %v1270 = vadd.f32 %v1221, %v1269
        %v1271 = vpop.f32.mrf.mxu0
        %v1272 = vadd.f32 %v1223, %v1271
        %1273 = vmatmul.bf16.gmra.mxu0 %v1185
        %v1274 = vpop.f32.mrf.mxu0
        %v1275 = vadd.f32 %v1226, %v1274
        %v1276 = vpop.f32.mrf.mxu0
        %v1277 = vadd.f32 %v1228, %v1276
        %1278 = vmatmul.bf16.gmra.mxu0 %v1188
        %v1279 = vpop.f32.mrf.mxu0
        %v1280 = vadd.f32 %v1231, %v1279
        %v1281 = vpop.f32.mrf.mxu0
        %v1282 = vadd.f32 %v1233, %v1281
        %1283 = vmatmul.bf16.gmra.mxu0 %v1191
        %v1284 = vpop.f32.mrf.mxu0
        %v1285 = vadd.f32 %v1236, %v1284
        %v1286 = vpop.f32.mrf.mxu0
        %v1287 = vadd.f32 %v1238, %v1286
        %1288 = vmatmul.bf16.gmra.mxu0 %v1194
        %v1289 = vpop.f32.mrf.mxu0
        %v1290 = vadd.f32 %v1241, %v1289
        %v1291 = vpop.f32.mrf.mxu0
        %v1292 = vadd.f32 %v1243, %v1291
        %1293 = vdwg.mxu0
        %v1294 = vmax.f32 %v1067, %v1255
        %v1295 = vmax.f32 %v1068, %v1257
        %v1296 = vmax.f32 %v1069, %v1260
        %v1297 = vmax.f32 %v1070, %v1262
        %v1298 = vmax.f32 %v1071, %v1265
        %v1299 = vmax.f32 %v1072, %v1267
        %v1300 = vmax.f32 %v1073, %v1270
        %v1301 = vmax.f32 %v1074, %v1272
        %v1302 = vmax.f32 %v1075, %v1275
        %v1303 = vmax.f32 %v1076, %v1277
        %v1304 = vmax.f32 %v1077, %v1280
        %v1305 = vmax.f32 %v1078, %v1282
        %v1306 = vmax.f32 %v1079, %v1285
        %v1307 = vmax.f32 %v1080, %v1287
        %v1308 = vmax.f32 %v1081, %v1290
        %v1309 = vmax.f32 %v1082, %v1292
        %s1310 = scalar_lea.vmem %s487, 384 [#allocation2]
        %v1311 = vld [vmem:[%s1310] sm:$0xff]
        %v1312 = vld [vmem:[%s1310 + $0x8] sm:$0xff]
        %v1313 = vld [vmem:[%s1310 + $0x10] sm:$0xff]
        %v1314 = vld [vmem:[%s1310 + $0x18] sm:$0xff]
        %v1315 = vld [vmem:[%s1310 + $0x20] sm:$0xff]
        %v1316 = vld [vmem:[%s1310 + $0x28] sm:$0xff]
        %v1317 = vld [vmem:[%s1310 + $0x30] sm:$0xff]
        %v1318 = vld [vmem:[%s1310 + $0x38] sm:$0xff]
        %v1319 = vld [vmem:[%s1310 + $0x40] sm:$0xff]
        %v1320 = vld [vmem:[%s1310 + $0x48] sm:$0xff]
        %v1321 = vld [vmem:[%s1310 + $0x50] sm:$0xff]
        %v1322 = vld [vmem:[%s1310 + $0x58] sm:$0xff]
        %v1323 = vld [vmem:[%s1310 + $0x60] sm:$0xff]
        %v1324 = vld [vmem:[%s1310 + $0x68] sm:$0xff]
        %v1325 = vld [vmem:[%s1310 + $0x70] sm:$0xff]
        %v1326 = vld [vmem:[%s1310 + $0x78] sm:$0xff]
        %v1343 = vunpack.c.l.b16 %v1311
        %v1344 = vunpack.c.h.b16 %v1311
        %v1345 = vunpack.c.l.b16 %v1312
        %v1346 = vunpack.c.h.b16 %v1312
        %v1347 = vunpack.c.l.b16 %v1313
        %v1348 = vunpack.c.h.b16 %v1313
        %v1349 = vunpack.c.l.b16 %v1314
        %v1350 = vunpack.c.h.b16 %v1314
        %v1351 = vunpack.c.l.b16 %v1315
        %v1352 = vunpack.c.h.b16 %v1315
        %v1353 = vunpack.c.l.b16 %v1316
        %v1354 = vunpack.c.h.b16 %v1316
        %v1355 = vunpack.c.l.b16 %v1317
        %v1356 = vunpack.c.h.b16 %v1317
        %v1357 = vunpack.c.l.b16 %v1318
        %v1358 = vunpack.c.h.b16 %v1318
        %v1359 = vunpack.c.l.b16 %v1319
        %v1360 = vunpack.c.h.b16 %v1319
        %v1361 = vunpack.c.l.b16 %v1320
        %v1362 = vunpack.c.h.b16 %v1320
        %v1363 = vunpack.c.l.b16 %v1321
        %v1364 = vunpack.c.h.b16 %v1321
        %v1365 = vunpack.c.l.b16 %v1322
        %v1366 = vunpack.c.h.b16 %v1322
        %v1367 = vunpack.c.l.b16 %v1323
        %v1368 = vunpack.c.h.b16 %v1323
        %v1369 = vunpack.c.l.b16 %v1324
        %v1370 = vunpack.c.h.b16 %v1324
        %v1371 = vunpack.c.l.b16 %v1325
        %v1372 = vunpack.c.h.b16 %v1325
        %v1373 = vunpack.c.l.b16 %v1326
        %v1374 = vunpack.c.h.b16 %v1326
        %v1375 = vpack.c.b16 %v1345, %v1343
        %v1376 = vpack.c.b16 %v1346, %v1344
        %v1377 = vpack.c.b16 %v1349, %v1347
        %v1378 = vpack.c.b16 %v1350, %v1348
        %v1379 = vpack.c.b16 %v1353, %v1351
        %v1380 = vpack.c.b16 %v1354, %v1352
        %v1381 = vpack.c.b16 %v1357, %v1355
        %v1382 = vpack.c.b16 %v1358, %v1356
        %v1383 = vpack.c.b16 %v1361, %v1359
        %v1384 = vpack.c.b16 %v1362, %v1360
        %v1385 = vpack.c.b16 %v1365, %v1363
        %v1386 = vpack.c.b16 %v1366, %v1364
        %v1387 = vpack.c.b16 %v1369, %v1367
        %v1388 = vpack.c.b16 %v1370, %v1368
        %v1389 = vpack.c.b16 %v1373, %v1371
        %v1390 = vpack.c.b16 %v1374, %v1372
        %v1400 = vsel %vm729, %v1376, 0
        %v1403 = vsel %vm729, %v1378, 0
        %v1406 = vsel %vm729, %v1380, 0
        %v1409 = vsel %vm729, %v1382, 0
        %v1412 = vsel %vm729, %v1384, 0
        %v1415 = vsel %vm729, %v1386, 0
        %v1418 = vsel %vm729, %v1388, 0
        %v1421 = vsel %vm729, %v1390, 0
        %1423 = vmatpush.bf16.msra.mxu0 %v705
        %1424 = vmatpush.bf16.msra.mxu0 %v704
        %1425 = vmatpush.bf16.msra.mxu0 %v703
        %1426 = vmatpush.bf16.msra.mxu0 %v702
        %1427 = vmatpush.bf16.msra.mxu0 %v701
        %1428 = vmatpush.bf16.msra.mxu0 %v700
        %1429 = vmatpush.bf16.msra.mxu0 %v699
        %1430 = vmatpush.bf16.msra.mxu0 %v698
        %1431 = vmatmul.bf16.gmra.mxu0 %v1375
        %v1432 = vpop.f32.mrf.mxu0
        %v1433 = vadd.f32 0.0, %v1432
        %v1434 = vpop.f32.mrf.mxu0
        %v1435 = vadd.f32 0.0, %v1434
        %1436 = vmatmul.bf16.gmra.mxu0 %v1377
        %v1437 = vpop.f32.mrf.mxu0
        %v1438 = vadd.f32 0.0, %v1437
        %v1439 = vpop.f32.mrf.mxu0
        %v1440 = vadd.f32 0.0, %v1439
        %1441 = vmatmul.bf16.gmra.mxu0 %v1379
        %v1442 = vpop.f32.mrf.mxu0
        %v1443 = vadd.f32 0.0, %v1442
        %v1444 = vpop.f32.mrf.mxu0
        %v1445 = vadd.f32 0.0, %v1444
        %1446 = vmatmul.bf16.gmra.mxu0 %v1381
        %v1447 = vpop.f32.mrf.mxu0
        %v1448 = vadd.f32 0.0, %v1447
        %v1449 = vpop.f32.mrf.mxu0
        %v1450 = vadd.f32 0.0, %v1449
        %1451 = vmatmul.bf16.gmra.mxu0 %v1383
        %v1452 = vpop.f32.mrf.mxu0
        %v1453 = vadd.f32 0.0, %v1452
        %v1454 = vpop.f32.mrf.mxu0
        %v1455 = vadd.f32 0.0, %v1454
        %1456 = vmatmul.bf16.gmra.mxu0 %v1385
        %v1457 = vpop.f32.mrf.mxu0
        %v1458 = vadd.f32 0.0, %v1457
        %v1459 = vpop.f32.mrf.mxu0
        %v1460 = vadd.f32 0.0, %v1459
        %1461 = vmatmul.bf16.gmra.mxu0 %v1387
        %v1462 = vpop.f32.mrf.mxu0
        %v1463 = vadd.f32 0.0, %v1462
        %v1464 = vpop.f32.mrf.mxu0
        %v1465 = vadd.f32 0.0, %v1464
        %1466 = vmatmul.bf16.gmra.mxu0 %v1389
        %v1467 = vpop.f32.mrf.mxu0
        %v1468 = vadd.f32 0.0, %v1467
        %v1469 = vpop.f32.mrf.mxu0
        %v1470 = vadd.f32 0.0, %v1469
        %1471 = vdwg.mxu0
        %1472 = vmatpush.bf16.msra.mxu0 %v756
        %1473 = vmatpush.bf16.msra.mxu0 %v712
        %1474 = vmatpush.bf16.msra.mxu0 %v711
        %1475 = vmatpush.bf16.msra.mxu0 %v710
        %1476 = vmatpush.bf16.msra.mxu0 %v709
        %1477 = vmatpush.bf16.msra.mxu0 %v708
        %1478 = vmatpush.bf16.msra.mxu0 %v707
        %1479 = vmatpush.bf16.msra.mxu0 %v706
        %1480 = vmatmul.bf16.gmra.mxu0 %v1400
        %v1481 = vpop.f32.mrf.mxu0
        %v1482 = vadd.f32 %v1433, %v1481
        %v1483 = vpop.f32.mrf.mxu0
        %v1484 = vadd.f32 %v1435, %v1483
        %1485 = vmatmul.bf16.gmra.mxu0 %v1403
        %v1486 = vpop.f32.mrf.mxu0
        %v1487 = vadd.f32 %v1438, %v1486
        %v1488 = vpop.f32.mrf.mxu0
        %v1489 = vadd.f32 %v1440, %v1488
        %1490 = vmatmul.bf16.gmra.mxu0 %v1406
        %v1491 = vpop.f32.mrf.mxu0
        %v1492 = vadd.f32 %v1443, %v1491
        %v1493 = vpop.f32.mrf.mxu0
        %v1494 = vadd.f32 %v1445, %v1493
        %1495 = vmatmul.bf16.gmra.mxu0 %v1409
        %v1496 = vpop.f32.mrf.mxu0
        %v1497 = vadd.f32 %v1448, %v1496
        %v1498 = vpop.f32.mrf.mxu0
        %v1499 = vadd.f32 %v1450, %v1498
        %1500 = vmatmul.bf16.gmra.mxu0 %v1412
        %v1501 = vpop.f32.mrf.mxu0
        %v1502 = vadd.f32 %v1453, %v1501
        %v1503 = vpop.f32.mrf.mxu0
        %v1504 = vadd.f32 %v1455, %v1503
        %1505 = vmatmul.bf16.gmra.mxu0 %v1415
        %v1506 = vpop.f32.mrf.mxu0
        %v1507 = vadd.f32 %v1458, %v1506
        %v1508 = vpop.f32.mrf.mxu0
        %v1509 = vadd.f32 %v1460, %v1508
        %1510 = vmatmul.bf16.gmra.mxu0 %v1418
        %v1511 = vpop.f32.mrf.mxu0
        %v1512 = vadd.f32 %v1463, %v1511
        %v1513 = vpop.f32.mrf.mxu0
        %v1514 = vadd.f32 %v1465, %v1513
        %1515 = vmatmul.bf16.gmra.mxu0 %v1421
        %v1516 = vpop.f32.mrf.mxu0
        %v1517 = vadd.f32 %v1468, %v1516
        %v1518 = vpop.f32.mrf.mxu0
        %v1519 = vadd.f32 %v1470, %v1518
        %1520 = vdwg.mxu0
        %v1521 = vmax.f32 %v1294, %v1482
        %v1522 = vmax.f32 %v1295, %v1484
        %v1523 = vmax.f32 %v1296, %v1487
        %v1524 = vmax.f32 %v1297, %v1489
        %v1525 = vmax.f32 %v1298, %v1492
        %v1526 = vmax.f32 %v1299, %v1494
        %v1527 = vmax.f32 %v1300, %v1497
        %v1528 = vmax.f32 %v1301, %v1499
        %v1529 = vmax.f32 %v1302, %v1502
        %v1530 = vmax.f32 %v1303, %v1504
        %v1531 = vmax.f32 %v1304, %v1507
        %v1532 = vmax.f32 %v1305, %v1509
        %v1533 = vmax.f32 %v1306, %v1512
        %v1534 = vmax.f32 %v1307, %v1514
        %v1535 = vmax.f32 %v1308, %v1517
        %v1536 = vmax.f32 %v1309, %v1519
        %v1537 = vld [vmem:[%s2] sm:$0x1]
        %v1539 = vperm.slane %v1537, 0
        %v1541 = vadd.f32 %v1521, %v1539
        %v1542 = vadd.f32 %v1522, %v1539
        %v1543 = vadd.f32 %v1523, %v1539
        %v1544 = vadd.f32 %v1524, %v1539
        %v1545 = vadd.f32 %v1525, %v1539
        %v1546 = vadd.f32 %v1526, %v1539
        %v1547 = vadd.f32 %v1527, %v1539
        %v1548 = vadd.f32 %v1528, %v1539
        %v1549 = vadd.f32 %v1529, %v1539
        %v1550 = vadd.f32 %v1530, %v1539
        %v1551 = vadd.f32 %v1531, %v1539
        %v1552 = vadd.f32 %v1532, %v1539
        %v1553 = vadd.f32 %v1533, %v1539
        %v1554 = vadd.f32 %v1534, %v1539
        %v1555 = vadd.f32 %v1535, %v1539
        %v1556 = vadd.f32 %v1536, %v1539
        %v1557 = vmax.f32 %v1541, 0.0
        %v1558 = vmax.f32 %v1542, 0.0
        %v1559 = vmax.f32 %v1543, 0.0
        %v1560 = vmax.f32 %v1544, 0.0
        %v1561 = vmax.f32 %v1545, 0.0
        %v1562 = vmax.f32 %v1546, 0.0
        %v1563 = vmax.f32 %v1547, 0.0
        %v1564 = vmax.f32 %v1548, 0.0
        %v1565 = vmax.f32 %v1549, 0.0
        %v1566 = vmax.f32 %v1550, 0.0
        %v1567 = vmax.f32 %v1551, 0.0
        %v1568 = vmax.f32 %v1552, 0.0
        %v1569 = vmax.f32 %v1553, 0.0
        %v1570 = vmax.f32 %v1554, 0.0
        %v1571 = vmax.f32 %v1555, 0.0
        %v1572 = vmax.f32 %v1556, 0.0
        %v1573 = vpack.c.bf16 %v1557, %v1557
        %v1574 = vpack.c.bf16 %v1558, %v1558
        %v1575 = vpack.c.bf16 %v1559, %v1559
        %v1576 = vpack.c.bf16 %v1560, %v1560
        %v1577 = vpack.c.bf16 %v1561, %v1561
        %v1578 = vpack.c.bf16 %v1562, %v1562
        %v1579 = vpack.c.bf16 %v1563, %v1563
        %v1580 = vpack.c.bf16 %v1564, %v1564
        %v1581 = vpack.c.bf16 %v1565, %v1565
        %v1582 = vpack.c.bf16 %v1566, %v1566
        %v1583 = vpack.c.bf16 %v1567, %v1567
        %v1584 = vpack.c.bf16 %v1568, %v1568
        %v1585 = vpack.c.bf16 %v1569, %v1569
        %v1586 = vpack.c.bf16 %v1570, %v1570
        %v1587 = vpack.c.bf16 %v1571, %v1571
        %v1588 = vpack.c.bf16 %v1572, %v1572
        %v1589 = vld [vmem:[%s3] sm:$0xf]
        %v1590 = vld [vmem:[%s3 + $0x4] sm:$0xf]
        %v1591 = vld [vmem:[%s3 + $0x8] sm:$0x3]
        %s1592 = scalar_lea.vmem %s3, 12
        %v1593 = vld [vmem:[%s1592] sm:$0xf]
        %v1594 = vld [vmem:[%s1592 + $0x4] sm:$0xf]
        %v1595 = vld [vmem:[%s1592 + $0x8] sm:$0x3]
        %v1599 = vunpack.c.l.b16 %v1593
        %v1600 = vunpack.c.l.b16 %v1594
        %v1601 = vunpack.c.l.b16 %v1595
        %v1602 = vpack.c.b16 %v1600, %v1599
        %v1603 = vpack.c.b16 %v1601, %v1601
        %vm1605 = vcmask 162816
        %v1607 = vsel %vm1605, %v1574, 0
        %vm1609 = vcmask 1041408
        %v1611 = vsel %vm1609, %v1603, 0
        %1613 = vmatpush.bf16.msra.mxu0 0
        %1614 = vmatpush.bf16.msra.mxu0 0
        %1615 = vmatpush.bf16.msra.mxu0 0
        %1616 = vmatpush.bf16.msra.mxu0 0
        %1617 = vmatpush.bf16.msra.mxu0 0
        %1618 = vmatpush.bf16.msra.mxu0 0
        %1619 = vmatpush.bf16.msra.mxu0 %v1611
        %1620 = vmatpush.bf16.msra.mxu0 %v1602
        %1621 = vmatmul.bf16.gmra.mxu0 %v1607
        %v1622 = vpop.f32.mrf.mxu0
        %v1623 = vadd.f32 0.0, %v1622
        %v1624 = vpop.f32.mrf.mxu0
        %1625 = vdwg.mxu0
        %v1629 = vunpack.c.l.b16 %v1589
        %v1630 = vunpack.c.l.b16 %v1590
        %v1631 = vunpack.c.l.b16 %v1591
        %v1632 = vpack.c.b16 %v1630, %v1629
        %v1633 = vpack.c.b16 %v1631, %v1631
        %v1636 = vsel %vm1605, %v1573, 0
        %v1639 = vsel %vm1609, %v1633, 0
        %1641 = vmatpush.bf16.msra.mxu0 0
        %1642 = vmatpush.bf16.msra.mxu0 0
        %1643 = vmatpush.bf16.msra.mxu0 0
        %1644 = vmatpush.bf16.msra.mxu0 0
        %1645 = vmatpush.bf16.msra.mxu0 0
        %1646 = vmatpush.bf16.msra.mxu0 0
        %1647 = vmatpush.bf16.msra.mxu0 %v1639
        %1648 = vmatpush.bf16.msra.mxu0 %v1632
        %1649 = vmatmul.bf16.gmra.mxu0 %v1636
        %v1650 = vpop.f32.mrf.mxu0
        %v1651 = vadd.f32 %v1623, %v1650
        %v1652 = vpop.f32.mrf.mxu0
        %1653 = vdwg.mxu0
        %s1654 = scalar_lea.vmem %s3, 24
        %v1655 = vld [vmem:[%s1654] sm:$0xf]
        %v1656 = vld [vmem:[%s1654 + $0x4] sm:$0xf]
        %v1657 = vld [vmem:[%s1654 + $0x8] sm:$0x3]
        %v1661 = vunpack.c.l.b16 %v1655
        %v1662 = vunpack.c.l.b16 %v1656
        %v1663 = vunpack.c.l.b16 %v1657
        %v1664 = vpack.c.b16 %v1662, %v1661
        %v1665 = vpack.c.b16 %v1663, %v1663
        %v1668 = vsel %vm1605, %v1575, 0
        %v1671 = vsel %vm1609, %v1665, 0
        %1673 = vmatpush.bf16.msra.mxu0 0
        %1674 = vmatpush.bf16.msra.mxu0 0
        %1675 = vmatpush.bf16.msra.mxu0 0
        %1676 = vmatpush.bf16.msra.mxu0 0
        %1677 = vmatpush.bf16.msra.mxu0 0
        %1678 = vmatpush.bf16.msra.mxu0 0
        %1679 = vmatpush.bf16.msra.mxu0 %v1671
        %1680 = vmatpush.bf16.msra.mxu0 %v1664
        %1681 = vmatmul.bf16.gmra.mxu0 %v1668
        %v1682 = vpop.f32.mrf.mxu0
        %v1683 = vadd.f32 0.0, %v1682
        %v1684 = vpop.f32.mrf.mxu0
        %1685 = vdwg.mxu0
        %v1686 = vadd.f32 %v1651, %v1683
        %s1687 = scalar_lea.vmem %s3, 36
        %v1688 = vld [vmem:[%s1687] sm:$0xf]
        %v1689 = vld [vmem:[%s1687 + $0x4] sm:$0xf]
        %v1690 = vld [vmem:[%s1687 + $0x8] sm:$0x3]
        %v1694 = vunpack.c.l.b16 %v1688
        %v1695 = vunpack.c.l.b16 %v1689
        %v1696 = vunpack.c.l.b16 %v1690
        %v1697 = vpack.c.b16 %v1695, %v1694
        %v1698 = vpack.c.b16 %v1696, %v1696
        %v1701 = vsel %vm1605, %v1576, 0
        %v1704 = vsel %vm1609, %v1698, 0
        %1706 = vmatpush.bf16.msra.mxu0 0
        %1707 = vmatpush.bf16.msra.mxu0 0
        %1708 = vmatpush.bf16.msra.mxu0 0
        %1709 = vmatpush.bf16.msra.mxu0 0
        %1710 = vmatpush.bf16.msra.mxu0 0
        %1711 = vmatpush.bf16.msra.mxu0 0
        %1712 = vmatpush.bf16.msra.mxu0 %v1704
        %1713 = vmatpush.bf16.msra.mxu0 %v1697
        %1714 = vmatmul.bf16.gmra.mxu0 %v1701
        %v1715 = vpop.f32.mrf.mxu0
        %v1716 = vadd.f32 0.0, %v1715
        %v1717 = vpop.f32.mrf.mxu0
        %1718 = vdwg.mxu0
        %v1719 = vadd.f32 %v1686, %v1716
        %s1720 = scalar_lea.vmem %s3, 48
        %v1721 = vld [vmem:[%s1720] sm:$0xf]
        %v1722 = vld [vmem:[%s1720 + $0x4] sm:$0xf]
        %v1723 = vld [vmem:[%s1720 + $0x8] sm:$0x3]
        %v1727 = vunpack.c.l.b16 %v1721
        %v1728 = vunpack.c.l.b16 %v1722
        %v1729 = vunpack.c.l.b16 %v1723
        %v1730 = vpack.c.b16 %v1728, %v1727
        %v1731 = vpack.c.b16 %v1729, %v1729
        %v1734 = vsel %vm1605, %v1577, 0
        %v1737 = vsel %vm1609, %v1731, 0
        %1739 = vmatpush.bf16.msra.mxu0 0
        %1740 = vmatpush.bf16.msra.mxu0 0
        %1741 = vmatpush.bf16.msra.mxu0 0
        %1742 = vmatpush.bf16.msra.mxu0 0
        %1743 = vmatpush.bf16.msra.mxu0 0
        %1744 = vmatpush.bf16.msra.mxu0 0
        %1745 = vmatpush.bf16.msra.mxu0 %v1737
        %1746 = vmatpush.bf16.msra.mxu0 %v1730
        %1747 = vmatmul.bf16.gmra.mxu0 %v1734
        %v1748 = vpop.f32.mrf.mxu0
        %v1749 = vadd.f32 0.0, %v1748
        %v1750 = vpop.f32.mrf.mxu0
        %1751 = vdwg.mxu0
        %v1752 = vadd.f32 %v1719, %v1749
        %s1753 = scalar_lea.vmem %s3, 60
        %v1754 = vld [vmem:[%s1753] sm:$0xf]
        %v1755 = vld [vmem:[%s1753 + $0x4] sm:$0xf]
        %v1756 = vld [vmem:[%s1753 + $0x8] sm:$0x3]
        %v1760 = vunpack.c.l.b16 %v1754
        %v1761 = vunpack.c.l.b16 %v1755
        %v1762 = vunpack.c.l.b16 %v1756
        %v1763 = vpack.c.b16 %v1761, %v1760
        %v1764 = vpack.c.b16 %v1762, %v1762
        %v1767 = vsel %vm1605, %v1578, 0
        %v1770 = vsel %vm1609, %v1764, 0
        %1772 = vmatpush.bf16.msra.mxu0 0
        %1773 = vmatpush.bf16.msra.mxu0 0
        %1774 = vmatpush.bf16.msra.mxu0 0
        %1775 = vmatpush.bf16.msra.mxu0 0
        %1776 = vmatpush.bf16.msra.mxu0 0
        %1777 = vmatpush.bf16.msra.mxu0 0
        %1778 = vmatpush.bf16.msra.mxu0 %v1770
        %1779 = vmatpush.bf16.msra.mxu0 %v1763
        %1780 = vmatmul.bf16.gmra.mxu0 %v1767
        %v1781 = vpop.f32.mrf.mxu0
        %v1782 = vadd.f32 0.0, %v1781
        %v1783 = vpop.f32.mrf.mxu0
        %1784 = vdwg.mxu0
        %v1785 = vadd.f32 %v1752, %v1782
        %s1786 = scalar_lea.vmem %s3, 72
        %v1787 = vld [vmem:[%s1786] sm:$0xf]
        %v1788 = vld [vmem:[%s1786 + $0x4] sm:$0xf]
        %v1789 = vld [vmem:[%s1786 + $0x8] sm:$0x3]
        %v1793 = vunpack.c.l.b16 %v1787
        %v1794 = vunpack.c.l.b16 %v1788
        %v1795 = vunpack.c.l.b16 %v1789
        %v1796 = vpack.c.b16 %v1794, %v1793
        %v1797 = vpack.c.b16 %v1795, %v1795
        %v1800 = vsel %vm1605, %v1579, 0
        %v1803 = vsel %vm1609, %v1797, 0
        %1805 = vmatpush.bf16.msra.mxu0 0
        %1806 = vmatpush.bf16.msra.mxu0 0
        %1807 = vmatpush.bf16.msra.mxu0 0
        %1808 = vmatpush.bf16.msra.mxu0 0
        %1809 = vmatpush.bf16.msra.mxu0 0
        %1810 = vmatpush.bf16.msra.mxu0 0
        %1811 = vmatpush.bf16.msra.mxu0 %v1803
        %1812 = vmatpush.bf16.msra.mxu0 %v1796
        %1813 = vmatmul.bf16.gmra.mxu0 %v1800
        %v1814 = vpop.f32.mrf.mxu0
        %v1815 = vadd.f32 0.0, %v1814
        %v1816 = vpop.f32.mrf.mxu0
        %1817 = vdwg.mxu0
        %v1818 = vadd.f32 %v1785, %v1815
        %s1819 = scalar_lea.vmem %s3, 84
        %v1820 = vld [vmem:[%s1819] sm:$0xf]
        %v1821 = vld [vmem:[%s1819 + $0x4] sm:$0xf]
        %v1822 = vld [vmem:[%s1819 + $0x8] sm:$0x3]
        %v1826 = vunpack.c.l.b16 %v1820
        %v1827 = vunpack.c.l.b16 %v1821
        %v1828 = vunpack.c.l.b16 %v1822
        %v1829 = vpack.c.b16 %v1827, %v1826
        %v1830 = vpack.c.b16 %v1828, %v1828
        %v1833 = vsel %vm1605, %v1580, 0
        %v1836 = vsel %vm1609, %v1830, 0
        %1838 = vmatpush.bf16.msra.mxu0 0
        %1839 = vmatpush.bf16.msra.mxu0 0
        %1840 = vmatpush.bf16.msra.mxu0 0
        %1841 = vmatpush.bf16.msra.mxu0 0
        %1842 = vmatpush.bf16.msra.mxu0 0
        %1843 = vmatpush.bf16.msra.mxu0 0
        %1844 = vmatpush.bf16.msra.mxu0 %v1836
        %1845 = vmatpush.bf16.msra.mxu0 %v1829
        %1846 = vmatmul.bf16.gmra.mxu0 %v1833
        %v1847 = vpop.f32.mrf.mxu0
        %v1848 = vadd.f32 0.0, %v1847
        %v1849 = vpop.f32.mrf.mxu0
        %1850 = vdwg.mxu0
        %v1851 = vadd.f32 %v1818, %v1848
        %s1852 = scalar_lea.vmem %s3, 96
        %v1853 = vld [vmem:[%s1852] sm:$0xf]
        %v1854 = vld [vmem:[%s1852 + $0x4] sm:$0xf]
        %v1855 = vld [vmem:[%s1852 + $0x8] sm:$0x3]
        %v1859 = vunpack.c.l.b16 %v1853
        %v1860 = vunpack.c.l.b16 %v1854
        %v1861 = vunpack.c.l.b16 %v1855
        %v1862 = vpack.c.b16 %v1860, %v1859
        %v1863 = vpack.c.b16 %v1861, %v1861
        %v1866 = vsel %vm1605, %v1581, 0
        %v1869 = vsel %vm1609, %v1863, 0
        %1871 = vmatpush.bf16.msra.mxu0 0
        %1872 = vmatpush.bf16.msra.mxu0 0
        %1873 = vmatpush.bf16.msra.mxu0 0
        %1874 = vmatpush.bf16.msra.mxu0 0
        %1875 = vmatpush.bf16.msra.mxu0 0
        %1876 = vmatpush.bf16.msra.mxu0 0
        %1877 = vmatpush.bf16.msra.mxu0 %v1869
        %1878 = vmatpush.bf16.msra.mxu0 %v1862
        %1879 = vmatmul.bf16.gmra.mxu0 %v1866
        %v1880 = vpop.f32.mrf.mxu0
        %v1881 = vadd.f32 0.0, %v1880
        %v1882 = vpop.f32.mrf.mxu0
        %1883 = vdwg.mxu0
        %v1884 = vadd.f32 %v1851, %v1881
        %s1885 = scalar_lea.vmem %s3, 108
        %v1886 = vld [vmem:[%s1885] sm:$0xf]
        %v1887 = vld [vmem:[%s1885 + $0x4] sm:$0xf]
        %v1888 = vld [vmem:[%s1885 + $0x8] sm:$0x3]
        %v1892 = vunpack.c.l.b16 %v1886
        %v1893 = vunpack.c.l.b16 %v1887
        %v1894 = vunpack.c.l.b16 %v1888
        %v1895 = vpack.c.b16 %v1893, %v1892
        %v1896 = vpack.c.b16 %v1894, %v1894
        %v1899 = vsel %vm1605, %v1582, 0
        %v1902 = vsel %vm1609, %v1896, 0
        %1904 = vmatpush.bf16.msra.mxu0 0
        %1905 = vmatpush.bf16.msra.mxu0 0
        %1906 = vmatpush.bf16.msra.mxu0 0
        %1907 = vmatpush.bf16.msra.mxu0 0
        %1908 = vmatpush.bf16.msra.mxu0 0
        %1909 = vmatpush.bf16.msra.mxu0 0
        %1910 = vmatpush.bf16.msra.mxu0 %v1902
        %1911 = vmatpush.bf16.msra.mxu0 %v1895
        %1912 = vmatmul.bf16.gmra.mxu0 %v1899
        %v1913 = vpop.f32.mrf.mxu0
        %v1914 = vadd.f32 0.0, %v1913
        %v1915 = vpop.f32.mrf.mxu0
        %1916 = vdwg.mxu0
        %v1917 = vadd.f32 %v1884, %v1914
        %s1918 = scalar_lea.vmem %s3, 120
        %v1919 = vld [vmem:[%s1918] sm:$0xf]
        %v1920 = vld [vmem:[%s1918 + $0x4] sm:$0xf]
        %v1921 = vld [vmem:[%s1918 + $0x8] sm:$0x3]
        %v1925 = vunpack.c.l.b16 %v1919
        %v1926 = vunpack.c.l.b16 %v1920
        %v1927 = vunpack.c.l.b16 %v1921
        %v1928 = vpack.c.b16 %v1926, %v1925
        %v1929 = vpack.c.b16 %v1927, %v1927
        %v1932 = vsel %vm1605, %v1583, 0
        %v1935 = vsel %vm1609, %v1929, 0
        %1937 = vmatpush.bf16.msra.mxu0 0
        %1938 = vmatpush.bf16.msra.mxu0 0
        %1939 = vmatpush.bf16.msra.mxu0 0
        %1940 = vmatpush.bf16.msra.mxu0 0
        %1941 = vmatpush.bf16.msra.mxu0 0
        %1942 = vmatpush.bf16.msra.mxu0 0
        %1943 = vmatpush.bf16.msra.mxu0 %v1935
        %1944 = vmatpush.bf16.msra.mxu0 %v1928
        %1945 = vmatmul.bf16.gmra.mxu0 %v1932
        %v1946 = vpop.f32.mrf.mxu0
        %v1947 = vadd.f32 0.0, %v1946
        %v1948 = vpop.f32.mrf.mxu0
        %1949 = vdwg.mxu0
        %v1950 = vadd.f32 %v1917, %v1947
        %s1951 = scalar_lea.vmem %s3, 132
        %v1952 = vld [vmem:[%s1951] sm:$0xf]
        %v1953 = vld [vmem:[%s1951 + $0x4] sm:$0xf]
        %v1954 = vld [vmem:[%s1951 + $0x8] sm:$0x3]
        %v1958 = vunpack.c.l.b16 %v1952
        %v1959 = vunpack.c.l.b16 %v1953
        %v1960 = vunpack.c.l.b16 %v1954
        %v1961 = vpack.c.b16 %v1959, %v1958
        %v1962 = vpack.c.b16 %v1960, %v1960
        %v1965 = vsel %vm1605, %v1584, 0
        %v1968 = vsel %vm1609, %v1962, 0
        %1970 = vmatpush.bf16.msra.mxu0 0
        %1971 = vmatpush.bf16.msra.mxu0 0
        %1972 = vmatpush.bf16.msra.mxu0 0
        %1973 = vmatpush.bf16.msra.mxu0 0
        %1974 = vmatpush.bf16.msra.mxu0 0
        %1975 = vmatpush.bf16.msra.mxu0 0
        %1976 = vmatpush.bf16.msra.mxu0 %v1968
        %1977 = vmatpush.bf16.msra.mxu0 %v1961
        %1978 = vmatmul.bf16.gmra.mxu0 %v1965
        %v1979 = vpop.f32.mrf.mxu0
        %v1980 = vadd.f32 0.0, %v1979
        %v1981 = vpop.f32.mrf.mxu0
        %1982 = vdwg.mxu0
        %v1983 = vadd.f32 %v1950, %v1980
        %s1984 = scalar_lea.vmem %s3, 144
        %v1985 = vld [vmem:[%s1984] sm:$0xf]
        %v1986 = vld [vmem:[%s1984 + $0x4] sm:$0xf]
        %v1987 = vld [vmem:[%s1984 + $0x8] sm:$0x3]
        %v1991 = vunpack.c.l.b16 %v1985
        %v1992 = vunpack.c.l.b16 %v1986
        %v1993 = vunpack.c.l.b16 %v1987
        %v1994 = vpack.c.b16 %v1992, %v1991
        %v1995 = vpack.c.b16 %v1993, %v1993
        %v1998 = vsel %vm1605, %v1585, 0
        %v2001 = vsel %vm1609, %v1995, 0
        %2003 = vmatpush.bf16.msra.mxu0 0
        %2004 = vmatpush.bf16.msra.mxu0 0
        %2005 = vmatpush.bf16.msra.mxu0 0
        %2006 = vmatpush.bf16.msra.mxu0 0
        %2007 = vmatpush.bf16.msra.mxu0 0
        %2008 = vmatpush.bf16.msra.mxu0 0
        %2009 = vmatpush.bf16.msra.mxu0 %v2001
        %2010 = vmatpush.bf16.msra.mxu0 %v1994
        %2011 = vmatmul.bf16.gmra.mxu0 %v1998
        %v2012 = vpop.f32.mrf.mxu0
        %v2013 = vadd.f32 0.0, %v2012
        %v2014 = vpop.f32.mrf.mxu0
        %2015 = vdwg.mxu0
        %v2016 = vadd.f32 %v1983, %v2013
        %s2017 = scalar_lea.vmem %s3, 156
        %v2018 = vld [vmem:[%s2017] sm:$0xf]
        %v2019 = vld [vmem:[%s2017 + $0x4] sm:$0xf]
        %v2020 = vld [vmem:[%s2017 + $0x8] sm:$0x3]
        %v2024 = vunpack.c.l.b16 %v2018
        %v2025 = vunpack.c.l.b16 %v2019
        %v2026 = vunpack.c.l.b16 %v2020
        %v2027 = vpack.c.b16 %v2025, %v2024
        %v2028 = vpack.c.b16 %v2026, %v2026
        %v2031 = vsel %vm1605, %v1586, 0
        %v2034 = vsel %vm1609, %v2028, 0
        %2036 = vmatpush.bf16.msra.mxu0 0
        %2037 = vmatpush.bf16.msra.mxu0 0
        %2038 = vmatpush.bf16.msra.mxu0 0
        %2039 = vmatpush.bf16.msra.mxu0 0
        %2040 = vmatpush.bf16.msra.mxu0 0
        %2041 = vmatpush.bf16.msra.mxu0 0
        %2042 = vmatpush.bf16.msra.mxu0 %v2034
        %2043 = vmatpush.bf16.msra.mxu0 %v2027
        %2044 = vmatmul.bf16.gmra.mxu0 %v2031
        %v2045 = vpop.f32.mrf.mxu0
        %v2046 = vadd.f32 0.0, %v2045
        %v2047 = vpop.f32.mrf.mxu0
        %2048 = vdwg.mxu0
        %v2049 = vadd.f32 %v2016, %v2046
        %s2050 = scalar_lea.vmem %s3, 168
        %v2051 = vld [vmem:[%s2050] sm:$0xf]
        %v2052 = vld [vmem:[%s2050 + $0x4] sm:$0xf]
        %v2053 = vld [vmem:[%s2050 + $0x8] sm:$0x3]
        %v2057 = vunpack.c.l.b16 %v2051
        %v2058 = vunpack.c.l.b16 %v2052
        %v2059 = vunpack.c.l.b16 %v2053
        %v2060 = vpack.c.b16 %v2058, %v2057
        %v2061 = vpack.c.b16 %v2059, %v2059
        %v2064 = vsel %vm1605, %v1587, 0
        %v2067 = vsel %vm1609, %v2061, 0
        %2069 = vmatpush.bf16.msra.mxu0 0
        %2070 = vmatpush.bf16.msra.mxu0 0
        %2071 = vmatpush.bf16.msra.mxu0 0
        %2072 = vmatpush.bf16.msra.mxu0 0
        %2073 = vmatpush.bf16.msra.mxu0 0
        %2074 = vmatpush.bf16.msra.mxu0 0
        %2075 = vmatpush.bf16.msra.mxu0 %v2067
        %2076 = vmatpush.bf16.msra.mxu0 %v2060
        %2077 = vmatmul.bf16.gmra.mxu0 %v2064
        %v2078 = vpop.f32.mrf.mxu0
        %v2079 = vadd.f32 0.0, %v2078
        %v2080 = vpop.f32.mrf.mxu0
        %2081 = vdwg.mxu0
        %v2082 = vadd.f32 %v2049, %v2079
        %s2083 = scalar_lea.vmem %s3, 180
        %v2084 = vld [vmem:[%s2083] sm:$0xf]
        %v2085 = vld [vmem:[%s2083 + $0x4] sm:$0xf]
        %v2086 = vld [vmem:[%s2083 + $0x8] sm:$0x3]
        %v2090 = vunpack.c.l.b16 %v2084
        %v2091 = vunpack.c.l.b16 %v2085
        %v2092 = vunpack.c.l.b16 %v2086
        %v2093 = vpack.c.b16 %v2091, %v2090
        %v2094 = vpack.c.b16 %v2092, %v2092
        %v2097 = vsel %vm1605, %v1588, 0
        %v2100 = vsel %vm1609, %v2094, 0
        %2102 = vmatpush.bf16.msra.mxu0 0
        %2103 = vmatpush.bf16.msra.mxu0 0
        %2104 = vmatpush.bf16.msra.mxu0 0
        %2105 = vmatpush.bf16.msra.mxu0 0
        %2106 = vmatpush.bf16.msra.mxu0 0
        %2107 = vmatpush.bf16.msra.mxu0 0
        %2108 = vmatpush.bf16.msra.mxu0 %v2100
        %2109 = vmatpush.bf16.msra.mxu0 %v2093
        %2110 = vmatmul.bf16.gmra.mxu0 %v2097
        %v2111 = vpop.f32.mrf.mxu0
        %v2112 = vadd.f32 0.0, %v2111
        %v2113 = vpop.f32.mrf.mxu0
        %2114 = vdwg.mxu0
        %v2115 = vadd.f32 %v2082, %v2112
        %v2116 = vld [vmem:[%s4] sm:$0x1]
        %v2118 = vperm.slane %v2116, 0
        %v2120 = vadd.f32 %v2115, %v2118
        %v2121 = vmax.f32 %v2120, 0.0
        %vm2122 = vcmask 408576
        %2123 = vst.msk [vmem:[%s511] sm:$0xff] %vm2122, %v2121
        %s2124 = sand.u32 %s137, 1
        %s2125 = scalar_lea.sflag [#allocation4], %s2124
        %s2126 = sand.u32 %s137, 1
        %s2127 = smul.addr %s2126, 8
        %s2128 = scalar_lea.vmem [#allocation3], %s2127
        // Predicated region
        $region79: #{net_without_last.3} parent=73 // pred_check
          %p2129 = pneg %p147
        $region80: #{net_without_last.3} parent=73 // pred_check_branch
          %2131 = sbr.rel (%p2129) target = $region82
        $region81: #{net_without_last.3} parent=73 // pred_region
          %2133 = vsyncadd %s2125, 0
          %s2134 = smul.addr %s19, 8
          %s2135 = scalar_lea.hbm %s5, %s2134
          %s2137 = sshll.u32 %s2128, 4
          %s2138 = int_to_ptr.vmem [resolvable:$true] %s2137
          %s2139 = sshll.u32 %s2135, 4
          %s2140 = int_to_ptr.hbm [resolvable:$true] %s2139
          %2142 = dma.vmem_to_hbm [thread:$0]  %s2138, 128, %s2140, %s2125
        $region82: #{net_without_last.3} parent=73 // pred_fallthru
          _
      $region74: #{net_without_last.3} parent=5 // pred_fallthru
        _
      %p2143 = scmp.le.s32.totalorder 2, %s14
      // Predicated region
      $region83: #{net_without_last.3} parent=5 // pred_check
        %p2144 = pneg %p2143
      $region84: #{net_without_last.3} parent=5 // pred_check_branch
        %2146 = sbr.rel (%p2144) target = $region86
      $region85: #{net_without_last.3} parent=5 // pred_region
        %s2147 = ssub.s32 %s14, 2
        // Predicated region
        $region87: #{net_without_last.3} parent=85 // pred_check
          %p2148 = pneg %p153
        $region88: #{net_without_last.3} parent=85 // pred_check_branch
          %2150 = sbr.rel (%p2148) target = $region90
        $region89: #{net_without_last.3} parent=85 // pred_region
          %s2151 = sand.u32 %s138, 1
          %s2152 = scalar_lea.sflag [#allocation4], %s2151
          %s2153 = sand.u32 %s138, 1
          %s2154 = smul.addr %s2153, 8
          %s2155 = scalar_lea.vmem [#allocation3], %s2154
          %2157 = dma.done %s2152, 128
        $region90: #{net_without_last.3} parent=85 // pred_fallthru
          _
      $region86: #{net_without_last.3} parent=5 // pred_fallthru
        _
    $region6: #{net_without_last.3} parent=1 // loop_footer
      %s18 = sadd.s32 1, %s14
    $region7: #{net_without_last.3} parent=1 // loop_footer_branch
      %13 = sbr.rel target = $region3
    $region8: #{net_without_last.3} parent=1 // loop_exit
      _
    %2158 = vsyncpa [#allocation4], 1
    %s2159 = scalar_lea.sflag [#allocation4], 1
    %2160 = vsyncpa %s2159, 1

</llo_original>
